<compile_context>
chip_gen: v7x
topology: tpu7x:2x2x1
jax: 0.10.0
libtpu: 0.0.40
codegen_flags: <defaults>
</compile_context>

<pallas_src>
import jax
import jax.numpy as jnp
from jax import lax
from jax.experimental import pallas as pl
from jax.experimental.pallas import tpu as pltpu

HP = 128  # per-gate OUTPUT lane padding (vreg lane width)


def _gru_kernel(x_ref, h0_ref, w_ih0_ref, w_ih_ref, w_hh_ref,
                bias_i_ref, b_hh_n_ref, h_out_ref, seq_buf, gi_buf):
    S, B, IP = x_ref.shape
    L, _, H = h0_ref.shape
    HP3 = gi_buf.shape[-1]

    for l in range(L):                                   # static layer loop
        # ---- Hoisted per-layer input projection (off the serial chain). ----
        # One (S*B, K) @ (K, 3*HP) matmul; b_ih and the r/z slabs of b_hh are
        # pre-folded into bias_i.
        if l == 0:
            x_all = x_ref[...].reshape(S * B, IP)
            w_in = w_ih0_ref[...]                        # (IP, 3*HP)
        else:
            x_all = seq_buf[...].reshape(S * B, H)
            w_in = w_ih_ref[l - 1]                       # (H, 3*HP)
        gi = jnp.dot(x_all, w_in, preferred_element_type=jnp.float32)
        gi_buf[...] = (gi + bias_i_ref[l]).reshape(S, B, HP3)

        w_hh_t = w_hh_ref[l]                             # (H, 3*HP): 12 vregs
        b_hn = jnp.broadcast_to(b_hh_n_ref[l], (B, H))   # hoisted broadcast

        write_seq = l < L - 1   # last layer's per-step outputs not consumed

        def step(t, h, w_hh_t=w_hh_t, b_hn=b_hn, write_seq=write_seq):
            gi_t = gi_buf[t]                                       # (B, 3*HP)
            gh = jnp.dot(h, w_hh_t, preferred_element_type=jnp.float32)
            # 128-aligned, width-H gate slices (masked single-vreg views).
            r = jax.nn.sigmoid(gi_t[:, 0:H] + gh[:, 0:H])
            z = jax.nn.sigmoid(gi_t[:, HP:HP + H] + gh[:, HP:HP + H])
            n = jnp.tanh(gi_t[:, 2 * HP:2 * HP + H]
                         + r * (gh[:, 2 * HP:2 * HP + H] + b_hn))
            h_new = n + z * (h - n)
            if write_seq:
                seq_buf[t] = h_new          # next layer's input at time t
            return h_new

        h_out_ref[l] = lax.fori_loop(0, S, step, h0_ref[l], unroll=True)


# ----------------------------------------------------------------------------
# One-time parameter preparation (do NOT call per forward).
# ----------------------------------------------------------------------------
def _gate_pad_cols(w_t, hidden):
    """(K, 3H) -> (K, 3*HP): each gate slab placed at lane offsets 0/HP/2HP."""
    k = w_t.shape[0]
    w3 = w_t.reshape(k, 3, hidden)
    out = jnp.zeros((k, 3, HP), jnp.float32).at[:, :, :hidden].set(w3)
    return out.reshape(k, 3 * HP)


def _prep_w(w, hidden, k_pad=None):
    """PyTorch (3H, Din) weight -> (Kp, 3*HP): transposed + gate-padded."""
    din = w.shape[1]
    kp = din if k_pad is None else k_pad
    w_t = jnp.zeros((kp, 3 * hidden), jnp.float32).at[:din, :].set(w.T)
    return _gate_pad_cols(w_t, hidden)


def _prep_bias_i(b_ih, b_hh, hidden):
    """b_ih + (r,z slabs of b_hh) -> (1, 3*HP); the n slab stays separate."""
    b = b_ih + jnp.concatenate(
        [b_hh[:2 * hidden], jnp.zeros((hidden,), jnp.float32)])
    out = jnp.zeros((3, HP), jnp.float32).at[:, :hidden].set(
        b.reshape(3, hidden))
    return out.reshape(1, 3 * HP)


def prepare_gru_params(w_ih_list, w_hh_list, b_ih_list, b_hh_list, hidden):
    """Transpose / pad / fold the GRU weights once; reuse across forwards."""
    L = len(w_ih_list)
    inp = w_ih_list[0].shape[1]
    ip = ((inp + 7) // 8) * 8                       # pad layer-0 K dim to 8
    w_ih0_t = _prep_w(w_ih_list[0], hidden, k_pad=ip)           # (IP, 3*HP)
    if L > 1:
        w_ih_t = jnp.stack(
            [_prep_w(w_ih_list[l], hidden) for l in range(1, L)])
    else:
        w_ih_t = jnp.zeros((1, hidden, 3 * HP), jnp.float32)    # never indexed
    w_hh_t = jnp.stack([_prep_w(w_hh_list[l], hidden) for l in range(L)])
    bias_i = jnp.stack([_prep_bias_i(b_ih_list[l], b_hh_list[l], hidden)
                        for l in range(L)])                     # (L, 1, 3*HP)
    b_hh_n = jnp.stack([b_hh_list[l][2 * hidden:].reshape(1, hidden)
                        for l in range(L)])                     # (L, 1, H)
    return w_ih0_t, w_ih_t, w_hh_t, bias_i, b_hh_n


# ----------------------------------------------------------------------------
# Per-call forward (weights arrive ready-to-use).
# ----------------------------------------------------------------------------
@jax.jit
def grunet_forward(x, h0, w_ih0_t, w_ih_t, w_hh_t, bias_i, b_hh_n, w_fc, b_fc):
    """x: (B, S, I) batch_first (like PyTorch); h0: (L, B, H). Returns (y, h)."""
    B, S, I = x.shape
    L, _, H = h0.shape
    IP = w_ih0_t.shape[0]
    HP3 = w_hh_t.shape[-1]

    # Only per-call data prep: time-major + pad the 7-wide feature dim to 8.
    x_t = jnp.transpose(x, (1, 0, 2))
    x_pad = jnp.zeros((S, B, IP), jnp.float32).at[:, :, :I].set(x_t)

    # NOTE: the single grid axis must stay size-1 / "arbitrary" — the kernel
    # writes every layer's h_out slot in one invocation.
    grid_spec = pltpu.PrefetchScalarGridSpec(
        num_scalar_prefetch=0,
        grid=(1,),
        in_specs=[
            pl.BlockSpec((S, B, IP), lambda i: (0, 0, 0)),     # x (time-major)
            pl.BlockSpec((L, B, H), lambda i: (0, 0, 0)),      # h0
            pl.BlockSpec((IP, HP3), lambda i: (0, 0)),         # W_ih^T layer 0
            pl.BlockSpec(w_ih_t.shape, lambda i: (0, 0, 0)),   # W_ih^T layers>0
            pl.BlockSpec((L, H, HP3), lambda i: (0, 0, 0)),    # W_hh^T
            pl.BlockSpec((L, 1, HP3), lambda i: (0, 0, 0)),    # b_ih + b_hh[r,z]
            pl.BlockSpec((L, 1, H), lambda i: (0, 0, 0)),      # b_hh[n]
        ],
        out_specs=pl.BlockSpec((L, B, H), lambda i: (0, 0, 0)),  # h per layer
        scratch_shapes=[
            pltpu.VMEM((S, B, H), jnp.float32),        # layer outputs (seq)
            pltpu.VMEM((S, B, 3 * HP), jnp.float32),   # hoisted gi for a layer
        ],
    )

    h_out = pl.pallas_call(
        _gru_kernel,
        grid_spec=grid_spec,
        out_shape=jax.ShapeDtypeStruct((L, B, H), jnp.float32),
        compiler_params=pltpu.CompilerParams(
            dimension_semantics=("arbitrary",)),
    )(x_pad, h0, w_ih0_t, w_ih_t, w_hh_t, bias_i, b_hh_n)

    # out[:, -1] of the GRU == final hidden state of the last layer.
    y = jnp.maximum(h_out[L - 1], 0.0) @ w_fc.T + b_fc            # (B, 1)
    return y, h_out


# ----------------------------------------------------------------------------
# Pure-JAX reference of the PyTorch forward (eval mode).
# ----------------------------------------------------------------------------
def grunet_reference(x_bsi, h0, w_ih_list, w_hh_list, b_ih_list, b_hh_list,
                     w_fc, b_fc):
    B, S, _ = x_bsi.shape
    L = h0.shape[0]
    H = h0.shape[2]
    layer_in = x_bsi
    h_finals = []
    for l in range(L):
        wi, wh, bi, bh = w_ih_list[l], w_hh_list[l], b_ih_list[l], b_hh_list[l]
        h = h0[l]
        outs = []
        for t in range(S):
            x_t = layer_in[:, t, :]
            gi = x_t @ wi.T + bi
            gh = h @ wh.T + bh
            r = jax.nn.sigmoid(gi[:, :H] + gh[:, :H])
            z = jax.nn.sigmoid(gi[:, H:2 * H] + gh[:, H:2 * H])
            n = jnp.tanh(gi[:, 2 * H:] + r * gh[:, 2 * H:])
            h = (1.0 - z) * n + z * h
            outs.append(h)
        layer_in = jnp.stack(outs, axis=1)
        h_finals.append(h)
    out_last = layer_in[:, -1]
    y = jnp.maximum(out_last, 0.0) @ w_fc.T + b_fc
    return y, jnp.stack(h_finals, axis=0)


if __name__ == "__main__":
    # Small shapes consistent with GRUNET: input_size=7 (fixed by the module),
    # hidden_dim=32, n_layers=2, batch=8, seq=8.
    INPUT = 7
    HIDDEN = 32
    LAYERS = 2
    B = 8
    S = 8

    key = jax.random.PRNGKey(0)
    keys = jax.random.split(key, 16)
    k = 1.0 / jnp.sqrt(HIDDEN)

    def uni(kk, shape):
        return jax.random.uniform(kk, shape, jnp.float32, minval=-k, maxval=k)

    # PyTorch-shaped GRU parameters (gate order r, z, n).
    w_ih_l0 = uni(keys[0], (3 * HIDDEN, INPUT))
    w_hh_l0 = uni(keys[1], (3 * HIDDEN, HIDDEN))
    b_ih_l0 = uni(keys[2], (3 * HIDDEN,))
    b_hh_l0 = uni(keys[3], (3 * HIDDEN,))
    w_ih_l1 = uni(keys[4], (3 * HIDDEN, HIDDEN))
    w_hh_l1 = uni(keys[5], (3 * HIDDEN, HIDDEN))
    b_ih_l1 = uni(keys[6], (3 * HIDDEN,))
    b_hh_l1 = uni(keys[7], (3 * HIDDEN,))
    w_fc = uni(keys[8], (1, HIDDEN))
    b_fc = uni(keys[9], (1,))

    w_ih_list = [w_ih_l0, w_ih_l1]
    w_hh_list = [w_hh_l0, w_hh_l1]
    b_ih_list = [b_ih_l0, b_ih_l1]
    b_hh_list = [b_hh_l0, b_hh_l1]

    x = jax.random.normal(keys[10], (B, S, INPUT), jnp.float32)
    h0 = jnp.zeros((LAYERS, B, HIDDEN), jnp.float32)  # matches init_hidden()

    # One-time weight preparation (not part of the per-call forward).
    w_ih0_t, w_ih_t, w_hh_t, bias_i, b_hh_n = prepare_gru_params(
        w_ih_list, w_hh_list, b_ih_list, b_hh_list, HIDDEN)
    jax.block_until_ready((w_ih0_t, w_ih_t, w_hh_t, bias_i, b_hh_n))

    y, h_out = grunet_forward(x, h0, w_ih0_t, w_ih_t, w_hh_t, bias_i, b_hh_n,
                              w_fc, b_fc)
    jax.block_until_ready((y, h_out))

    y_ref, h_ref = grunet_reference(x, h0, w_ih_list, w_hh_list, b_ih_list,
                                    b_hh_list, w_fc, b_fc)

    assert jnp.allclose(y, y_ref, atol=1e-5, rtol=1e-5), "y mismatch"
    assert jnp.allclose(h_out, h_ref, atol=1e-5, rtol=1e-5), "h mismatch"

    print("KERNEL_OK")
</pallas_src>

<mosaic_0001>
module attributes {stable_mosaic.version = 11 : i64} {
  func.func @_gru_kernel(%arg0: i32, %arg1: memref<8x8x8xf32, #tpu.memory_space<vmem>>, %arg2: memref<2x8x32xf32, #tpu.memory_space<vmem>>, %arg3: memref<8x384xf32, #tpu.memory_space<vmem>>, %arg4: memref<1x32x384xf32, #tpu.memory_space<vmem>>, %arg5: memref<2x32x384xf32, #tpu.memory_space<vmem>>, %arg6: memref<2x1x384xf32, #tpu.memory_space<vmem>>, %arg7: memref<2x1x32xf32, #tpu.memory_space<vmem>>, %arg8: memref<2x8x32xf32, #tpu.memory_space<vmem>>, %arg9: memref<8x8x32xf32, #tpu.memory_space<vmem>>, %arg10: memref<8x8x384xf32, #tpu.memory_space<vmem>>) attributes {dimension_semantics = [#tpu.dimension_semantics<arbitrary>], iteration_bounds = array<i64: 1>, scalar_prefetch = 0 : i64, scratch_operands = 2 : i64, tpu.core_type = #tpu.core_type<tc>, window_params = [{pipeline_mode = #tpu.pipeline_mode<synchronous>, transform_indices = @transform_0, window_bounds = array<i64: 8, 8, 8>}, {pipeline_mode = #tpu.pipeline_mode<synchronous>, transform_indices = @transform_1, window_bounds = array<i64: 2, 8, 32>}, {pipeline_mode = #tpu.pipeline_mode<synchronous>, transform_indices = @transform_2, window_bounds = array<i64: 8, 384>}, {pipeline_mode = #tpu.pipeline_mode<synchronous>, transform_indices = @transform_3, window_bounds = array<i64: 1, 32, 384>}, {pipeline_mode = #tpu.pipeline_mode<synchronous>, transform_indices = @transform_4, window_bounds = array<i64: 2, 32, 384>}, {pipeline_mode = #tpu.pipeline_mode<synchronous>, transform_indices = @transform_5, window_bounds = array<i64: 2, 1, 384>}, {pipeline_mode = #tpu.pipeline_mode<synchronous>, transform_indices = @transform_6, window_bounds = array<i64: 2, 1, 32>}, {pipeline_mode = #tpu.pipeline_mode<synchronous>, transform_indices = @transform_7, window_bounds = array<i64: 2, 8, 32>}]} {
    %c0 = arith.constant 0 : index
    %c0_0 = arith.constant 0 : index
    %c0_1 = arith.constant 0 : index
    %0 = vector.load %arg1[%c0, %c0_0, %c0_1] : memref<8x8x8xf32, #tpu.memory_space<vmem>>, vector<8x8x8xf32>
    %1 = vector.shape_cast %0 : vector<8x8x8xf32> to vector<64x8xf32>
    %c0_2 = arith.constant 0 : index
    %c0_3 = arith.constant 0 : index
    %2 = vector.load %arg3[%c0_2, %c0_3] : memref<8x384xf32, #tpu.memory_space<vmem>>, vector<8x384xf32>
    %cst = arith.constant dense<0.000000e+00> : vector<64x384xf32>
    %3 = tpu.matmul %1, %2, %cst {dimension_numbers = #tpu.dot_dimension_numbers<[1], [0], [0], [1], [0, 0, 1, 1], [], []>} : vector<64x8xf32>, vector<8x384xf32>, vector<64x384xf32> -> vector<64x384xf32>
    %c0_4 = arith.constant 0 : index
    %c0_5 = arith.constant 0 : index
    %c0_6 = arith.constant 0 : index
    %4 = vector.load %arg6[%c0_4, %c0_5, %c0_6] : memref<2x1x384xf32, #tpu.memory_space<vmem>>, vector<1x1x384xf32>
    %5 = vector.shape_cast %4 : vector<1x1x384xf32> to vector<1x384xf32>
    %6 = vector.broadcast %5 : vector<1x384xf32> to vector<64x384xf32>
    %7 = arith.addf %3, %6 : vector<64x384xf32>
    %8 = vector.shape_cast %7 : vector<64x384xf32> to vector<8x8x384xf32>
    %c0_7 = arith.constant 0 : index
    %c0_8 = arith.constant 0 : index
    %c0_9 = arith.constant 0 : index
    %9 = vector.load %arg10[%c0_7, %c0_8, %c0_9] : memref<8x8x384xf32, #tpu.memory_space<vmem>>, vector<8x8x384xf32>
    tpu.vector_store %arg10[%c0_7, %c0_8, %c0_9], %8 {strides = array<i32>} : memref<8x8x384xf32, #tpu.memory_space<vmem>>, vector<8x8x384xf32>,
    %c0_10 = arith.constant 0 : index
    %c0_11 = arith.constant 0 : index
    %c0_12 = arith.constant 0 : index
    %10 = vector.load %arg5[%c0_10, %c0_11, %c0_12] : memref<2x32x384xf32, #tpu.memory_space<vmem>>, vector<1x32x384xf32>
    %11 = vector.shape_cast %10 : vector<1x32x384xf32> to vector<32x384xf32>
    %c0_13 = arith.constant 0 : index
    %c0_14 = arith.constant 0 : index
    %c0_15 = arith.constant 0 : index
    %12 = vector.load %arg7[%c0_13, %c0_14, %c0_15] : memref<2x1x32xf32, #tpu.memory_space<vmem>>, vector<1x1x32xf32>
    %13 = vector.shape_cast %12 : vector<1x1x32xf32> to vector<1x32xf32>
    %14 = vector.shape_cast %13 : vector<1x32xf32> to vector<1x32xf32>
    %15 = vector.broadcast %14 : vector<1x32xf32> to vector<8x32xf32>
    %c0_16 = arith.constant 0 : index
    %c0_17 = arith.constant 0 : index
    %c0_18 = arith.constant 0 : index
    %16 = vector.load %arg2[%c0_16, %c0_17, %c0_18] : memref<2x8x32xf32, #tpu.memory_space<vmem>>, vector<1x8x32xf32>
    %17 = vector.shape_cast %16 : vector<1x8x32xf32> to vector<8x32xf32>
    %c0_i32 = arith.constant 0 : i32
    %18 = arith.index_cast %c0_i32 : i32 to index
    %c0_19 = arith.constant 0 : index
    %c0_20 = arith.constant 0 : index
    %19 = vector.load %arg10[%18, %c0_19, %c0_20] : memref<8x8x384xf32, #tpu.memory_space<vmem>>, vector<1x8x384xf32>
    %20 = vector.shape_cast %19 : vector<1x8x384xf32> to vector<8x384xf32>
    %cst_21 = arith.constant dense<0.000000e+00> : vector<8x384xf32>
    %21 = tpu.matmul %17, %11, %cst_21 {dimension_numbers = #tpu.dot_dimension_numbers<[1], [0], [0], [1], [0, 0, 1, 1], [], []>} : vector<8x32xf32>, vector<32x384xf32>, vector<8x384xf32> -> vector<8x384xf32>
    %22 = vector.extract_strided_slice %20 {offsets = [0, 0], sizes = [8, 32], strides = [1, 1]} : vector<8x384xf32> to vector<8x32xf32>
    %23 = vector.extract_strided_slice %21 {offsets = [0, 0], sizes = [8, 32], strides = [1, 1]} : vector<8x384xf32> to vector<8x32xf32>
    %24 = arith.addf %22, %23 : vector<8x32xf32>
    %25 = arith.negf %24 : vector<8x32xf32>
    %26 = math.exp %25 : vector<8x32xf32>
    %cst_22 = arith.constant 1.000000e+00 : f32
    %27 = vector.broadcast %cst_22 : f32 to vector<8x32xf32>
    %28 = arith.addf %27, %26 : vector<8x32xf32>
    %29 = arith.divf %27, %28 : vector<8x32xf32>
    %30 = vector.extract_strided_slice %20 {offsets = [0, 128], sizes = [8, 32], strides = [1, 1]} : vector<8x384xf32> to vector<8x32xf32>
    %31 = vector.extract_strided_slice %21 {offsets = [0, 128], sizes = [8, 32], strides = [1, 1]} : vector<8x384xf32> to vector<8x32xf32>
    %32 = arith.addf %30, %31 : vector<8x32xf32>
    %33 = arith.negf %32 : vector<8x32xf32>
    %34 = math.exp %33 : vector<8x32xf32>
    %cst_23 = arith.constant 1.000000e+00 : f32
    %35 = vector.broadcast %cst_23 : f32 to vector<8x32xf32>
    %36 = arith.addf %35, %34 : vector<8x32xf32>
    %37 = arith.divf %35, %36 : vector<8x32xf32>
    %38 = vector.extract_strided_slice %20 {offsets = [0, 256], sizes = [8, 32], strides = [1, 1]} : vector<8x384xf32> to vector<8x32xf32>
    %39 = vector.extract_strided_slice %21 {offsets = [0, 256], sizes = [8, 32], strides = [1, 1]} : vector<8x384xf32> to vector<8x32xf32>
    %40 = arith.addf %39, %15 : vector<8x32xf32>
    %41 = arith.mulf %29, %40 : vector<8x32xf32>
    %42 = arith.addf %38, %41 : vector<8x32xf32>
    %43 = math.tanh %42 : vector<8x32xf32>
    %44 = arith.subf %17, %43 : vector<8x32xf32>
    %45 = arith.mulf %37, %44 : vector<8x32xf32>
    %46 = arith.addf %43, %45 : vector<8x32xf32>
    %47 = arith.index_cast %c0_i32 : i32 to index
    %c0_24 = arith.constant 0 : index
    %c0_25 = arith.constant 0 : index
    %48 = vector.load %arg9[%47, %c0_24, %c0_25] : memref<8x8x32xf32, #tpu.memory_space<vmem>>, vector<1x8x32xf32>
    %49 = vector.shape_cast %48 : vector<1x8x32xf32> to vector<8x32xf32>
    %50 = vector.shape_cast %46 : vector<8x32xf32> to vector<1x8x32xf32>
    tpu.vector_store %arg9[%47, %c0_24, %c0_25], %50 {strides = array<i32>} : memref<8x8x32xf32, #tpu.memory_space<vmem>>, vector<1x8x32xf32>,
    %c1_i32 = arith.constant 1 : i32
    %51 = arith.index_cast %c1_i32 : i32 to index
    %c0_26 = arith.constant 0 : index
    %c0_27 = arith.constant 0 : index
    %52 = vector.load %arg10[%51, %c0_26, %c0_27] : memref<8x8x384xf32, #tpu.memory_space<vmem>>, vector<1x8x384xf32>
    %53 = vector.shape_cast %52 : vector<1x8x384xf32> to vector<8x384xf32>
    %cst_28 = arith.constant dense<0.000000e+00> : vector<8x384xf32>
    %54 = tpu.matmul %46, %11, %cst_28 {dimension_numbers = #tpu.dot_dimension_numbers<[1], [0], [0], [1], [0, 0, 1, 1], [], []>} : vector<8x32xf32>, vector<32x384xf32>, vector<8x384xf32> -> vector<8x384xf32>
    %55 = vector.extract_strided_slice %53 {offsets = [0, 0], sizes = [8, 32], strides = [1, 1]} : vector<8x384xf32> to vector<8x32xf32>
    %56 = vector.extract_strided_slice %54 {offsets = [0, 0], sizes = [8, 32], strides = [1, 1]} : vector<8x384xf32> to vector<8x32xf32>
    %57 = arith.addf %55, %56 : vector<8x32xf32>
    %58 = arith.negf %57 : vector<8x32xf32>
    %59 = math.exp %58 : vector<8x32xf32>
    %cst_29 = arith.constant 1.000000e+00 : f32
    %60 = vector.broadcast %cst_29 : f32 to vector<8x32xf32>
    %61 = arith.addf %60, %59 : vector<8x32xf32>
    %62 = arith.divf %60, %61 : vector<8x32xf32>
    %63 = vector.extract_strided_slice %53 {offsets = [0, 128], sizes = [8, 32], strides = [1, 1]} : vector<8x384xf32> to vector<8x32xf32>
    %64 = vector.extract_strided_slice %54 {offsets = [0, 128], sizes = [8, 32], strides = [1, 1]} : vector<8x384xf32> to vector<8x32xf32>
    %65 = arith.addf %63, %64 : vector<8x32xf32>
    %66 = arith.negf %65 : vector<8x32xf32>
    %67 = math.exp %66 : vector<8x32xf32>
    %cst_30 = arith.constant 1.000000e+00 : f32
    %68 = vector.broadcast %cst_30 : f32 to vector<8x32xf32>
    %69 = arith.addf %68, %67 : vector<8x32xf32>
    %70 = arith.divf %68, %69 : vector<8x32xf32>
    %71 = vector.extract_strided_slice %53 {offsets = [0, 256], sizes = [8, 32], strides = [1, 1]} : vector<8x384xf32> to vector<8x32xf32>
    %72 = vector.extract_strided_slice %54 {offsets = [0, 256], sizes = [8, 32], strides = [1, 1]} : vector<8x384xf32> to vector<8x32xf32>
    %73 = arith.addf %72, %15 : vector<8x32xf32>
    %74 = arith.mulf %62, %73 : vector<8x32xf32>
    %75 = arith.addf %71, %74 : vector<8x32xf32>
    %76 = math.tanh %75 : vector<8x32xf32>
    %77 = arith.subf %46, %76 : vector<8x32xf32>
    %78 = arith.mulf %70, %77 : vector<8x32xf32>
    %79 = arith.addf %76, %78 : vector<8x32xf32>
    %80 = arith.index_cast %c1_i32 : i32 to index
    %c0_31 = arith.constant 0 : index
    %c0_32 = arith.constant 0 : index
    %81 = vector.load %arg9[%80, %c0_31, %c0_32] : memref<8x8x32xf32, #tpu.memory_space<vmem>>, vector<1x8x32xf32>
    %82 = vector.shape_cast %81 : vector<1x8x32xf32> to vector<8x32xf32>
    %83 = vector.shape_cast %79 : vector<8x32xf32> to vector<1x8x32xf32>
    tpu.vector_store %arg9[%80, %c0_31, %c0_32], %83 {strides = array<i32>} : memref<8x8x32xf32, #tpu.memory_space<vmem>>, vector<1x8x32xf32>,
    %c2_i32 = arith.constant 2 : i32
    %84 = arith.index_cast %c2_i32 : i32 to index
    %c0_33 = arith.constant 0 : index
    %c0_34 = arith.constant 0 : index
    %85 = vector.load %arg10[%84, %c0_33, %c0_34] : memref<8x8x384xf32, #tpu.memory_space<vmem>>, vector<1x8x384xf32>
    %86 = vector.shape_cast %85 : vector<1x8x384xf32> to vector<8x384xf32>
    %cst_35 = arith.constant dense<0.000000e+00> : vector<8x384xf32>
    %87 = tpu.matmul %79, %11, %cst_35 {dimension_numbers = #tpu.dot_dimension_numbers<[1], [0], [0], [1], [0, 0, 1, 1], [], []>} : vector<8x32xf32>, vector<32x384xf32>, vector<8x384xf32> -> vector<8x384xf32>
    %88 = vector.extract_strided_slice %86 {offsets = [0, 0], sizes = [8, 32], strides = [1, 1]} : vector<8x384xf32> to vector<8x32xf32>
    %89 = vector.extract_strided_slice %87 {offsets = [0, 0], sizes = [8, 32], strides = [1, 1]} : vector<8x384xf32> to vector<8x32xf32>
    %90 = arith.addf %88, %89 : vector<8x32xf32>
    %91 = arith.negf %90 : vector<8x32xf32>
    %92 = math.exp %91 : vector<8x32xf32>
    %cst_36 = arith.constant 1.000000e+00 : f32
    %93 = vector.broadcast %cst_36 : f32 to vector<8x32xf32>
    %94 = arith.addf %93, %92 : vector<8x32xf32>
    %95 = arith.divf %93, %94 : vector<8x32xf32>
    %96 = vector.extract_strided_slice %86 {offsets = [0, 128], sizes = [8, 32], strides = [1, 1]} : vector<8x384xf32> to vector<8x32xf32>
    %97 = vector.extract_strided_slice %87 {offsets = [0, 128], sizes = [8, 32], strides = [1, 1]} : vector<8x384xf32> to vector<8x32xf32>
    %98 = arith.addf %96, %97 : vector<8x32xf32>
    %99 = arith.negf %98 : vector<8x32xf32>
    %100 = math.exp %99 : vector<8x32xf32>
    %cst_37 = arith.constant 1.000000e+00 : f32
    %101 = vector.broadcast %cst_37 : f32 to vector<8x32xf32>
    %102 = arith.addf %101, %100 : vector<8x32xf32>
    %103 = arith.divf %101, %102 : vector<8x32xf32>
    %104 = vector.extract_strided_slice %86 {offsets = [0, 256], sizes = [8, 32], strides = [1, 1]} : vector<8x384xf32> to vector<8x32xf32>
    %105 = vector.extract_strided_slice %87 {offsets = [0, 256], sizes = [8, 32], strides = [1, 1]} : vector<8x384xf32> to vector<8x32xf32>
    %106 = arith.addf %105, %15 : vector<8x32xf32>
    %107 = arith.mulf %95, %106 : vector<8x32xf32>
    %108 = arith.addf %104, %107 : vector<8x32xf32>
    %109 = math.tanh %108 : vector<8x32xf32>
    %110 = arith.subf %79, %109 : vector<8x32xf32>
    %111 = arith.mulf %103, %110 : vector<8x32xf32>
    %112 = arith.addf %109, %111 : vector<8x32xf32>
    %113 = arith.index_cast %c2_i32 : i32 to index
    %c0_38 = arith.constant 0 : index
    %c0_39 = arith.constant 0 : index
    %114 = vector.load %arg9[%113, %c0_38, %c0_39] : memref<8x8x32xf32, #tpu.memory_space<vmem>>, vector<1x8x32xf32>
    %115 = vector.shape_cast %114 : vector<1x8x32xf32> to vector<8x32xf32>
    %116 = vector.shape_cast %112 : vector<8x32xf32> to vector<1x8x32xf32>
    tpu.vector_store %arg9[%113, %c0_38, %c0_39], %116 {strides = array<i32>} : memref<8x8x32xf32, #tpu.memory_space<vmem>>, vector<1x8x32xf32>,
    %c3_i32 = arith.constant 3 : i32
    %117 = arith.index_cast %c3_i32 : i32 to index
    %c0_40 = arith.constant 0 : index
    %c0_41 = arith.constant 0 : index
    %118 = vector.load %arg10[%117, %c0_40, %c0_41] : memref<8x8x384xf32, #tpu.memory_space<vmem>>, vector<1x8x384xf32>
    %119 = vector.shape_cast %118 : vector<1x8x384xf32> to vector<8x384xf32>
    %cst_42 = arith.constant dense<0.000000e+00> : vector<8x384xf32>
    %120 = tpu.matmul %112, %11, %cst_42 {dimension_numbers = #tpu.dot_dimension_numbers<[1], [0], [0], [1], [0, 0, 1, 1], [], []>} : vector<8x32xf32>, vector<32x384xf32>, vector<8x384xf32> -> vector<8x384xf32>
    %121 = vector.extract_strided_slice %119 {offsets = [0, 0], sizes = [8, 32], strides = [1, 1]} : vector<8x384xf32> to vector<8x32xf32>
    %122 = vector.extract_strided_slice %120 {offsets = [0, 0], sizes = [8, 32], strides = [1, 1]} : vector<8x384xf32> to vector<8x32xf32>
    %123 = arith.addf %121, %122 : vector<8x32xf32>
    %124 = arith.negf %123 : vector<8x32xf32>
    %125 = math.exp %124 : vector<8x32xf32>
    %cst_43 = arith.constant 1.000000e+00 : f32
    %126 = vector.broadcast %cst_43 : f32 to vector<8x32xf32>
    %127 = arith.addf %126, %125 : vector<8x32xf32>
    %128 = arith.divf %126, %127 : vector<8x32xf32>
    %129 = vector.extract_strided_slice %119 {offsets = [0, 128], sizes = [8, 32], strides = [1, 1]} : vector<8x384xf32> to vector<8x32xf32>
    %130 = vector.extract_strided_slice %120 {offsets = [0, 128], sizes = [8, 32], strides = [1, 1]} : vector<8x384xf32> to vector<8x32xf32>
    %131 = arith.addf %129, %130 : vector<8x32xf32>
    %132 = arith.negf %131 : vector<8x32xf32>
    %133 = math.exp %132 : vector<8x32xf32>
    %cst_44 = arith.constant 1.000000e+00 : f32
    %134 = vector.broadcast %cst_44 : f32 to vector<8x32xf32>
    %135 = arith.addf %134, %133 : vector<8x32xf32>
    %136 = arith.divf %134, %135 : vector<8x32xf32>
    %137 = vector.extract_strided_slice %119 {offsets = [0, 256], sizes = [8, 32], strides = [1, 1]} : vector<8x384xf32> to vector<8x32xf32>
    %138 = vector.extract_strided_slice %120 {offsets = [0, 256], sizes = [8, 32], strides = [1, 1]} : vector<8x384xf32> to vector<8x32xf32>
    %139 = arith.addf %138, %15 : vector<8x32xf32>
    %140 = arith.mulf %128, %139 : vector<8x32xf32>
    %141 = arith.addf %137, %140 : vector<8x32xf32>
    %142 = math.tanh %141 : vector<8x32xf32>
    %143 = arith.subf %112, %142 : vector<8x32xf32>
    %144 = arith.mulf %136, %143 : vector<8x32xf32>
    %145 = arith.addf %142, %144 : vector<8x32xf32>
    %146 = arith.index_cast %c3_i32 : i32 to index
    %c0_45 = arith.constant 0 : index
    %c0_46 = arith.constant 0 : index
    %147 = vector.load %arg9[%146, %c0_45, %c0_46] : memref<8x8x32xf32, #tpu.memory_space<vmem>>, vector<1x8x32xf32>
    %148 = vector.shape_cast %147 : vector<1x8x32xf32> to vector<8x32xf32>
    %149 = vector.shape_cast %145 : vector<8x32xf32> to vector<1x8x32xf32>
    tpu.vector_store %arg9[%146, %c0_45, %c0_46], %149 {strides = array<i32>} : memref<8x8x32xf32, #tpu.memory_space<vmem>>, vector<1x8x32xf32>,
    %c4_i32 = arith.constant 4 : i32
    %150 = arith.index_cast %c4_i32 : i32 to index
    %c0_47 = arith.constant 0 : index
    %c0_48 = arith.constant 0 : index
    %151 = vector.load %arg10[%150, %c0_47, %c0_48] : memref<8x8x384xf32, #tpu.memory_space<vmem>>, vector<1x8x384xf32>
    %152 = vector.shape_cast %151 : vector<1x8x384xf32> to vector<8x384xf32>
    %cst_49 = arith.constant dense<0.000000e+00> : vector<8x384xf32>
    %153 = tpu.matmul %145, %11, %cst_49 {dimension_numbers = #tpu.dot_dimension_numbers<[1], [0], [0], [1], [0, 0, 1, 1], [], []>} : vector<8x32xf32>, vector<32x384xf32>, vector<8x384xf32> -> vector<8x384xf32>
    %154 = vector.extract_strided_slice %152 {offsets = [0, 0], sizes = [8, 32], strides = [1, 1]} : vector<8x384xf32> to vector<8x32xf32>
    %155 = vector.extract_strided_slice %153 {offsets = [0, 0], sizes = [8, 32], strides = [1, 1]} : vector<8x384xf32> to vector<8x32xf32>
    %156 = arith.addf %154, %155 : vector<8x32xf32>
    %157 = arith.negf %156 : vector<8x32xf32>
    %158 = math.exp %157 : vector<8x32xf32>
    %cst_50 = arith.constant 1.000000e+00 : f32
    %159 = vector.broadcast %cst_50 : f32 to vector<8x32xf32>
    %160 = arith.addf %159, %158 : vector<8x32xf32>
    %161 = arith.divf %159, %160 : vector<8x32xf32>
    %162 = vector.extract_strided_slice %152 {offsets = [0, 128], sizes = [8, 32], strides = [1, 1]} : vector<8x384xf32> to vector<8x32xf32>
    %163 = vector.extract_strided_slice %153 {offsets = [0, 128], sizes = [8, 32], strides = [1, 1]} : vector<8x384xf32> to vector<8x32xf32>
    %164 = arith.addf %162, %163 : vector<8x32xf32>
    %165 = arith.negf %164 : vector<8x32xf32>
    %166 = math.exp %165 : vector<8x32xf32>
    %cst_51 = arith.constant 1.000000e+00 : f32
    %167 = vector.broadcast %cst_51 : f32 to vector<8x32xf32>
    %168 = arith.addf %167, %166 : vector<8x32xf32>
    %169 = arith.divf %167, %168 : vector<8x32xf32>
    %170 = vector.extract_strided_slice %152 {offsets = [0, 256], sizes = [8, 32], strides = [1, 1]} : vector<8x384xf32> to vector<8x32xf32>
    %171 = vector.extract_strided_slice %153 {offsets = [0, 256], sizes = [8, 32], strides = [1, 1]} : vector<8x384xf32> to vector<8x32xf32>
    %172 = arith.addf %171, %15 : vector<8x32xf32>
    %173 = arith.mulf %161, %172 : vector<8x32xf32>
    %174 = arith.addf %170, %173 : vector<8x32xf32>
    %175 = math.tanh %174 : vector<8x32xf32>
    %176 = arith.subf %145, %175 : vector<8x32xf32>
    %177 = arith.mulf %169, %176 : vector<8x32xf32>
    %178 = arith.addf %175, %177 : vector<8x32xf32>
    %179 = arith.index_cast %c4_i32 : i32 to index
    %c0_52 = arith.constant 0 : index
    %c0_53 = arith.constant 0 : index
    %180 = vector.load %arg9[%179, %c0_52, %c0_53] : memref<8x8x32xf32, #tpu.memory_space<vmem>>, vector<1x8x32xf32>
    %181 = vector.shape_cast %180 : vector<1x8x32xf32> to vector<8x32xf32>
    %182 = vector.shape_cast %178 : vector<8x32xf32> to vector<1x8x32xf32>
    tpu.vector_store %arg9[%179, %c0_52, %c0_53], %182 {strides = array<i32>} : memref<8x8x32xf32, #tpu.memory_space<vmem>>, vector<1x8x32xf32>,
    %c5_i32 = arith.constant 5 : i32
    %183 = arith.index_cast %c5_i32 : i32 to index
    %c0_54 = arith.constant 0 : index
    %c0_55 = arith.constant 0 : index
    %184 = vector.load %arg10[%183, %c0_54, %c0_55] : memref<8x8x384xf32, #tpu.memory_space<vmem>>, vector<1x8x384xf32>
    %185 = vector.shape_cast %184 : vector<1x8x384xf32> to vector<8x384xf32>
    %cst_56 = arith.constant dense<0.000000e+00> : vector<8x384xf32>
    %186 = tpu.matmul %178, %11, %cst_56 {dimension_numbers = #tpu.dot_dimension_numbers<[1], [0], [0], [1], [0, 0, 1, 1], [], []>} : vector<8x32xf32>, vector<32x384xf32>, vector<8x384xf32> -> vector<8x384xf32>
    %187 = vector.extract_strided_slice %185 {offsets = [0, 0], sizes = [8, 32], strides = [1, 1]} : vector<8x384xf32> to vector<8x32xf32>
    %188 = vector.extract_strided_slice %186 {offsets = [0, 0], sizes = [8, 32], strides = [1, 1]} : vector<8x384xf32> to vector<8x32xf32>
    %189 = arith.addf %187, %188 : vector<8x32xf32>
    %190 = arith.negf %189 : vector<8x32xf32>
    %191 = math.exp %190 : vector<8x32xf32>
    %cst_57 = arith.constant 1.000000e+00 : f32
    %192 = vector.broadcast %cst_57 : f32 to vector<8x32xf32>
    %193 = arith.addf %192, %191 : vector<8x32xf32>
    %194 = arith.divf %192, %193 : vector<8x32xf32>
    %195 = vector.extract_strided_slice %185 {offsets = [0, 128], sizes = [8, 32], strides = [1, 1]} : vector<8x384xf32> to vector<8x32xf32>
    %196 = vector.extract_strided_slice %186 {offsets = [0, 128], sizes = [8, 32], strides = [1, 1]} : vector<8x384xf32> to vector<8x32xf32>
    %197 = arith.addf %195, %196 : vector<8x32xf32>
    %198 = arith.negf %197 : vector<8x32xf32>
    %199 = math.exp %198 : vector<8x32xf32>
    %cst_58 = arith.constant 1.000000e+00 : f32
    %200 = vector.broadcast %cst_58 : f32 to vector<8x32xf32>
    %201 = arith.addf %200, %199 : vector<8x32xf32>
    %202 = arith.divf %200, %201 : vector<8x32xf32>
    %203 = vector.extract_strided_slice %185 {offsets = [0, 256], sizes = [8, 32], strides = [1, 1]} : vector<8x384xf32> to vector<8x32xf32>
    %204 = vector.extract_strided_slice %186 {offsets = [0, 256], sizes = [8, 32], strides = [1, 1]} : vector<8x384xf32> to vector<8x32xf32>
    %205 = arith.addf %204, %15 : vector<8x32xf32>
    %206 = arith.mulf %194, %205 : vector<8x32xf32>
    %207 = arith.addf %203, %206 : vector<8x32xf32>
    %208 = math.tanh %207 : vector<8x32xf32>
    %209 = arith.subf %178, %208 : vector<8x32xf32>
    %210 = arith.mulf %202, %209 : vector<8x32xf32>
    %211 = arith.addf %208, %210 : vector<8x32xf32>
    %212 = arith.index_cast %c5_i32 : i32 to index
    %c0_59 = arith.constant 0 : index
    %c0_60 = arith.constant 0 : index
    %213 = vector.load %arg9[%212, %c0_59, %c0_60] : memref<8x8x32xf32, #tpu.memory_space<vmem>>, vector<1x8x32xf32>
    %214 = vector.shape_cast %213 : vector<1x8x32xf32> to vector<8x32xf32>
    %215 = vector.shape_cast %211 : vector<8x32xf32> to vector<1x8x32xf32>
    tpu.vector_store %arg9[%212, %c0_59, %c0_60], %215 {strides = array<i32>} : memref<8x8x32xf32, #tpu.memory_space<vmem>>, vector<1x8x32xf32>,
    %c6_i32 = arith.constant 6 : i32
    %216 = arith.index_cast %c6_i32 : i32 to index
    %c0_61 = arith.constant 0 : index
    %c0_62 = arith.constant 0 : index
    %217 = vector.load %arg10[%216, %c0_61, %c0_62] : memref<8x8x384xf32, #tpu.memory_space<vmem>>, vector<1x8x384xf32>
    %218 = vector.shape_cast %217 : vector<1x8x384xf32> to vector<8x384xf32>
    %cst_63 = arith.constant dense<0.000000e+00> : vector<8x384xf32>
    %219 = tpu.matmul %211, %11, %cst_63 {dimension_numbers = #tpu.dot_dimension_numbers<[1], [0], [0], [1], [0, 0, 1, 1], [], []>} : vector<8x32xf32>, vector<32x384xf32>, vector<8x384xf32> -> vector<8x384xf32>
    %220 = vector.extract_strided_slice %218 {offsets = [0, 0], sizes = [8, 32], strides = [1, 1]} : vector<8x384xf32> to vector<8x32xf32>
    %221 = vector.extract_strided_slice %219 {offsets = [0, 0], sizes = [8, 32], strides = [1, 1]} : vector<8x384xf32> to vector<8x32xf32>
    %222 = arith.addf %220, %221 : vector<8x32xf32>
    %223 = arith.negf %222 : vector<8x32xf32>
    %224 = math.exp %223 : vector<8x32xf32>
    %cst_64 = arith.constant 1.000000e+00 : f32
    %225 = vector.broadcast %cst_64 : f32 to vector<8x32xf32>
    %226 = arith.addf %225, %224 : vector<8x32xf32>
    %227 = arith.divf %225, %226 : vector<8x32xf32>
    %228 = vector.extract_strided_slice %218 {offsets = [0, 128], sizes = [8, 32], strides = [1, 1]} : vector<8x384xf32> to vector<8x32xf32>
    %229 = vector.extract_strided_slice %219 {offsets = [0, 128], sizes = [8, 32], strides = [1, 1]} : vector<8x384xf32> to vector<8x32xf32>
    %230 = arith.addf %228, %229 : vector<8x32xf32>
    %231 = arith.negf %230 : vector<8x32xf32>
    %232 = math.exp %231 : vector<8x32xf32>
    %cst_65 = arith.constant 1.000000e+00 : f32
    %233 = vector.broadcast %cst_65 : f32 to vector<8x32xf32>
    %234 = arith.addf %233, %232 : vector<8x32xf32>
    %235 = arith.divf %233, %234 : vector<8x32xf32>
    %236 = vector.extract_strided_slice %218 {offsets = [0, 256], sizes = [8, 32], strides = [1, 1]} : vector<8x384xf32> to vector<8x32xf32>
    %237 = vector.extract_strided_slice %219 {offsets = [0, 256], sizes = [8, 32], strides = [1, 1]} : vector<8x384xf32> to vector<8x32xf32>
    %238 = arith.addf %237, %15 : vector<8x32xf32>
    %239 = arith.mulf %227, %238 : vector<8x32xf32>
    %240 = arith.addf %236, %239 : vector<8x32xf32>
    %241 = math.tanh %240 : vector<8x32xf32>
    %242 = arith.subf %211, %241 : vector<8x32xf32>
    %243 = arith.mulf %235, %242 : vector<8x32xf32>
    %244 = arith.addf %241, %243 : vector<8x32xf32>
    %245 = arith.index_cast %c6_i32 : i32 to index
    %c0_66 = arith.constant 0 : index
    %c0_67 = arith.constant 0 : index
    %246 = vector.load %arg9[%245, %c0_66, %c0_67] : memref<8x8x32xf32, #tpu.memory_space<vmem>>, vector<1x8x32xf32>
    %247 = vector.shape_cast %246 : vector<1x8x32xf32> to vector<8x32xf32>
    %248 = vector.shape_cast %244 : vector<8x32xf32> to vector<1x8x32xf32>
    tpu.vector_store %arg9[%245, %c0_66, %c0_67], %248 {strides = array<i32>} : memref<8x8x32xf32, #tpu.memory_space<vmem>>, vector<1x8x32xf32>,
    %c7_i32 = arith.constant 7 : i32
    %249 = arith.index_cast %c7_i32 : i32 to index
    %c0_68 = arith.constant 0 : index
    %c0_69 = arith.constant 0 : index
    %250 = vector.load %arg10[%249, %c0_68, %c0_69] : memref<8x8x384xf32, #tpu.memory_space<vmem>>, vector<1x8x384xf32>
    %251 = vector.shape_cast %250 : vector<1x8x384xf32> to vector<8x384xf32>
    %cst_70 = arith.constant dense<0.000000e+00> : vector<8x384xf32>
    %252 = tpu.matmul %244, %11, %cst_70 {dimension_numbers = #tpu.dot_dimension_numbers<[1], [0], [0], [1], [0, 0, 1, 1], [], []>} : vector<8x32xf32>, vector<32x384xf32>, vector<8x384xf32> -> vector<8x384xf32>
    %253 = vector.extract_strided_slice %251 {offsets = [0, 0], sizes = [8, 32], strides = [1, 1]} : vector<8x384xf32> to vector<8x32xf32>
    %254 = vector.extract_strided_slice %252 {offsets = [0, 0], sizes = [8, 32], strides = [1, 1]} : vector<8x384xf32> to vector<8x32xf32>
    %255 = arith.addf %253, %254 : vector<8x32xf32>
    %256 = arith.negf %255 : vector<8x32xf32>
    %257 = math.exp %256 : vector<8x32xf32>
    %cst_71 = arith.constant 1.000000e+00 : f32
    %258 = vector.broadcast %cst_71 : f32 to vector<8x32xf32>
    %259 = arith.addf %258, %257 : vector<8x32xf32>
    %260 = arith.divf %258, %259 : vector<8x32xf32>
    %261 = vector.extract_strided_slice %251 {offsets = [0, 128], sizes = [8, 32], strides = [1, 1]} : vector<8x384xf32> to vector<8x32xf32>
    %262 = vector.extract_strided_slice %252 {offsets = [0, 128], sizes = [8, 32], strides = [1, 1]} : vector<8x384xf32> to vector<8x32xf32>
    %263 = arith.addf %261, %262 : vector<8x32xf32>
    %264 = arith.negf %263 : vector<8x32xf32>
    %265 = math.exp %264 : vector<8x32xf32>
    %cst_72 = arith.constant 1.000000e+00 : f32
    %266 = vector.broadcast %cst_72 : f32 to vector<8x32xf32>
    %267 = arith.addf %266, %265 : vector<8x32xf32>
    %268 = arith.divf %266, %267 : vector<8x32xf32>
    %269 = vector.extract_strided_slice %251 {offsets = [0, 256], sizes = [8, 32], strides = [1, 1]} : vector<8x384xf32> to vector<8x32xf32>
    %270 = vector.extract_strided_slice %252 {offsets = [0, 256], sizes = [8, 32], strides = [1, 1]} : vector<8x384xf32> to vector<8x32xf32>
    %271 = arith.addf %270, %15 : vector<8x32xf32>
    %272 = arith.mulf %260, %271 : vector<8x32xf32>
    %273 = arith.addf %269, %272 : vector<8x32xf32>
    %274 = math.tanh %273 : vector<8x32xf32>
    %275 = arith.subf %244, %274 : vector<8x32xf32>
    %276 = arith.mulf %268, %275 : vector<8x32xf32>
    %277 = arith.addf %274, %276 : vector<8x32xf32>
    %278 = arith.index_cast %c7_i32 : i32 to index
    %c0_73 = arith.constant 0 : index
    %c0_74 = arith.constant 0 : index
    %279 = vector.load %arg9[%278, %c0_73, %c0_74] : memref<8x8x32xf32, #tpu.memory_space<vmem>>, vector<1x8x32xf32>
    %280 = vector.shape_cast %279 : vector<1x8x32xf32> to vector<8x32xf32>
    %281 = vector.shape_cast %277 : vector<8x32xf32> to vector<1x8x32xf32>
    tpu.vector_store %arg9[%278, %c0_73, %c0_74], %281 {strides = array<i32>} : memref<8x8x32xf32, #tpu.memory_space<vmem>>, vector<1x8x32xf32>,
    %c8_i32 = arith.constant 8 : i32
    %c0_75 = arith.constant 0 : index
    %c0_76 = arith.constant 0 : index
    %c0_77 = arith.constant 0 : index
    %282 = vector.load %arg8[%c0_75, %c0_76, %c0_77] : memref<2x8x32xf32, #tpu.memory_space<vmem>>, vector<1x8x32xf32>
    %283 = vector.shape_cast %282 : vector<1x8x32xf32> to vector<8x32xf32>
    %284 = vector.shape_cast %277 : vector<8x32xf32> to vector<1x8x32xf32>
    tpu.vector_store %arg8[%c0_75, %c0_76, %c0_77], %284 {strides = array<i32>} : memref<2x8x32xf32, #tpu.memory_space<vmem>>, vector<1x8x32xf32>,
    %c0_78 = arith.constant 0 : index
    %c0_79 = arith.constant 0 : index
    %c0_80 = arith.constant 0 : index
    %285 = vector.load %arg9[%c0_78, %c0_79, %c0_80] : memref<8x8x32xf32, #tpu.memory_space<vmem>>, vector<8x8x32xf32>
    %286 = vector.shape_cast %285 : vector<8x8x32xf32> to vector<64x32xf32>
    %c0_81 = arith.constant 0 : index
    %c0_82 = arith.constant 0 : index
    %c0_83 = arith.constant 0 : index
    %287 = vector.load %arg4[%c0_81, %c0_82, %c0_83] : memref<1x32x384xf32, #tpu.memory_space<vmem>>, vector<1x32x384xf32>
    %288 = vector.shape_cast %287 : vector<1x32x384xf32> to vector<32x384xf32>
    %cst_84 = arith.constant dense<0.000000e+00> : vector<64x384xf32>
    %289 = tpu.matmul %286, %288, %cst_84 {dimension_numbers = #tpu.dot_dimension_numbers<[1], [0], [0], [1], [0, 0, 1, 1], [], []>} : vector<64x32xf32>, vector<32x384xf32>, vector<64x384xf32> -> vector<64x384xf32>
    %c1 = arith.constant 1 : index
    %c0_85 = arith.constant 0 : index
    %c0_86 = arith.constant 0 : index
    %290 = vector.load %arg6[%c1, %c0_85, %c0_86] : memref<2x1x384xf32, #tpu.memory_space<vmem>>, vector<1x1x384xf32>
    %291 = vector.shape_cast %290 : vector<1x1x384xf32> to vector<1x384xf32>
    %292 = vector.broadcast %291 : vector<1x384xf32> to vector<64x384xf32>
    %293 = arith.addf %289, %292 : vector<64x384xf32>
    %294 = vector.shape_cast %293 : vector<64x384xf32> to vector<8x8x384xf32>
    %c0_87 = arith.constant 0 : index
    %c0_88 = arith.constant 0 : index
    %c0_89 = arith.constant 0 : index
    %295 = vector.load %arg10[%c0_87, %c0_88, %c0_89] : memref<8x8x384xf32, #tpu.memory_space<vmem>>, vector<8x8x384xf32>
    tpu.vector_store %arg10[%c0_87, %c0_88, %c0_89], %294 {strides = array<i32>} : memref<8x8x384xf32, #tpu.memory_space<vmem>>, vector<8x8x384xf32>,
    %c1_90 = arith.constant 1 : index
    %c0_91 = arith.constant 0 : index
    %c0_92 = arith.constant 0 : index
    %296 = vector.load %arg5[%c1_90, %c0_91, %c0_92] : memref<2x32x384xf32, #tpu.memory_space<vmem>>, vector<1x32x384xf32>
    %297 = vector.shape_cast %296 : vector<1x32x384xf32> to vector<32x384xf32>
    %c1_93 = arith.constant 1 : index
    %c0_94 = arith.constant 0 : index
    %c0_95 = arith.constant 0 : index
    %298 = vector.load %arg7[%c1_93, %c0_94, %c0_95] : memref<2x1x32xf32, #tpu.memory_space<vmem>>, vector<1x1x32xf32>
    %299 = vector.shape_cast %298 : vector<1x1x32xf32> to vector<1x32xf32>
    %300 = vector.shape_cast %299 : vector<1x32xf32> to vector<1x32xf32>
    %301 = vector.broadcast %300 : vector<1x32xf32> to vector<8x32xf32>
    %c1_96 = arith.constant 1 : index
    %c0_97 = arith.constant 0 : index
    %c0_98 = arith.constant 0 : index
    %302 = vector.load %arg2[%c1_96, %c0_97, %c0_98] : memref<2x8x32xf32, #tpu.memory_space<vmem>>, vector<1x8x32xf32>
    %303 = vector.shape_cast %302 : vector<1x8x32xf32> to vector<8x32xf32>
    %c0_i32_99 = arith.constant 0 : i32
    %304 = arith.index_cast %c0_i32_99 : i32 to index
    %c0_100 = arith.constant 0 : index
    %c0_101 = arith.constant 0 : index
    %305 = vector.load %arg10[%304, %c0_100, %c0_101] : memref<8x8x384xf32, #tpu.memory_space<vmem>>, vector<1x8x384xf32>
    %306 = vector.shape_cast %305 : vector<1x8x384xf32> to vector<8x384xf32>
    %cst_102 = arith.constant dense<0.000000e+00> : vector<8x384xf32>
    %307 = tpu.matmul %303, %297, %cst_102 {dimension_numbers = #tpu.dot_dimension_numbers<[1], [0], [0], [1], [0, 0, 1, 1], [], []>} : vector<8x32xf32>, vector<32x384xf32>, vector<8x384xf32> -> vector<8x384xf32>
    %308 = vector.extract_strided_slice %306 {offsets = [0, 0], sizes = [8, 32], strides = [1, 1]} : vector<8x384xf32> to vector<8x32xf32>
    %309 = vector.extract_strided_slice %307 {offsets = [0, 0], sizes = [8, 32], strides = [1, 1]} : vector<8x384xf32> to vector<8x32xf32>
    %310 = arith.addf %308, %309 : vector<8x32xf32>
    %311 = arith.negf %310 : vector<8x32xf32>
    %312 = math.exp %311 : vector<8x32xf32>
    %cst_103 = arith.constant 1.000000e+00 : f32
    %313 = vector.broadcast %cst_103 : f32 to vector<8x32xf32>
    %314 = arith.addf %313, %312 : vector<8x32xf32>
    %315 = arith.divf %313, %314 : vector<8x32xf32>
    %316 = vector.extract_strided_slice %306 {offsets = [0, 128], sizes = [8, 32], strides = [1, 1]} : vector<8x384xf32> to vector<8x32xf32>
    %317 = vector.extract_strided_slice %307 {offsets = [0, 128], sizes = [8, 32], strides = [1, 1]} : vector<8x384xf32> to vector<8x32xf32>
    %318 = arith.addf %316, %317 : vector<8x32xf32>
    %319 = arith.negf %318 : vector<8x32xf32>
    %320 = math.exp %319 : vector<8x32xf32>
    %cst_104 = arith.constant 1.000000e+00 : f32
    %321 = vector.broadcast %cst_104 : f32 to vector<8x32xf32>
    %322 = arith.addf %321, %320 : vector<8x32xf32>
    %323 = arith.divf %321, %322 : vector<8x32xf32>
    %324 = vector.extract_strided_slice %306 {offsets = [0, 256], sizes = [8, 32], strides = [1, 1]} : vector<8x384xf32> to vector<8x32xf32>
    %325 = vector.extract_strided_slice %307 {offsets = [0, 256], sizes = [8, 32], strides = [1, 1]} : vector<8x384xf32> to vector<8x32xf32>
    %326 = arith.addf %325, %301 : vector<8x32xf32>
    %327 = arith.mulf %315, %326 : vector<8x32xf32>
    %328 = arith.addf %324, %327 : vector<8x32xf32>
    %329 = math.tanh %328 : vector<8x32xf32>
    %330 = arith.subf %303, %329 : vector<8x32xf32>
    %331 = arith.mulf %323, %330 : vector<8x32xf32>
    %332 = arith.addf %329, %331 : vector<8x32xf32>
    %c1_i32_105 = arith.constant 1 : i32
    %333 = arith.index_cast %c1_i32_105 : i32 to index
    %c0_106 = arith.constant 0 : index
    %c0_107 = arith.constant 0 : index
    %334 = vector.load %arg10[%333, %c0_106, %c0_107] : memref<8x8x384xf32, #tpu.memory_space<vmem>>, vector<1x8x384xf32>
    %335 = vector.shape_cast %334 : vector<1x8x384xf32> to vector<8x384xf32>
    %cst_108 = arith.constant dense<0.000000e+00> : vector<8x384xf32>
    %336 = tpu.matmul %332, %297, %cst_108 {dimension_numbers = #tpu.dot_dimension_numbers<[1], [0], [0], [1], [0, 0, 1, 1], [], []>} : vector<8x32xf32>, vector<32x384xf32>, vector<8x384xf32> -> vector<8x384xf32>
    %337 = vector.extract_strided_slice %335 {offsets = [0, 0], sizes = [8, 32], strides = [1, 1]} : vector<8x384xf32> to vector<8x32xf32>
    %338 = vector.extract_strided_slice %336 {offsets = [0, 0], sizes = [8, 32], strides = [1, 1]} : vector<8x384xf32> to vector<8x32xf32>
    %339 = arith.addf %337, %338 : vector<8x32xf32>
    %340 = arith.negf %339 : vector<8x32xf32>
    %341 = math.exp %340 : vector<8x32xf32>
    %cst_109 = arith.constant 1.000000e+00 : f32
    %342 = vector.broadcast %cst_109 : f32 to vector<8x32xf32>
    %343 = arith.addf %342, %341 : vector<8x32xf32>
    %344 = arith.divf %342, %343 : vector<8x32xf32>
    %345 = vector.extract_strided_slice %335 {offsets = [0, 128], sizes = [8, 32], strides = [1, 1]} : vector<8x384xf32> to vector<8x32xf32>
    %346 = vector.extract_strided_slice %336 {offsets = [0, 128], sizes = [8, 32], strides = [1, 1]} : vector<8x384xf32> to vector<8x32xf32>
    %347 = arith.addf %345, %346 : vector<8x32xf32>
    %348 = arith.negf %347 : vector<8x32xf32>
    %349 = math.exp %348 : vector<8x32xf32>
    %cst_110 = arith.constant 1.000000e+00 : f32
    %350 = vector.broadcast %cst_110 : f32 to vector<8x32xf32>
    %351 = arith.addf %350, %349 : vector<8x32xf32>
    %352 = arith.divf %350, %351 : vector<8x32xf32>
    %353 = vector.extract_strided_slice %335 {offsets = [0, 256], sizes = [8, 32], strides = [1, 1]} : vector<8x384xf32> to vector<8x32xf32>
    %354 = vector.extract_strided_slice %336 {offsets = [0, 256], sizes = [8, 32], strides = [1, 1]} : vector<8x384xf32> to vector<8x32xf32>
    %355 = arith.addf %354, %301 : vector<8x32xf32>
    %356 = arith.mulf %344, %355 : vector<8x32xf32>
    %357 = arith.addf %353, %356 : vector<8x32xf32>
    %358 = math.tanh %357 : vector<8x32xf32>
    %359 = arith.subf %332, %358 : vector<8x32xf32>
    %360 = arith.mulf %352, %359 : vector<8x32xf32>
    %361 = arith.addf %358, %360 : vector<8x32xf32>
    %c2_i32_111 = arith.constant 2 : i32
    %362 = arith.index_cast %c2_i32_111 : i32 to index
    %c0_112 = arith.constant 0 : index
    %c0_113 = arith.constant 0 : index
    %363 = vector.load %arg10[%362, %c0_112, %c0_113] : memref<8x8x384xf32, #tpu.memory_space<vmem>>, vector<1x8x384xf32>
    %364 = vector.shape_cast %363 : vector<1x8x384xf32> to vector<8x384xf32>
    %cst_114 = arith.constant dense<0.000000e+00> : vector<8x384xf32>
    %365 = tpu.matmul %361, %297, %cst_114 {dimension_numbers = #tpu.dot_dimension_numbers<[1], [0], [0], [1], [0, 0, 1, 1], [], []>} : vector<8x32xf32>, vector<32x384xf32>, vector<8x384xf32> -> vector<8x384xf32>
    %366 = vector.extract_strided_slice %364 {offsets = [0, 0], sizes = [8, 32], strides = [1, 1]} : vector<8x384xf32> to vector<8x32xf32>
    %367 = vector.extract_strided_slice %365 {offsets = [0, 0], sizes = [8, 32], strides = [1, 1]} : vector<8x384xf32> to vector<8x32xf32>
    %368 = arith.addf %366, %367 : vector<8x32xf32>
    %369 = arith.negf %368 : vector<8x32xf32>
    %370 = math.exp %369 : vector<8x32xf32>
    %cst_115 = arith.constant 1.000000e+00 : f32
    %371 = vector.broadcast %cst_115 : f32 to vector<8x32xf32>
    %372 = arith.addf %371, %370 : vector<8x32xf32>
    %373 = arith.divf %371, %372 : vector<8x32xf32>
    %374 = vector.extract_strided_slice %364 {offsets = [0, 128], sizes = [8, 32], strides = [1, 1]} : vector<8x384xf32> to vector<8x32xf32>
    %375 = vector.extract_strided_slice %365 {offsets = [0, 128], sizes = [8, 32], strides = [1, 1]} : vector<8x384xf32> to vector<8x32xf32>
    %376 = arith.addf %374, %375 : vector<8x32xf32>
    %377 = arith.negf %376 : vector<8x32xf32>
    %378 = math.exp %377 : vector<8x32xf32>
    %cst_116 = arith.constant 1.000000e+00 : f32
    %379 = vector.broadcast %cst_116 : f32 to vector<8x32xf32>
    %380 = arith.addf %379, %378 : vector<8x32xf32>
    %381 = arith.divf %379, %380 : vector<8x32xf32>
    %382 = vector.extract_strided_slice %364 {offsets = [0, 256], sizes = [8, 32], strides = [1, 1]} : vector<8x384xf32> to vector<8x32xf32>
    %383 = vector.extract_strided_slice %365 {offsets = [0, 256], sizes = [8, 32], strides = [1, 1]} : vector<8x384xf32> to vector<8x32xf32>
    %384 = arith.addf %383, %301 : vector<8x32xf32>
    %385 = arith.mulf %373, %384 : vector<8x32xf32>
    %386 = arith.addf %382, %385 : vector<8x32xf32>
    %387 = math.tanh %386 : vector<8x32xf32>
    %388 = arith.subf %361, %387 : vector<8x32xf32>
    %389 = arith.mulf %381, %388 : vector<8x32xf32>
    %390 = arith.addf %387, %389 : vector<8x32xf32>
    %c3_i32_117 = arith.constant 3 : i32
    %391 = arith.index_cast %c3_i32_117 : i32 to index
    %c0_118 = arith.constant 0 : index
    %c0_119 = arith.constant 0 : index
    %392 = vector.load %arg10[%391, %c0_118, %c0_119] : memref<8x8x384xf32, #tpu.memory_space<vmem>>, vector<1x8x384xf32>
    %393 = vector.shape_cast %392 : vector<1x8x384xf32> to vector<8x384xf32>
    %cst_120 = arith.constant dense<0.000000e+00> : vector<8x384xf32>
    %394 = tpu.matmul %390, %297, %cst_120 {dimension_numbers = #tpu.dot_dimension_numbers<[1], [0], [0], [1], [0, 0, 1, 1], [], []>} : vector<8x32xf32>, vector<32x384xf32>, vector<8x384xf32> -> vector<8x384xf32>
    %395 = vector.extract_strided_slice %393 {offsets = [0, 0], sizes = [8, 32], strides = [1, 1]} : vector<8x384xf32> to vector<8x32xf32>
    %396 = vector.extract_strided_slice %394 {offsets = [0, 0], sizes = [8, 32], strides = [1, 1]} : vector<8x384xf32> to vector<8x32xf32>
    %397 = arith.addf %395, %396 : vector<8x32xf32>
    %398 = arith.negf %397 : vector<8x32xf32>
    %399 = math.exp %398 : vector<8x32xf32>
    %cst_121 = arith.constant 1.000000e+00 : f32
    %400 = vector.broadcast %cst_121 : f32 to vector<8x32xf32>
    %401 = arith.addf %400, %399 : vector<8x32xf32>
    %402 = arith.divf %400, %401 : vector<8x32xf32>
    %403 = vector.extract_strided_slice %393 {offsets = [0, 128], sizes = [8, 32], strides = [1, 1]} : vector<8x384xf32> to vector<8x32xf32>
    %404 = vector.extract_strided_slice %394 {offsets = [0, 128], sizes = [8, 32], strides = [1, 1]} : vector<8x384xf32> to vector<8x32xf32>
    %405 = arith.addf %403, %404 : vector<8x32xf32>
    %406 = arith.negf %405 : vector<8x32xf32>
    %407 = math.exp %406 : vector<8x32xf32>
    %cst_122 = arith.constant 1.000000e+00 : f32
    %408 = vector.broadcast %cst_122 : f32 to vector<8x32xf32>
    %409 = arith.addf %408, %407 : vector<8x32xf32>
    %410 = arith.divf %408, %409 : vector<8x32xf32>
    %411 = vector.extract_strided_slice %393 {offsets = [0, 256], sizes = [8, 32], strides = [1, 1]} : vector<8x384xf32> to vector<8x32xf32>
    %412 = vector.extract_strided_slice %394 {offsets = [0, 256], sizes = [8, 32], strides = [1, 1]} : vector<8x384xf32> to vector<8x32xf32>
    %413 = arith.addf %412, %301 : vector<8x32xf32>
    %414 = arith.mulf %402, %413 : vector<8x32xf32>
    %415 = arith.addf %411, %414 : vector<8x32xf32>
    %416 = math.tanh %415 : vector<8x32xf32>
    %417 = arith.subf %390, %416 : vector<8x32xf32>
    %418 = arith.mulf %410, %417 : vector<8x32xf32>
    %419 = arith.addf %416, %418 : vector<8x32xf32>
    %c4_i32_123 = arith.constant 4 : i32
    %420 = arith.index_cast %c4_i32_123 : i32 to index
    %c0_124 = arith.constant 0 : index
    %c0_125 = arith.constant 0 : index
    %421 = vector.load %arg10[%420, %c0_124, %c0_125] : memref<8x8x384xf32, #tpu.memory_space<vmem>>, vector<1x8x384xf32>
    %422 = vector.shape_cast %421 : vector<1x8x384xf32> to vector<8x384xf32>
    %cst_126 = arith.constant dense<0.000000e+00> : vector<8x384xf32>
    %423 = tpu.matmul %419, %297, %cst_126 {dimension_numbers = #tpu.dot_dimension_numbers<[1], [0], [0], [1], [0, 0, 1, 1], [], []>} : vector<8x32xf32>, vector<32x384xf32>, vector<8x384xf32> -> vector<8x384xf32>
    %424 = vector.extract_strided_slice %422 {offsets = [0, 0], sizes = [8, 32], strides = [1, 1]} : vector<8x384xf32> to vector<8x32xf32>
    %425 = vector.extract_strided_slice %423 {offsets = [0, 0], sizes = [8, 32], strides = [1, 1]} : vector<8x384xf32> to vector<8x32xf32>
    %426 = arith.addf %424, %425 : vector<8x32xf32>
    %427 = arith.negf %426 : vector<8x32xf32>
    %428 = math.exp %427 : vector<8x32xf32>
    %cst_127 = arith.constant 1.000000e+00 : f32
    %429 = vector.broadcast %cst_127 : f32 to vector<8x32xf32>
    %430 = arith.addf %429, %428 : vector<8x32xf32>
    %431 = arith.divf %429, %430 : vector<8x32xf32>
    %432 = vector.extract_strided_slice %422 {offsets = [0, 128], sizes = [8, 32], strides = [1, 1]} : vector<8x384xf32> to vector<8x32xf32>
    %433 = vector.extract_strided_slice %423 {offsets = [0, 128], sizes = [8, 32], strides = [1, 1]} : vector<8x384xf32> to vector<8x32xf32>
    %434 = arith.addf %432, %433 : vector<8x32xf32>
    %435 = arith.negf %434 : vector<8x32xf32>
    %436 = math.exp %435 : vector<8x32xf32>
    %cst_128 = arith.constant 1.000000e+00 : f32
    %437 = vector.broadcast %cst_128 : f32 to vector<8x32xf32>
    %438 = arith.addf %437, %436 : vector<8x32xf32>
    %439 = arith.divf %437, %438 : vector<8x32xf32>
    %440 = vector.extract_strided_slice %422 {offsets = [0, 256], sizes = [8, 32], strides = [1, 1]} : vector<8x384xf32> to vector<8x32xf32>
    %441 = vector.extract_strided_slice %423 {offsets = [0, 256], sizes = [8, 32], strides = [1, 1]} : vector<8x384xf32> to vector<8x32xf32>
    %442 = arith.addf %441, %301 : vector<8x32xf32>
    %443 = arith.mulf %431, %442 : vector<8x32xf32>
    %444 = arith.addf %440, %443 : vector<8x32xf32>
    %445 = math.tanh %444 : vector<8x32xf32>
    %446 = arith.subf %419, %445 : vector<8x32xf32>
    %447 = arith.mulf %439, %446 : vector<8x32xf32>
    %448 = arith.addf %445, %447 : vector<8x32xf32>
    %c5_i32_129 = arith.constant 5 : i32
    %449 = arith.index_cast %c5_i32_129 : i32 to index
    %c0_130 = arith.constant 0 : index
    %c0_131 = arith.constant 0 : index
    %450 = vector.load %arg10[%449, %c0_130, %c0_131] : memref<8x8x384xf32, #tpu.memory_space<vmem>>, vector<1x8x384xf32>
    %451 = vector.shape_cast %450 : vector<1x8x384xf32> to vector<8x384xf32>
    %cst_132 = arith.constant dense<0.000000e+00> : vector<8x384xf32>
    %452 = tpu.matmul %448, %297, %cst_132 {dimension_numbers = #tpu.dot_dimension_numbers<[1], [0], [0], [1], [0, 0, 1, 1], [], []>} : vector<8x32xf32>, vector<32x384xf32>, vector<8x384xf32> -> vector<8x384xf32>
    %453 = vector.extract_strided_slice %451 {offsets = [0, 0], sizes = [8, 32], strides = [1, 1]} : vector<8x384xf32> to vector<8x32xf32>
    %454 = vector.extract_strided_slice %452 {offsets = [0, 0], sizes = [8, 32], strides = [1, 1]} : vector<8x384xf32> to vector<8x32xf32>
    %455 = arith.addf %453, %454 : vector<8x32xf32>
    %456 = arith.negf %455 : vector<8x32xf32>
    %457 = math.exp %456 : vector<8x32xf32>
    %cst_133 = arith.constant 1.000000e+00 : f32
    %458 = vector.broadcast %cst_133 : f32 to vector<8x32xf32>
    %459 = arith.addf %458, %457 : vector<8x32xf32>
    %460 = arith.divf %458, %459 : vector<8x32xf32>
    %461 = vector.extract_strided_slice %451 {offsets = [0, 128], sizes = [8, 32], strides = [1, 1]} : vector<8x384xf32> to vector<8x32xf32>
    %462 = vector.extract_strided_slice %452 {offsets = [0, 128], sizes = [8, 32], strides = [1, 1]} : vector<8x384xf32> to vector<8x32xf32>
    %463 = arith.addf %461, %462 : vector<8x32xf32>
    %464 = arith.negf %463 : vector<8x32xf32>
    %465 = math.exp %464 : vector<8x32xf32>
    %cst_134 = arith.constant 1.000000e+00 : f32
    %466 = vector.broadcast %cst_134 : f32 to vector<8x32xf32>
    %467 = arith.addf %466, %465 : vector<8x32xf32>
    %468 = arith.divf %466, %467 : vector<8x32xf32>
    %469 = vector.extract_strided_slice %451 {offsets = [0, 256], sizes = [8, 32], strides = [1, 1]} : vector<8x384xf32> to vector<8x32xf32>
    %470 = vector.extract_strided_slice %452 {offsets = [0, 256], sizes = [8, 32], strides = [1, 1]} : vector<8x384xf32> to vector<8x32xf32>
    %471 = arith.addf %470, %301 : vector<8x32xf32>
    %472 = arith.mulf %460, %471 : vector<8x32xf32>
    %473 = arith.addf %469, %472 : vector<8x32xf32>
    %474 = math.tanh %473 : vector<8x32xf32>
    %475 = arith.subf %448, %474 : vector<8x32xf32>
    %476 = arith.mulf %468, %475 : vector<8x32xf32>
    %477 = arith.addf %474, %476 : vector<8x32xf32>
    %c6_i32_135 = arith.constant 6 : i32
    %478 = arith.index_cast %c6_i32_135 : i32 to index
    %c0_136 = arith.constant 0 : index
    %c0_137 = arith.constant 0 : index
    %479 = vector.load %arg10[%478, %c0_136, %c0_137] : memref<8x8x384xf32, #tpu.memory_space<vmem>>, vector<1x8x384xf32>
    %480 = vector.shape_cast %479 : vector<1x8x384xf32> to vector<8x384xf32>
    %cst_138 = arith.constant dense<0.000000e+00> : vector<8x384xf32>
    %481 = tpu.matmul %477, %297, %cst_138 {dimension_numbers = #tpu.dot_dimension_numbers<[1], [0], [0], [1], [0, 0, 1, 1], [], []>} : vector<8x32xf32>, vector<32x384xf32>, vector<8x384xf32> -> vector<8x384xf32>
    %482 = vector.extract_strided_slice %480 {offsets = [0, 0], sizes = [8, 32], strides = [1, 1]} : vector<8x384xf32> to vector<8x32xf32>
    %483 = vector.extract_strided_slice %481 {offsets = [0, 0], sizes = [8, 32], strides = [1, 1]} : vector<8x384xf32> to vector<8x32xf32>
    %484 = arith.addf %482, %483 : vector<8x32xf32>
    %485 = arith.negf %484 : vector<8x32xf32>
    %486 = math.exp %485 : vector<8x32xf32>
    %cst_139 = arith.constant 1.000000e+00 : f32
    %487 = vector.broadcast %cst_139 : f32 to vector<8x32xf32>
    %488 = arith.addf %487, %486 : vector<8x32xf32>
    %489 = arith.divf %487, %488 : vector<8x32xf32>
    %490 = vector.extract_strided_slice %480 {offsets = [0, 128], sizes = [8, 32], strides = [1, 1]} : vector<8x384xf32> to vector<8x32xf32>
    %491 = vector.extract_strided_slice %481 {offsets = [0, 128], sizes = [8, 32], strides = [1, 1]} : vector<8x384xf32> to vector<8x32xf32>
    %492 = arith.addf %490, %491 : vector<8x32xf32>
    %493 = arith.negf %492 : vector<8x32xf32>
    %494 = math.exp %493 : vector<8x32xf32>
    %cst_140 = arith.constant 1.000000e+00 : f32
    %495 = vector.broadcast %cst_140 : f32 to vector<8x32xf32>
    %496 = arith.addf %495, %494 : vector<8x32xf32>
    %497 = arith.divf %495, %496 : vector<8x32xf32>
    %498 = vector.extract_strided_slice %480 {offsets = [0, 256], sizes = [8, 32], strides = [1, 1]} : vector<8x384xf32> to vector<8x32xf32>
    %499 = vector.extract_strided_slice %481 {offsets = [0, 256], sizes = [8, 32], strides = [1, 1]} : vector<8x384xf32> to vector<8x32xf32>
    %500 = arith.addf %499, %301 : vector<8x32xf32>
    %501 = arith.mulf %489, %500 : vector<8x32xf32>
    %502 = arith.addf %498, %501 : vector<8x32xf32>
    %503 = math.tanh %502 : vector<8x32xf32>
    %504 = arith.subf %477, %503 : vector<8x32xf32>
    %505 = arith.mulf %497, %504 : vector<8x32xf32>
    %506 = arith.addf %503, %505 : vector<8x32xf32>
    %c7_i32_141 = arith.constant 7 : i32
    %507 = arith.index_cast %c7_i32_141 : i32 to index
    %c0_142 = arith.constant 0 : index
    %c0_143 = arith.constant 0 : index
    %508 = vector.load %arg10[%507, %c0_142, %c0_143] : memref<8x8x384xf32, #tpu.memory_space<vmem>>, vector<1x8x384xf32>
    %509 = vector.shape_cast %508 : vector<1x8x384xf32> to vector<8x384xf32>
    %cst_144 = arith.constant dense<0.000000e+00> : vector<8x384xf32>
    %510 = tpu.matmul %506, %297, %cst_144 {dimension_numbers = #tpu.dot_dimension_numbers<[1], [0], [0], [1], [0, 0, 1, 1], [], []>} : vector<8x32xf32>, vector<32x384xf32>, vector<8x384xf32> -> vector<8x384xf32>
    %511 = vector.extract_strided_slice %509 {offsets = [0, 0], sizes = [8, 32], strides = [1, 1]} : vector<8x384xf32> to vector<8x32xf32>
    %512 = vector.extract_strided_slice %510 {offsets = [0, 0], sizes = [8, 32], strides = [1, 1]} : vector<8x384xf32> to vector<8x32xf32>
    %513 = arith.addf %511, %512 : vector<8x32xf32>
    %514 = arith.negf %513 : vector<8x32xf32>
    %515 = math.exp %514 : vector<8x32xf32>
    %cst_145 = arith.constant 1.000000e+00 : f32
    %516 = vector.broadcast %cst_145 : f32 to vector<8x32xf32>
    %517 = arith.addf %516, %515 : vector<8x32xf32>
    %518 = arith.divf %516, %517 : vector<8x32xf32>
    %519 = vector.extract_strided_slice %509 {offsets = [0, 128], sizes = [8, 32], strides = [1, 1]} : vector<8x384xf32> to vector<8x32xf32>
    %520 = vector.extract_strided_slice %510 {offsets = [0, 128], sizes = [8, 32], strides = [1, 1]} : vector<8x384xf32> to vector<8x32xf32>
    %521 = arith.addf %519, %520 : vector<8x32xf32>
    %522 = arith.negf %521 : vector<8x32xf32>
    %523 = math.exp %522 : vector<8x32xf32>
    %cst_146 = arith.constant 1.000000e+00 : f32
    %524 = vector.broadcast %cst_146 : f32 to vector<8x32xf32>
    %525 = arith.addf %524, %523 : vector<8x32xf32>
    %526 = arith.divf %524, %525 : vector<8x32xf32>
    %527 = vector.extract_strided_slice %509 {offsets = [0, 256], sizes = [8, 32], strides = [1, 1]} : vector<8x384xf32> to vector<8x32xf32>
    %528 = vector.extract_strided_slice %510 {offsets = [0, 256], sizes = [8, 32], strides = [1, 1]} : vector<8x384xf32> to vector<8x32xf32>
    %529 = arith.addf %528, %301 : vector<8x32xf32>
    %530 = arith.mulf %518, %529 : vector<8x32xf32>
    %531 = arith.addf %527, %530 : vector<8x32xf32>
    %532 = math.tanh %531 : vector<8x32xf32>
    %533 = arith.subf %506, %532 : vector<8x32xf32>
    %534 = arith.mulf %526, %533 : vector<8x32xf32>
    %535 = arith.addf %532, %534 : vector<8x32xf32>
    %c8_i32_147 = arith.constant 8 : i32
    %c1_148 = arith.constant 1 : index
    %c0_149 = arith.constant 0 : index
    %c0_150 = arith.constant 0 : index
    %536 = vector.load %arg8[%c1_148, %c0_149, %c0_150] : memref<2x8x32xf32, #tpu.memory_space<vmem>>, vector<1x8x32xf32>
    %537 = vector.shape_cast %536 : vector<1x8x32xf32> to vector<8x32xf32>
    %538 = vector.shape_cast %535 : vector<8x32xf32> to vector<1x8x32xf32>
    tpu.vector_store %arg8[%c1_148, %c0_149, %c0_150], %538 {strides = array<i32>} : memref<2x8x32xf32, #tpu.memory_space<vmem>>, vector<1x8x32xf32>,
    return
  }
  func.func @transform_0(%arg0: i32) -> (i32, i32, i32) {
    %c0_i32 = arith.constant 0 : i32
    %c0_i32_0 = arith.constant 0 : i32
    %c0_i32_1 = arith.constant 0 : i32
    %c0_i32_2 = arith.constant 0 : i32
    return %c0_i32, %c0_i32_0, %c0_i32_1 : i32, i32, i32
  }
  func.func @transform_1(%arg0: i32) -> (i32, i32, i32) {
    %c0_i32 = arith.constant 0 : i32
    %c0_i32_0 = arith.constant 0 : i32
    %c0_i32_1 = arith.constant 0 : i32
    %c0_i32_2 = arith.constant 0 : i32
    return %c0_i32, %c0_i32_0, %c0_i32_1 : i32, i32, i32
  }
  func.func @transform_2(%arg0: i32) -> (i32, i32) {
    %c0_i32 = arith.constant 0 : i32
    %c0_i32_0 = arith.constant 0 : i32
    %c0_i32_1 = arith.constant 0 : i32
    return %c0_i32, %c0_i32_0 : i32, i32
  }
  func.func @transform_3(%arg0: i32) -> (i32, i32, i32) {
    %c0_i32 = arith.constant 0 : i32
    %c0_i32_0 = arith.constant 0 : i32
    %c0_i32_1 = arith.constant 0 : i32
    %c0_i32_2 = arith.constant 0 : i32
    return %c0_i32, %c0_i32_0, %c0_i32_1 : i32, i32, i32
  }
  func.func @transform_4(%arg0: i32) -> (i32, i32, i32) {
    %c0_i32 = arith.constant 0 : i32
    %c0_i32_0 = arith.constant 0 : i32
    %c0_i32_1 = arith.constant 0 : i32
    %c0_i32_2 = arith.constant 0 : i32
    return %c0_i32, %c0_i32_0, %c0_i32_1 : i32, i32, i32
  }
  func.func @transform_5(%arg0: i32) -> (i32, i32, i32) {
    %c0_i32 = arith.constant 0 : i32
    %c0_i32_0 = arith.constant 0 : i32
    %c0_i32_1 = arith.constant 0 : i32
    %c0_i32_2 = arith.constant 0 : i32
    return %c0_i32, %c0_i32_0, %c0_i32_1 : i32, i32, i32
  }
  func.func @transform_6(%arg0: i32) -> (i32, i32, i32) {
    %c0_i32 = arith.constant 0 : i32
    %c0_i32_0 = arith.constant 0 : i32
    %c0_i32_1 = arith.constant 0 : i32
    %c0_i32_2 = arith.constant 0 : i32
    return %c0_i32, %c0_i32_0, %c0_i32_1 : i32, i32, i32
  }
  func.func @transform_7(%arg0: i32) -> (i32, i32, i32) {
    %c0_i32 = arith.constant 0 : i32
    %c0_i32_0 = arith.constant 0 : i32
    %c0_i32_1 = arith.constant 0 : i32
    %c0_i32_2 = arith.constant 0 : i32
    return %c0_i32, %c0_i32_0, %c0_i32_1 : i32, i32, i32
  }
}

</mosaic_0001>

<llo_original>
// kernel: grunet_forward.1
$region0: #{grunet_forward.1}
  #allocation0 [shape = 'u32[]', space=smem, size = 0x4, offset = 0x4, fixed_abs, tag = 'smem constant byte address 0x4 - core index']
  #allocation1 [shape = 'u32[144,128]{1,0:T(1,128)}', space=vmem, size = 0x12000, scoped, tag = 'internal scratch']
  #allocation2 [shape = 'f32[8,8,32]{2,1,0:T(8,128)}', space=vmem, size = 0x8000, scoped, tag = 'scratch operand']
  #allocation3 [shape = 'f32[8,8,384]{2,1,0:T(8,128)}', space=vmem, size = 0x18000, scoped, tag = 'scratch operand']
  %s0 = inlined_call_operand.vmem [shape: f32[8,8,8], index: 0, kind: input, shape index: {}]
  %s1 = inlined_call_operand.vmem [shape: f32[2,8,32], index: 1, kind: input, shape index: {}]
  %s2 = inlined_call_operand.vmem [shape: f32[8,384], index: 2, kind: input, shape index: {}]
  %s3 = inlined_call_operand.hbm [shape: f32[1,32,384], index: 3, kind: input, shape index: {}]
  %s4 = inlined_call_operand.vmem [shape: f32[2,32,384], index: 4, kind: input, shape index: {}]
  %s5 = inlined_call_operand.vmem [shape: f32[2,1,384], index: 5, kind: input, shape index: {}]
  %s6 = inlined_call_operand.vmem [shape: f32[2,1,32], index: 6, kind: input, shape index: {}]
  %s7 = inlined_call_operand.vmem [shape: f32[2,8,32], index: 7, kind: output, shape index: {}]
  %s8 = sld [smem:[#allocation0]]
  $region42: #{grunet_forward.1} parent=0
    _
  %s10 = ssub.s32 1, %s8
  %s11 = scalar_select 0, %s10, %s8
  $region1: #{grunet_forward.1} parent=0
    #allocation4 [shape = 'u8[49152]{0}', space=vmem, size = 0xc000, scoped, tag = 'input window, operand 3, single buffered']
    #allocation5 [shape = 's32[1]{0}', space=sflag, size = 0x4, scoped, tag = 'scoped memory for grunet_forward.1']
    %12 = vsyncpa [#allocation5], 0
    // Predicated region
    $region2: #{grunet_forward.1} parent=1 // pred_check
      _
    $region3: #{grunet_forward.1} parent=1 // pred_check_branch
      %14 = sbr.rel (0) target = $region5
    $region4: #{grunet_forward.1} parent=1 // pred_region
      _
    $region5: #{grunet_forward.1} parent=1 // pred_fallthru
      _
    // Predicated region
    $region6: #{grunet_forward.1} parent=1 // pred_check
      _
    $region7: #{grunet_forward.1} parent=1 // pred_check_branch
      %16 = sbr.rel (0) target = $region9
    $region8: #{grunet_forward.1} parent=1 // pred_region
      _
    $region9: #{grunet_forward.1} parent=1 // pred_fallthru
      _
    // Predicated region
    $region10: #{grunet_forward.1} parent=1 // pred_check
      _
    $region11: #{grunet_forward.1} parent=1 // pred_check_branch
      %18 = sbr.rel (0) target = $region13
    $region12: #{grunet_forward.1} parent=1 // pred_region
      _
    $region13: #{grunet_forward.1} parent=1 // pred_fallthru
      _
    // Predicated region
    $region14: #{grunet_forward.1} parent=1 // pred_check
      _
    $region15: #{grunet_forward.1} parent=1 // pred_check_branch
      %20 = sbr.rel (0) target = $region17
    $region16: #{grunet_forward.1} parent=1 // pred_region
      %s22 = ssub.s32 1536, 1536
      %23 = vsyncadd [#allocation5], %s22
      %s24 = sshll.u32 [#allocation4], 4
      %s25 = int_to_ptr.vmem [resolvable:$true] %s24
      %30 = dma.hbm_to_vmem [thread:$0]  %s3, 1536, %s25, [#allocation5], 384, 384, 24
    $region17: #{grunet_forward.1} parent=1 // pred_fallthru
      _
    // Predicated region
    $region18: #{grunet_forward.1} parent=1 // pred_check
      _
    $region19: #{grunet_forward.1} parent=1 // pred_check_branch
      %32 = sbr.rel (0) target = $region21
    $region20: #{grunet_forward.1} parent=1 // pred_region
      _
    $region21: #{grunet_forward.1} parent=1 // pred_fallthru
      _
    // Predicated region
    $region22: #{grunet_forward.1} parent=1 // pred_check
      _
    $region23: #{grunet_forward.1} parent=1 // pred_check_branch
      %34 = sbr.rel (0) target = $region25
    $region24: #{grunet_forward.1} parent=1 // pred_region
      _
    $region25: #{grunet_forward.1} parent=1 // pred_fallthru
      _
    // Predicated region
    $region26: #{grunet_forward.1} parent=1 // pred_check
      _
    $region27: #{grunet_forward.1} parent=1 // pred_check_branch
      %36 = sbr.rel (0) target = $region29
    $region28: #{grunet_forward.1} parent=1 // pred_region
      _
    $region29: #{grunet_forward.1} parent=1 // pred_fallthru
      _
    // Predicated region
    $region30: #{grunet_forward.1} parent=1 // pred_check
      _
    $region31: #{grunet_forward.1} parent=1 // pred_check_branch
      %38 = sbr.rel (0) target = $region33
    $region32: #{grunet_forward.1} parent=1 // pred_region
      %39 = dma.done [#allocation5], 1536
    $region33: #{grunet_forward.1} parent=1 // pred_fallthru
      _
    %v40 = vld [vmem:[%s0] sm:$0xff]
    %v41 = vld [vmem:[%s0 + $0x8] sm:$0xff]
    %v42 = vld [vmem:[%s0 + $0x10] sm:$0xff]
    %v43 = vld [vmem:[%s0 + $0x18] sm:$0xff]
    %v44 = vld [vmem:[%s0 + $0x20] sm:$0xff]
    %v45 = vld [vmem:[%s0 + $0x28] sm:$0xff]
    %v46 = vld [vmem:[%s0 + $0x30] sm:$0xff]
    %v47 = vld [vmem:[%s0 + $0x38] sm:$0xff]
    %v48 = vld [vmem:[%s2] sm:$0xff]
    %v49 = vld [vmem:[%s2 + $0x8] sm:$0xff]
    %v50 = vld [vmem:[%s2 + $0x10] sm:$0xff]
    %v51 = vld [vmem:[%s5] sm:$0x7]
    %v53 = vlaneseq
    %v54 = vshrl.u32 %v53, 7
    %v55 = vsub.s32 0, %v54
    %v56 = vrot.slane %v51, %v55
    %v57 = vlaneseq
    %v58 = vshrl.u32 %v57, 7
    %v59 = vsub.s32 1, %v58
    %v60 = vrot.slane %v51, %v59
    %v61 = vlaneseq
    %v62 = vshrl.u32 %v61, 7
    %v63 = vsub.s32 2, %v62
    %v64 = vrot.slane %v51, %v63
    %vm68 = vcmask 64512
    %v70 = vsel %vm68, %v40, 0
    %v73 = vsel %vm68, %v41, 0
    %v76 = vsel %vm68, %v42, 0
    %v79 = vsel %vm68, %v43, 0
    %v82 = vsel %vm68, %v44, 0
    %v85 = vsel %vm68, %v45, 0
    %v88 = vsel %vm68, %v46, 0
    %v91 = vsel %vm68, %v47, 0
    %93 = vmatprep.subr.mxu0 %v49
    %94 = vmatpush1.msra.mxu0 %v48
    %95 = vmatprep.subr.mxu0 0.0
    %96 = vmatpush1.msra.mxu0 0.0
    %97 = vmatprep.subr.mxu0 0.0
    %98 = vmatpush1.msra.mxu0 0.0
    %99 = vmatprep.subr.mxu0 0.0
    %100 = vmatpush1.msra.mxu0 0.0
    %101 = vmatprep.subr.mxu0 0.0
    %102 = vmatpush1.msra.mxu0 0.0
    %103 = vmatprep.subr.mxu0 0.0
    %104 = vmatpush1.msra.mxu0 0.0
    %105 = vmatprep.subr.mxu0 0.0
    %106 = vmatpush1.msra.mxu0 0.0
    %107 = vmatprep.subr.mxu0 0.0
    %108 = vmatpush1.msra.mxu0 0.0
    %109 = vmatprep.subr.mxu0 0.0
    %110 = vmatpush1.msra.mxu0 0.0
    %111 = vmatprep.subr.mxu0 0.0
    %112 = vmatpush1.msra.mxu0 0.0
    %113 = vmatprep.subr.mxu0 0.0
    %114 = vmatpush1.msra.mxu0 0.0
    %115 = vmatprep.subr.mxu0 0.0
    %116 = vmatpush1.msra.mxu0 0.0
    %117 = vmatprep.subr.mxu0 0.0
    %118 = vmatpush1.msra.mxu0 0.0
    %119 = vmatprep.subr.mxu0 0.0
    %120 = vmatpush1.msra.mxu0 0.0
    %121 = vmatprep.subr.mxu0 0.0
    %122 = vmatpush1.msra.mxu0 0.0
    %123 = vmatprep.subr.mxu0 0.0
    %124 = vmatpush1.msra.mxu0 0.0
    %125 = vmatprep.subr.mxu0 0.0
    %126 = vmatpush1.msra.mxu0 0.0
    %127 = vmatprep.subr.mxu0 0.0
    %128 = vmatpush1.msra.mxu0 0.0
    %129 = vmatprep.subr.mxu0 0.0
    %130 = vmatpush1.msra.mxu0 0.0
    %131 = vmatprep.subr.mxu0 0.0
    %132 = vmatpush1.msra.mxu0 0.0
    %133 = vmatprep.subr.mxu0 0.0
    %134 = vmatpush1.msra.mxu0 0.0
    %135 = vmatprep.subr.mxu0 0.0
    %136 = vmatpush1.msra.mxu0 0.0
    %137 = vmatprep.subr.mxu0 0.0
    %138 = vmatpush1.msra.mxu0 0.0
    %139 = vmatprep.subr.mxu0 0.0
    %140 = vmatpush1.msra.mxu0 0.0
    %141 = vmatprep.subr.mxu0 0.0
    %142 = vmatpush1.msra.mxu0 0.0
    %143 = vmatprep.subr.mxu0 0.0
    %144 = vmatpush1.msra.mxu0 0.0
    %145 = vmatprep.subr.mxu0 0.0
    %146 = vmatpush1.msra.mxu0 0.0
    %147 = vmatprep.subr.mxu0 0.0
    %148 = vmatpush1.msra.mxu0 0.0
    %149 = vmatprep.subr.mxu0 0.0
    %150 = vmatpush1.msra.mxu0 0.0
    %151 = vmatprep.subr.mxu0 0.0
    %152 = vmatpush1.msra.mxu0 0.0
    %153 = vmatprep.subr.mxu0 0.0
    %154 = vmatpush1.msra.mxu0 0.0
    %155 = vmatprep.subr.mxu0 0.0
    %156 = vmatpush1.msra.mxu0 0.0
    %157 = vmatprep.mubr.f32.mxu0 0.0
    %158 = vmatmul.mubr.f32.gmra.mrb[0].mxu0 %v70
    %v159 = vpop.f32.mrb[0].mxu0
    %v160 = vadd.f32 %v56, %v159
    %v161 = vpop.f32.mrb[0].mxu0
    %v162 = vadd.f32 %v60, %v161
    %163 = vmatprep.mubr.f32.mxu0 0.0
    %164 = vmatmul.mubr.f32.gmra.mrb[0].mxu0 %v73
    %v165 = vpop.f32.mrb[0].mxu0
    %v166 = vadd.f32 %v56, %v165
    %v167 = vpop.f32.mrb[0].mxu0
    %v168 = vadd.f32 %v60, %v167
    %169 = vmatprep.mubr.f32.mxu0 0.0
    %170 = vmatmul.mubr.f32.gmra.mrb[0].mxu0 %v76
    %v171 = vpop.f32.mrb[0].mxu0
    %v172 = vadd.f32 %v56, %v171
    %v173 = vpop.f32.mrb[0].mxu0
    %v174 = vadd.f32 %v60, %v173
    %175 = vmatprep.mubr.f32.mxu0 0.0
    %176 = vmatmul.mubr.f32.gmra.mrb[0].mxu0 %v79
    %v177 = vpop.f32.mrb[0].mxu0
    %v178 = vadd.f32 %v56, %v177
    %v179 = vpop.f32.mrb[0].mxu0
    %v180 = vadd.f32 %v60, %v179
    %181 = vmatprep.mubr.f32.mxu0 0.0
    %182 = vmatmul.mubr.f32.gmra.mrb[0].mxu0 %v82
    %v183 = vpop.f32.mrb[0].mxu0
    %v184 = vadd.f32 %v56, %v183
    %v185 = vpop.f32.mrb[0].mxu0
    %v186 = vadd.f32 %v60, %v185
    %187 = vmatprep.mubr.f32.mxu0 0.0
    %188 = vmatmul.mubr.f32.gmra.mrb[0].mxu0 %v85
    %v189 = vpop.f32.mrb[0].mxu0
    %v190 = vadd.f32 %v56, %v189
    %v191 = vpop.f32.mrb[0].mxu0
    %v192 = vadd.f32 %v60, %v191
    %193 = vmatprep.mubr.f32.mxu0 0.0
    %194 = vmatmul.mubr.f32.gmra.mrb[0].mxu0 %v88
    %v195 = vpop.f32.mrb[0].mxu0
    %v196 = vadd.f32 %v56, %v195
    %v197 = vpop.f32.mrb[0].mxu0
    %v198 = vadd.f32 %v60, %v197
    %199 = vmatprep.mubr.f32.mxu0 0.0
    %200 = vmatmul.mubr.f32.gmra.mrb[0].mxu0 %v91
    %v201 = vpop.f32.mrb[0].mxu0
    %v202 = vadd.f32 %v56, %v201
    %v203 = vpop.f32.mrb[0].mxu0
    %v204 = vadd.f32 %v60, %v203
    %205 = vdwg.mxu0
    %206 = vmatprep.subr.mxu0 0.0
    %207 = vmatpush1.msra.mxu0 %v50
    %208 = vmatprep.subr.mxu0 0.0
    %209 = vmatpush1.msra.mxu0 0.0
    %210 = vmatprep.subr.mxu0 0.0
    %211 = vmatpush1.msra.mxu0 0.0
    %212 = vmatprep.subr.mxu0 0.0
    %213 = vmatpush1.msra.mxu0 0.0
    %214 = vmatprep.subr.mxu0 0.0
    %215 = vmatpush1.msra.mxu0 0.0
    %216 = vmatprep.subr.mxu0 0.0
    %217 = vmatpush1.msra.mxu0 0.0
    %218 = vmatprep.subr.mxu0 0.0
    %219 = vmatpush1.msra.mxu0 0.0
    %220 = vmatprep.subr.mxu0 0.0
    %221 = vmatpush1.msra.mxu0 0.0
    %222 = vmatprep.subr.mxu0 0.0
    %223 = vmatpush1.msra.mxu0 0.0
    %224 = vmatprep.subr.mxu0 0.0
    %225 = vmatpush1.msra.mxu0 0.0
    %226 = vmatprep.subr.mxu0 0.0
    %227 = vmatpush1.msra.mxu0 0.0
    %228 = vmatprep.subr.mxu0 0.0
    %229 = vmatpush1.msra.mxu0 0.0
    %230 = vmatprep.subr.mxu0 0.0
    %231 = vmatpush1.msra.mxu0 0.0
    %232 = vmatprep.subr.mxu0 0.0
    %233 = vmatpush1.msra.mxu0 0.0
    %234 = vmatprep.subr.mxu0 0.0
    %235 = vmatpush1.msra.mxu0 0.0
    %236 = vmatprep.subr.mxu0 0.0
    %237 = vmatpush1.msra.mxu0 0.0
    %238 = vmatprep.subr.mxu0 0.0
    %239 = vmatpush1.msra.mxu0 0.0
    %240 = vmatprep.subr.mxu0 0.0
    %241 = vmatpush1.msra.mxu0 0.0
    %242 = vmatprep.subr.mxu0 0.0
    %243 = vmatpush1.msra.mxu0 0.0
    %244 = vmatprep.subr.mxu0 0.0
    %245 = vmatpush1.msra.mxu0 0.0
    %246 = vmatprep.subr.mxu0 0.0
    %247 = vmatpush1.msra.mxu0 0.0
    %248 = vmatprep.subr.mxu0 0.0
    %249 = vmatpush1.msra.mxu0 0.0
    %250 = vmatprep.subr.mxu0 0.0
    %251 = vmatpush1.msra.mxu0 0.0
    %252 = vmatprep.subr.mxu0 0.0
    %253 = vmatpush1.msra.mxu0 0.0
    %254 = vmatprep.subr.mxu0 0.0
    %255 = vmatpush1.msra.mxu0 0.0
    %256 = vmatprep.subr.mxu0 0.0
    %257 = vmatpush1.msra.mxu0 0.0
    %258 = vmatprep.subr.mxu0 0.0
    %259 = vmatpush1.msra.mxu0 0.0
    %260 = vmatprep.subr.mxu0 0.0
    %261 = vmatpush1.msra.mxu0 0.0
    %262 = vmatprep.subr.mxu0 0.0
    %263 = vmatpush1.msra.mxu0 0.0
    %264 = vmatprep.subr.mxu0 0.0
    %265 = vmatpush1.msra.mxu0 0.0
    %266 = vmatprep.subr.mxu0 0.0
    %267 = vmatpush1.msra.mxu0 0.0
    %268 = vmatprep.subr.mxu0 0.0
    %269 = vmatpush1.msra.mxu0 0.0
    %270 = vmatprep.mubr.f32.mxu0 0.0
    %271 = vmatmul.mubr.f32.gmra.mrb[0].mxu0 %v70
    %v272 = vpop.f32.mrb[0].mxu0
    %v273 = vadd.f32 %v64, %v272
    %v274 = vpop.f32.mrb[0].mxu0
    %275 = vmatprep.mubr.f32.mxu0 0.0
    %276 = vmatmul.mubr.f32.gmra.mrb[0].mxu0 %v73
    %v277 = vpop.f32.mrb[0].mxu0
    %v278 = vadd.f32 %v64, %v277
    %v279 = vpop.f32.mrb[0].mxu0
    %280 = vmatprep.mubr.f32.mxu0 0.0
    %281 = vmatmul.mubr.f32.gmra.mrb[0].mxu0 %v76
    %v282 = vpop.f32.mrb[0].mxu0
    %v283 = vadd.f32 %v64, %v282
    %v284 = vpop.f32.mrb[0].mxu0
    %285 = vmatprep.mubr.f32.mxu0 0.0
    %286 = vmatmul.mubr.f32.gmra.mrb[0].mxu0 %v79
    %v287 = vpop.f32.mrb[0].mxu0
    %v288 = vadd.f32 %v64, %v287
    %v289 = vpop.f32.mrb[0].mxu0
    %290 = vmatprep.mubr.f32.mxu0 0.0
    %291 = vmatmul.mubr.f32.gmra.mrb[0].mxu0 %v82
    %v292 = vpop.f32.mrb[0].mxu0
    %v293 = vadd.f32 %v64, %v292
    %v294 = vpop.f32.mrb[0].mxu0
    %295 = vmatprep.mubr.f32.mxu0 0.0
    %296 = vmatmul.mubr.f32.gmra.mrb[0].mxu0 %v85
    %v297 = vpop.f32.mrb[0].mxu0
    %v298 = vadd.f32 %v64, %v297
    %v299 = vpop.f32.mrb[0].mxu0
    %300 = vmatprep.mubr.f32.mxu0 0.0
    %301 = vmatmul.mubr.f32.gmra.mrb[0].mxu0 %v88
    %v302 = vpop.f32.mrb[0].mxu0
    %v303 = vadd.f32 %v64, %v302
    %v304 = vpop.f32.mrb[0].mxu0
    %305 = vmatprep.mubr.f32.mxu0 0.0
    %306 = vmatmul.mubr.f32.gmra.mrb[0].mxu0 %v91
    %v307 = vpop.f32.mrb[0].mxu0
    %v308 = vadd.f32 %v64, %v307
    %v309 = vpop.f32.mrb[0].mxu0
    %310 = vdwg.mxu0
    %311 = vst [vmem:[#allocation3] sm:$0xff] %v160
    %312 = vst [vmem:[#allocation3 + $0x8] sm:$0xff] %v162
    %313 = vst [vmem:[#allocation3 + $0x10] sm:$0xff] %v273
    %314 = vst [vmem:[#allocation3 + $0x18] sm:$0xff] %v166
    %315 = vst [vmem:[#allocation3 + $0x20] sm:$0xff] %v168
    %316 = vst [vmem:[#allocation3 + $0x28] sm:$0xff] %v278
    %317 = vst [vmem:[#allocation3 + $0x30] sm:$0xff] %v172
    %318 = vst [vmem:[#allocation3 + $0x38] sm:$0xff] %v174
    %319 = vst [vmem:[#allocation3 + $0x40] sm:$0xff] %v283
    %320 = vst [vmem:[#allocation3 + $0x48] sm:$0xff] %v178
    %321 = vst [vmem:[#allocation3 + $0x50] sm:$0xff] %v180
    %322 = vst [vmem:[#allocation3 + $0x58] sm:$0xff] %v288
    %323 = vst [vmem:[#allocation3 + $0x60] sm:$0xff] %v184
    %324 = vst [vmem:[#allocation3 + $0x68] sm:$0xff] %v186
    %325 = vst [vmem:[#allocation3 + $0x70] sm:$0xff] %v293
    %326 = vst [vmem:[#allocation3 + $0x78] sm:$0xff] %v190
    %327 = vst [vmem:[#allocation3 + $0x80] sm:$0xff] %v192
    %328 = vst [vmem:[#allocation3 + $0x88] sm:$0xff] %v298
    %329 = vst [vmem:[#allocation3 + $0x90] sm:$0xff] %v196
    %330 = vst [vmem:[#allocation3 + $0x98] sm:$0xff] %v198
    %331 = vst [vmem:[#allocation3 + $0xa0] sm:$0xff] %v303
    %332 = vst [vmem:[#allocation3 + $0xa8] sm:$0xff] %v202
    %333 = vst [vmem:[#allocation3 + $0xb0] sm:$0xff] %v204
    %334 = vst [vmem:[#allocation3 + $0xb8] sm:$0xff] %v308
    %v335 = vld [vmem:[%s4] sm:$0xff]
    %v336 = vld [vmem:[%s4 + $0x8] sm:$0xff]
    %v337 = vld [vmem:[%s4 + $0x10] sm:$0xff]
    %v338 = vld [vmem:[%s4 + $0x18] sm:$0xff]
    %v339 = vld [vmem:[%s4 + $0x20] sm:$0xff]
    %v340 = vld [vmem:[%s4 + $0x28] sm:$0xff]
    %v341 = vld [vmem:[%s4 + $0x30] sm:$0xff]
    %v342 = vld [vmem:[%s4 + $0x38] sm:$0xff]
    %v343 = vld [vmem:[%s4 + $0x40] sm:$0xff]
    %v344 = vld [vmem:[%s4 + $0x48] sm:$0xff]
    %v345 = vld [vmem:[%s4 + $0x50] sm:$0xff]
    %v346 = vld [vmem:[%s4 + $0x58] sm:$0xff]
    %v347 = vld [vmem:[%s6] sm:$0x1]
    %v349 = vlaneseq
    %v350 = vshrl.u32 %v349, 7
    %v351 = vsub.s32 0, %v350
    %v352 = vrot.slane %v347, %v351
    %v354 = vld [vmem:[%s1] sm:$0xff]
    %v355 = vld [vmem:[#allocation3] sm:$0xff]
    %v356 = vld [vmem:[#allocation3 + $0x8] sm:$0xff]
    %v357 = vld [vmem:[#allocation3 + $0x10] sm:$0xff]
    %vm358 = vcmask 261120
    %v360 = vsel %vm358, %v354, 0
    %362 = vmatprep.subr.mxu0 %v336
    %363 = vmatpush1.msra.mxu0 %v335
    %364 = vmatprep.subr.mxu0 %v339
    %365 = vmatpush1.msra.mxu0 %v338
    %366 = vmatprep.subr.mxu0 %v342
    %367 = vmatpush1.msra.mxu0 %v341
    %368 = vmatprep.subr.mxu0 %v345
    %369 = vmatpush1.msra.mxu0 %v344
    %370 = vmatprep.subr.mxu0 0.0
    %371 = vmatpush1.msra.mxu0 0.0
    %372 = vmatprep.subr.mxu0 0.0
    %373 = vmatpush1.msra.mxu0 0.0
    %374 = vmatprep.subr.mxu0 0.0
    %375 = vmatpush1.msra.mxu0 0.0
    %376 = vmatprep.subr.mxu0 0.0
    %377 = vmatpush1.msra.mxu0 0.0
    %378 = vmatprep.subr.mxu0 0.0
    %379 = vmatpush1.msra.mxu0 0.0
    %380 = vmatprep.subr.mxu0 0.0
    %381 = vmatpush1.msra.mxu0 0.0
    %382 = vmatprep.subr.mxu0 0.0
    %383 = vmatpush1.msra.mxu0 0.0
    %384 = vmatprep.subr.mxu0 0.0
    %385 = vmatpush1.msra.mxu0 0.0
    %386 = vmatprep.subr.mxu0 0.0
    %387 = vmatpush1.msra.mxu0 0.0
    %388 = vmatprep.subr.mxu0 0.0
    %389 = vmatpush1.msra.mxu0 0.0
    %390 = vmatprep.subr.mxu0 0.0
    %391 = vmatpush1.msra.mxu0 0.0
    %392 = vmatprep.subr.mxu0 0.0
    %393 = vmatpush1.msra.mxu0 0.0
    %394 = vmatprep.subr.mxu0 0.0
    %395 = vmatpush1.msra.mxu0 0.0
    %396 = vmatprep.subr.mxu0 0.0
    %397 = vmatpush1.msra.mxu0 0.0
    %398 = vmatprep.subr.mxu0 0.0
    %399 = vmatpush1.msra.mxu0 0.0
    %400 = vmatprep.subr.mxu0 0.0
    %401 = vmatpush1.msra.mxu0 0.0
    %402 = vmatprep.subr.mxu0 0.0
    %403 = vmatpush1.msra.mxu0 0.0
    %404 = vmatprep.subr.mxu0 0.0
    %405 = vmatpush1.msra.mxu0 0.0
    %406 = vmatprep.subr.mxu0 0.0
    %407 = vmatpush1.msra.mxu0 0.0
    %408 = vmatprep.subr.mxu0 0.0
    %409 = vmatpush1.msra.mxu0 0.0
    %410 = vmatprep.subr.mxu0 0.0
    %411 = vmatpush1.msra.mxu0 0.0
    %412 = vmatprep.subr.mxu0 0.0
    %413 = vmatpush1.msra.mxu0 0.0
    %414 = vmatprep.subr.mxu0 0.0
    %415 = vmatpush1.msra.mxu0 0.0
    %416 = vmatprep.subr.mxu0 0.0
    %417 = vmatpush1.msra.mxu0 0.0
    %418 = vmatprep.subr.mxu0 0.0
    %419 = vmatpush1.msra.mxu0 0.0
    %420 = vmatprep.subr.mxu0 0.0
    %421 = vmatpush1.msra.mxu0 0.0
    %422 = vmatprep.subr.mxu0 0.0
    %423 = vmatpush1.msra.mxu0 0.0
    %424 = vmatprep.subr.mxu0 0.0
    %425 = vmatpush1.msra.mxu0 0.0
    %426 = vmatprep.mubr.f32.mxu0 0.0
    %427 = vmatmul.mubr.f32.gmra.mrb[0].mxu0 %v360
    %v428 = vpop.f32.mrb[0].mxu0
    %v429 = vadd.f32 0.0, %v428
    %v430 = vpop.f32.mrb[0].mxu0
    %v431 = vadd.f32 0.0, %v430
    %432 = vdwg.mxu0
    %433 = vmatprep.subr.mxu0 0.0
    %434 = vmatpush1.msra.mxu0 %v337
    %435 = vmatprep.subr.mxu0 0.0
    %436 = vmatpush1.msra.mxu0 %v340
    %437 = vmatprep.subr.mxu0 0.0
    %438 = vmatpush1.msra.mxu0 %v343
    %439 = vmatprep.subr.mxu0 0.0
    %440 = vmatpush1.msra.mxu0 %v346
    %441 = vmatprep.subr.mxu0 0.0
    %442 = vmatpush1.msra.mxu0 0.0
    %443 = vmatprep.subr.mxu0 0.0
    %444 = vmatpush1.msra.mxu0 0.0
    %445 = vmatprep.subr.mxu0 0.0
    %446 = vmatpush1.msra.mxu0 0.0
    %447 = vmatprep.subr.mxu0 0.0
    %448 = vmatpush1.msra.mxu0 0.0
    %449 = vmatprep.subr.mxu0 0.0
    %450 = vmatpush1.msra.mxu0 0.0
    %451 = vmatprep.subr.mxu0 0.0
    %452 = vmatpush1.msra.mxu0 0.0
    %453 = vmatprep.subr.mxu0 0.0
    %454 = vmatpush1.msra.mxu0 0.0
    %455 = vmatprep.subr.mxu0 0.0
    %456 = vmatpush1.msra.mxu0 0.0
    %457 = vmatprep.subr.mxu0 0.0
    %458 = vmatpush1.msra.mxu0 0.0
    %459 = vmatprep.subr.mxu0 0.0
    %460 = vmatpush1.msra.mxu0 0.0
    %461 = vmatprep.subr.mxu0 0.0
    %462 = vmatpush1.msra.mxu0 0.0
    %463 = vmatprep.subr.mxu0 0.0
    %464 = vmatpush1.msra.mxu0 0.0
    %465 = vmatprep.subr.mxu0 0.0
    %466 = vmatpush1.msra.mxu0 0.0
    %467 = vmatprep.subr.mxu0 0.0
    %468 = vmatpush1.msra.mxu0 0.0
    %469 = vmatprep.subr.mxu0 0.0
    %470 = vmatpush1.msra.mxu0 0.0
    %471 = vmatprep.subr.mxu0 0.0
    %472 = vmatpush1.msra.mxu0 0.0
    %473 = vmatprep.subr.mxu0 0.0
    %474 = vmatpush1.msra.mxu0 0.0
    %475 = vmatprep.subr.mxu0 0.0
    %476 = vmatpush1.msra.mxu0 0.0
    %477 = vmatprep.subr.mxu0 0.0
    %478 = vmatpush1.msra.mxu0 0.0
    %479 = vmatprep.subr.mxu0 0.0
    %480 = vmatpush1.msra.mxu0 0.0
    %481 = vmatprep.subr.mxu0 0.0
    %482 = vmatpush1.msra.mxu0 0.0
    %483 = vmatprep.subr.mxu0 0.0
    %484 = vmatpush1.msra.mxu0 0.0
    %485 = vmatprep.subr.mxu0 0.0
    %486 = vmatpush1.msra.mxu0 0.0
    %487 = vmatprep.subr.mxu0 0.0
    %488 = vmatpush1.msra.mxu0 0.0
    %489 = vmatprep.subr.mxu0 0.0
    %490 = vmatpush1.msra.mxu0 0.0
    %491 = vmatprep.subr.mxu0 0.0
    %492 = vmatpush1.msra.mxu0 0.0
    %493 = vmatprep.subr.mxu0 0.0
    %494 = vmatpush1.msra.mxu0 0.0
    %495 = vmatprep.subr.mxu0 0.0
    %496 = vmatpush1.msra.mxu0 0.0
    %497 = vmatprep.mubr.f32.mxu0 0.0
    %498 = vmatmul.mubr.f32.gmra.mrb[0].mxu0 %v360
    %v499 = vpop.f32.mrb[0].mxu0
    %v500 = vadd.f32 0.0, %v499
    %v501 = vpop.f32.mrb[0].mxu0
    %502 = vdwg.mxu0
    %v503 = vadd.f32 %v355, %v429
    %v504 = vxor.u32 %v503, 2147483648
    %v505 = vmul.f32 %v504, 1.442695
    %v506 = vpow.pop %v505
    %v507 = vadd.f32 %v506, 1.0
    %v508 = vrcp.pop %v507
    %v509 = vmul.f32 1.0, %v508
    %v510 = vadd.f32 %v356, %v431
    %v511 = vxor.u32 %v510, 2147483648
    %v512 = vmul.f32 %v511, 1.442695
    %v513 = vpow.pop %v512
    %v514 = vadd.f32 %v513, 1.0
    %v515 = vrcp.pop %v514
    %v516 = vmul.f32 1.0, %v515
    %v517 = vadd.f32 %v500, %v352
    %v518 = vmul.f32 %v509, %v517
    %v519 = vadd.f32 %v357, %v518
    %v520 = vtanh.pop %v519
    %v521 = vsub.f32 %v354, %v520
    %v522 = vmul.f32 %v516, %v521
    %v523 = vadd.f32 %v520, %v522
    %524 = vst.msk [vmem:[#allocation2] sm:$0xff] %vm358, %v523
    %s525 = scalar_lea.vmem [#allocation3], 24
    %v526 = vld [vmem:[%s525] sm:$0xff]
    %v527 = vld [vmem:[%s525 + $0x8] sm:$0xff]
    %v528 = vld [vmem:[%s525 + $0x10] sm:$0xff]
    %v530 = vsel %vm358, %v523, 0
    %532 = vmatprep.subr.mxu0 %v336
    %533 = vmatpush1.msra.mxu0 %v335
    %534 = vmatprep.subr.mxu0 %v339
    %535 = vmatpush1.msra.mxu0 %v338
    %536 = vmatprep.subr.mxu0 %v342
    %537 = vmatpush1.msra.mxu0 %v341
    %538 = vmatprep.subr.mxu0 %v345
    %539 = vmatpush1.msra.mxu0 %v344
    %540 = vmatprep.subr.mxu0 0.0
    %541 = vmatpush1.msra.mxu0 0.0
    %542 = vmatprep.subr.mxu0 0.0
    %543 = vmatpush1.msra.mxu0 0.0
    %544 = vmatprep.subr.mxu0 0.0
    %545 = vmatpush1.msra.mxu0 0.0
    %546 = vmatprep.subr.mxu0 0.0
    %547 = vmatpush1.msra.mxu0 0.0
    %548 = vmatprep.subr.mxu0 0.0
    %549 = vmatpush1.msra.mxu0 0.0
    %550 = vmatprep.subr.mxu0 0.0
    %551 = vmatpush1.msra.mxu0 0.0
    %552 = vmatprep.subr.mxu0 0.0
    %553 = vmatpush1.msra.mxu0 0.0
    %554 = vmatprep.subr.mxu0 0.0
    %555 = vmatpush1.msra.mxu0 0.0
    %556 = vmatprep.subr.mxu0 0.0
    %557 = vmatpush1.msra.mxu0 0.0
    %558 = vmatprep.subr.mxu0 0.0
    %559 = vmatpush1.msra.mxu0 0.0
    %560 = vmatprep.subr.mxu0 0.0
    %561 = vmatpush1.msra.mxu0 0.0
    %562 = vmatprep.subr.mxu0 0.0
    %563 = vmatpush1.msra.mxu0 0.0
    %564 = vmatprep.subr.mxu0 0.0
    %565 = vmatpush1.msra.mxu0 0.0
    %566 = vmatprep.subr.mxu0 0.0
    %567 = vmatpush1.msra.mxu0 0.0
    %568 = vmatprep.subr.mxu0 0.0
    %569 = vmatpush1.msra.mxu0 0.0
    %570 = vmatprep.subr.mxu0 0.0
    %571 = vmatpush1.msra.mxu0 0.0
    %572 = vmatprep.subr.mxu0 0.0
    %573 = vmatpush1.msra.mxu0 0.0
    %574 = vmatprep.subr.mxu0 0.0
    %575 = vmatpush1.msra.mxu0 0.0
    %576 = vmatprep.subr.mxu0 0.0
    %577 = vmatpush1.msra.mxu0 0.0
    %578 = vmatprep.subr.mxu0 0.0
    %579 = vmatpush1.msra.mxu0 0.0
    %580 = vmatprep.subr.mxu0 0.0
    %581 = vmatpush1.msra.mxu0 0.0
    %582 = vmatprep.subr.mxu0 0.0
    %583 = vmatpush1.msra.mxu0 0.0
    %584 = vmatprep.subr.mxu0 0.0
    %585 = vmatpush1.msra.mxu0 0.0
    %586 = vmatprep.subr.mxu0 0.0
    %587 = vmatpush1.msra.mxu0 0.0
    %588 = vmatprep.subr.mxu0 0.0
    %589 = vmatpush1.msra.mxu0 0.0
    %590 = vmatprep.subr.mxu0 0.0
    %591 = vmatpush1.msra.mxu0 0.0
    %592 = vmatprep.subr.mxu0 0.0
    %593 = vmatpush1.msra.mxu0 0.0
    %594 = vmatprep.subr.mxu0 0.0
    %595 = vmatpush1.msra.mxu0 0.0
    %596 = vmatprep.mubr.f32.mxu0 0.0
    %597 = vmatmul.mubr.f32.gmra.mrb[0].mxu0 %v530
    %v598 = vpop.f32.mrb[0].mxu0
    %v599 = vadd.f32 0.0, %v598
    %v600 = vpop.f32.mrb[0].mxu0
    %v601 = vadd.f32 0.0, %v600
    %602 = vdwg.mxu0
    %603 = vmatprep.subr.mxu0 0.0
    %604 = vmatpush1.msra.mxu0 %v337
    %605 = vmatprep.subr.mxu0 0.0
    %606 = vmatpush1.msra.mxu0 %v340
    %607 = vmatprep.subr.mxu0 0.0
    %608 = vmatpush1.msra.mxu0 %v343
    %609 = vmatprep.subr.mxu0 0.0
    %610 = vmatpush1.msra.mxu0 %v346
    %611 = vmatprep.subr.mxu0 0.0
    %612 = vmatpush1.msra.mxu0 0.0
    %613 = vmatprep.subr.mxu0 0.0
    %614 = vmatpush1.msra.mxu0 0.0
    %615 = vmatprep.subr.mxu0 0.0
    %616 = vmatpush1.msra.mxu0 0.0
    %617 = vmatprep.subr.mxu0 0.0
    %618 = vmatpush1.msra.mxu0 0.0
    %619 = vmatprep.subr.mxu0 0.0
    %620 = vmatpush1.msra.mxu0 0.0
    %621 = vmatprep.subr.mxu0 0.0
    %622 = vmatpush1.msra.mxu0 0.0
    %623 = vmatprep.subr.mxu0 0.0
    %624 = vmatpush1.msra.mxu0 0.0
    %625 = vmatprep.subr.mxu0 0.0
    %626 = vmatpush1.msra.mxu0 0.0
    %627 = vmatprep.subr.mxu0 0.0
    %628 = vmatpush1.msra.mxu0 0.0
    %629 = vmatprep.subr.mxu0 0.0
    %630 = vmatpush1.msra.mxu0 0.0
    %631 = vmatprep.subr.mxu0 0.0
    %632 = vmatpush1.msra.mxu0 0.0
    %633 = vmatprep.subr.mxu0 0.0
    %634 = vmatpush1.msra.mxu0 0.0
    %635 = vmatprep.subr.mxu0 0.0
    %636 = vmatpush1.msra.mxu0 0.0
    %637 = vmatprep.subr.mxu0 0.0
    %638 = vmatpush1.msra.mxu0 0.0
    %639 = vmatprep.subr.mxu0 0.0
    %640 = vmatpush1.msra.mxu0 0.0
    %641 = vmatprep.subr.mxu0 0.0
    %642 = vmatpush1.msra.mxu0 0.0
    %643 = vmatprep.subr.mxu0 0.0
    %644 = vmatpush1.msra.mxu0 0.0
    %645 = vmatprep.subr.mxu0 0.0
    %646 = vmatpush1.msra.mxu0 0.0
    %647 = vmatprep.subr.mxu0 0.0
    %648 = vmatpush1.msra.mxu0 0.0
    %649 = vmatprep.subr.mxu0 0.0
    %650 = vmatpush1.msra.mxu0 0.0
    %651 = vmatprep.subr.mxu0 0.0
    %652 = vmatpush1.msra.mxu0 0.0
    %653 = vmatprep.subr.mxu0 0.0
    %654 = vmatpush1.msra.mxu0 0.0
    %655 = vmatprep.subr.mxu0 0.0
    %656 = vmatpush1.msra.mxu0 0.0
    %657 = vmatprep.subr.mxu0 0.0
    %658 = vmatpush1.msra.mxu0 0.0
    %659 = vmatprep.subr.mxu0 0.0
    %660 = vmatpush1.msra.mxu0 0.0
    %661 = vmatprep.subr.mxu0 0.0
    %662 = vmatpush1.msra.mxu0 0.0
    %663 = vmatprep.subr.mxu0 0.0
    %664 = vmatpush1.msra.mxu0 0.0
    %665 = vmatprep.subr.mxu0 0.0
    %666 = vmatpush1.msra.mxu0 0.0
    %667 = vmatprep.mubr.f32.mxu0 0.0
    %668 = vmatmul.mubr.f32.gmra.mrb[0].mxu0 %v530
    %v669 = vpop.f32.mrb[0].mxu0
    %v670 = vadd.f32 0.0, %v669
    %v671 = vpop.f32.mrb[0].mxu0
    %672 = vdwg.mxu0
    %v673 = vadd.f32 %v526, %v599
    %v674 = vxor.u32 %v673, 2147483648
    %v675 = vmul.f32 %v674, 1.442695
    %v676 = vpow.pop %v675
    %v677 = vadd.f32 %v676, 1.0
    %v678 = vrcp.pop %v677
    %v679 = vmul.f32 1.0, %v678
    %v680 = vadd.f32 %v527, %v601
    %v681 = vxor.u32 %v680, 2147483648
    %v682 = vmul.f32 %v681, 1.442695
    %v683 = vpow.pop %v682
    %v684 = vadd.f32 %v683, 1.0
    %v685 = vrcp.pop %v684
    %v686 = vmul.f32 1.0, %v685
    %v687 = vadd.f32 %v670, %v352
    %v688 = vmul.f32 %v679, %v687
    %v689 = vadd.f32 %v528, %v688
    %v690 = vtanh.pop %v689
    %v691 = vsub.f32 %v523, %v690
    %v692 = vmul.f32 %v686, %v691
    %v693 = vadd.f32 %v690, %v692
    %s694 = scalar_lea.vmem [#allocation2], 8
    %695 = vst.msk [vmem:[%s694] sm:$0xff] %vm358, %v693
    %s696 = scalar_lea.vmem [#allocation3], 48
    %v697 = vld [vmem:[%s696] sm:$0xff]
    %v698 = vld [vmem:[%s696 + $0x8] sm:$0xff]
    %v699 = vld [vmem:[%s696 + $0x10] sm:$0xff]
    %v701 = vsel %vm358, %v693, 0
    %703 = vmatprep.subr.mxu0 %v336
    %704 = vmatpush1.msra.mxu0 %v335
    %705 = vmatprep.subr.mxu0 %v339
    %706 = vmatpush1.msra.mxu0 %v338
    %707 = vmatprep.subr.mxu0 %v342
    %708 = vmatpush1.msra.mxu0 %v341
    %709 = vmatprep.subr.mxu0 %v345
    %710 = vmatpush1.msra.mxu0 %v344
    %711 = vmatprep.subr.mxu0 0.0
    %712 = vmatpush1.msra.mxu0 0.0
    %713 = vmatprep.subr.mxu0 0.0
    %714 = vmatpush1.msra.mxu0 0.0
    %715 = vmatprep.subr.mxu0 0.0
    %716 = vmatpush1.msra.mxu0 0.0
    %717 = vmatprep.subr.mxu0 0.0
    %718 = vmatpush1.msra.mxu0 0.0
    %719 = vmatprep.subr.mxu0 0.0
    %720 = vmatpush1.msra.mxu0 0.0
    %721 = vmatprep.subr.mxu0 0.0
    %722 = vmatpush1.msra.mxu0 0.0
    %723 = vmatprep.subr.mxu0 0.0
    %724 = vmatpush1.msra.mxu0 0.0
    %725 = vmatprep.subr.mxu0 0.0
    %726 = vmatpush1.msra.mxu0 0.0
    %727 = vmatprep.subr.mxu0 0.0
    %728 = vmatpush1.msra.mxu0 0.0
    %729 = vmatprep.subr.mxu0 0.0
    %730 = vmatpush1.msra.mxu0 0.0
    %731 = vmatprep.subr.mxu0 0.0
    %732 = vmatpush1.msra.mxu0 0.0
    %733 = vmatprep.subr.mxu0 0.0
    %734 = vmatpush1.msra.mxu0 0.0
    %735 = vmatprep.subr.mxu0 0.0
    %736 = vmatpush1.msra.mxu0 0.0
    %737 = vmatprep.subr.mxu0 0.0
    %738 = vmatpush1.msra.mxu0 0.0
    %739 = vmatprep.subr.mxu0 0.0
    %740 = vmatpush1.msra.mxu0 0.0
    %741 = vmatprep.subr.mxu0 0.0
    %742 = vmatpush1.msra.mxu0 0.0
    %743 = vmatprep.subr.mxu0 0.0
    %744 = vmatpush1.msra.mxu0 0.0
    %745 = vmatprep.subr.mxu0 0.0
    %746 = vmatpush1.msra.mxu0 0.0
    %747 = vmatprep.subr.mxu0 0.0
    %748 = vmatpush1.msra.mxu0 0.0
    %749 = vmatprep.subr.mxu0 0.0
    %750 = vmatpush1.msra.mxu0 0.0
    %751 = vmatprep.subr.mxu0 0.0
    %752 = vmatpush1.msra.mxu0 0.0
    %753 = vmatprep.subr.mxu0 0.0
    %754 = vmatpush1.msra.mxu0 0.0
    %755 = vmatprep.subr.mxu0 0.0
    %756 = vmatpush1.msra.mxu0 0.0
    %757 = vmatprep.subr.mxu0 0.0
    %758 = vmatpush1.msra.mxu0 0.0
    %759 = vmatprep.subr.mxu0 0.0
    %760 = vmatpush1.msra.mxu0 0.0
    %761 = vmatprep.subr.mxu0 0.0
    %762 = vmatpush1.msra.mxu0 0.0
    %763 = vmatprep.subr.mxu0 0.0
    %764 = vmatpush1.msra.mxu0 0.0
    %765 = vmatprep.subr.mxu0 0.0
    %766 = vmatpush1.msra.mxu0 0.0
    %767 = vmatprep.mubr.f32.mxu0 0.0
    %768 = vmatmul.mubr.f32.gmra.mrb[0].mxu0 %v701
    %v769 = vpop.f32.mrb[0].mxu0
    %v770 = vadd.f32 0.0, %v769
    %v771 = vpop.f32.mrb[0].mxu0
    %v772 = vadd.f32 0.0, %v771
    %773 = vdwg.mxu0
    %774 = vmatprep.subr.mxu0 0.0
    %775 = vmatpush1.msra.mxu0 %v337
    %776 = vmatprep.subr.mxu0 0.0
    %777 = vmatpush1.msra.mxu0 %v340
    %778 = vmatprep.subr.mxu0 0.0
    %779 = vmatpush1.msra.mxu0 %v343
    %780 = vmatprep.subr.mxu0 0.0
    %781 = vmatpush1.msra.mxu0 %v346
    %782 = vmatprep.subr.mxu0 0.0
    %783 = vmatpush1.msra.mxu0 0.0
    %784 = vmatprep.subr.mxu0 0.0
    %785 = vmatpush1.msra.mxu0 0.0
    %786 = vmatprep.subr.mxu0 0.0
    %787 = vmatpush1.msra.mxu0 0.0
    %788 = vmatprep.subr.mxu0 0.0
    %789 = vmatpush1.msra.mxu0 0.0
    %790 = vmatprep.subr.mxu0 0.0
    %791 = vmatpush1.msra.mxu0 0.0
    %792 = vmatprep.subr.mxu0 0.0
    %793 = vmatpush1.msra.mxu0 0.0
    %794 = vmatprep.subr.mxu0 0.0
    %795 = vmatpush1.msra.mxu0 0.0
    %796 = vmatprep.subr.mxu0 0.0
    %797 = vmatpush1.msra.mxu0 0.0
    %798 = vmatprep.subr.mxu0 0.0
    %799 = vmatpush1.msra.mxu0 0.0
    %800 = vmatprep.subr.mxu0 0.0
    %801 = vmatpush1.msra.mxu0 0.0
    %802 = vmatprep.subr.mxu0 0.0
    %803 = vmatpush1.msra.mxu0 0.0
    %804 = vmatprep.subr.mxu0 0.0
    %805 = vmatpush1.msra.mxu0 0.0
    %806 = vmatprep.subr.mxu0 0.0
    %807 = vmatpush1.msra.mxu0 0.0
    %808 = vmatprep.subr.mxu0 0.0
    %809 = vmatpush1.msra.mxu0 0.0
    %810 = vmatprep.subr.mxu0 0.0
    %811 = vmatpush1.msra.mxu0 0.0
    %812 = vmatprep.subr.mxu0 0.0
    %813 = vmatpush1.msra.mxu0 0.0
    %814 = vmatprep.subr.mxu0 0.0
    %815 = vmatpush1.msra.mxu0 0.0
    %816 = vmatprep.subr.mxu0 0.0
    %817 = vmatpush1.msra.mxu0 0.0
    %818 = vmatprep.subr.mxu0 0.0
    %819 = vmatpush1.msra.mxu0 0.0
    %820 = vmatprep.subr.mxu0 0.0
    %821 = vmatpush1.msra.mxu0 0.0
    %822 = vmatprep.subr.mxu0 0.0
    %823 = vmatpush1.msra.mxu0 0.0
    %824 = vmatprep.subr.mxu0 0.0
    %825 = vmatpush1.msra.mxu0 0.0
    %826 = vmatprep.subr.mxu0 0.0
    %827 = vmatpush1.msra.mxu0 0.0
    %828 = vmatprep.subr.mxu0 0.0
    %829 = vmatpush1.msra.mxu0 0.0
    %830 = vmatprep.subr.mxu0 0.0
    %831 = vmatpush1.msra.mxu0 0.0
    %832 = vmatprep.subr.mxu0 0.0
    %833 = vmatpush1.msra.mxu0 0.0
    %834 = vmatprep.subr.mxu0 0.0
    %835 = vmatpush1.msra.mxu0 0.0
    %836 = vmatprep.subr.mxu0 0.0
    %837 = vmatpush1.msra.mxu0 0.0
    %838 = vmatprep.mubr.f32.mxu0 0.0
    %839 = vmatmul.mubr.f32.gmra.mrb[0].mxu0 %v701
    %v840 = vpop.f32.mrb[0].mxu0
    %v841 = vadd.f32 0.0, %v840
    %v842 = vpop.f32.mrb[0].mxu0
    %843 = vdwg.mxu0
    %v844 = vadd.f32 %v697, %v770
    %v845 = vxor.u32 %v844, 2147483648
    %v846 = vmul.f32 %v845, 1.442695
    %v847 = vpow.pop %v846
    %v848 = vadd.f32 %v847, 1.0
    %v849 = vrcp.pop %v848
    %v850 = vmul.f32 1.0, %v849
    %v851 = vadd.f32 %v698, %v772
    %v852 = vxor.u32 %v851, 2147483648
    %v853 = vmul.f32 %v852, 1.442695
    %v854 = vpow.pop %v853
    %v855 = vadd.f32 %v854, 1.0
    %v856 = vrcp.pop %v855
    %v857 = vmul.f32 1.0, %v856
    %v858 = vadd.f32 %v841, %v352
    %v859 = vmul.f32 %v850, %v858
    %v860 = vadd.f32 %v699, %v859
    %v861 = vtanh.pop %v860
    %v862 = vsub.f32 %v693, %v861
    %v863 = vmul.f32 %v857, %v862
    %v864 = vadd.f32 %v861, %v863
    %s865 = scalar_lea.vmem [#allocation2], 16
    %866 = vst.msk [vmem:[%s865] sm:$0xff] %vm358, %v864
    %s867 = scalar_lea.vmem [#allocation3], 72
    %v868 = vld [vmem:[%s867] sm:$0xff]
    %v869 = vld [vmem:[%s867 + $0x8] sm:$0xff]
    %v870 = vld [vmem:[%s867 + $0x10] sm:$0xff]
    %v872 = vsel %vm358, %v864, 0
    %874 = vmatprep.subr.mxu0 %v336
    %875 = vmatpush1.msra.mxu0 %v335
    %876 = vmatprep.subr.mxu0 %v339
    %877 = vmatpush1.msra.mxu0 %v338
    %878 = vmatprep.subr.mxu0 %v342
    %879 = vmatpush1.msra.mxu0 %v341
    %880 = vmatprep.subr.mxu0 %v345
    %881 = vmatpush1.msra.mxu0 %v344
    %882 = vmatprep.subr.mxu0 0.0
    %883 = vmatpush1.msra.mxu0 0.0
    %884 = vmatprep.subr.mxu0 0.0
    %885 = vmatpush1.msra.mxu0 0.0
    %886 = vmatprep.subr.mxu0 0.0
    %887 = vmatpush1.msra.mxu0 0.0
    %888 = vmatprep.subr.mxu0 0.0
    %889 = vmatpush1.msra.mxu0 0.0
    %890 = vmatprep.subr.mxu0 0.0
    %891 = vmatpush1.msra.mxu0 0.0
    %892 = vmatprep.subr.mxu0 0.0
    %893 = vmatpush1.msra.mxu0 0.0
    %894 = vmatprep.subr.mxu0 0.0
    %895 = vmatpush1.msra.mxu0 0.0
    %896 = vmatprep.subr.mxu0 0.0
    %897 = vmatpush1.msra.mxu0 0.0
    %898 = vmatprep.subr.mxu0 0.0
    %899 = vmatpush1.msra.mxu0 0.0
    %900 = vmatprep.subr.mxu0 0.0
    %901 = vmatpush1.msra.mxu0 0.0
    %902 = vmatprep.subr.mxu0 0.0
    %903 = vmatpush1.msra.mxu0 0.0
    %904 = vmatprep.subr.mxu0 0.0
    %905 = vmatpush1.msra.mxu0 0.0
    %906 = vmatprep.subr.mxu0 0.0
    %907 = vmatpush1.msra.mxu0 0.0
    %908 = vmatprep.subr.mxu0 0.0
    %909 = vmatpush1.msra.mxu0 0.0
    %910 = vmatprep.subr.mxu0 0.0
    %911 = vmatpush1.msra.mxu0 0.0
    %912 = vmatprep.subr.mxu0 0.0
    %913 = vmatpush1.msra.mxu0 0.0
    %914 = vmatprep.subr.mxu0 0.0
    %915 = vmatpush1.msra.mxu0 0.0
    %916 = vmatprep.subr.mxu0 0.0
    %917 = vmatpush1.msra.mxu0 0.0
    %918 = vmatprep.subr.mxu0 0.0
    %919 = vmatpush1.msra.mxu0 0.0
    %920 = vmatprep.subr.mxu0 0.0
    %921 = vmatpush1.msra.mxu0 0.0
    %922 = vmatprep.subr.mxu0 0.0
    %923 = vmatpush1.msra.mxu0 0.0
    %924 = vmatprep.subr.mxu0 0.0
    %925 = vmatpush1.msra.mxu0 0.0
    %926 = vmatprep.subr.mxu0 0.0
    %927 = vmatpush1.msra.mxu0 0.0
    %928 = vmatprep.subr.mxu0 0.0
    %929 = vmatpush1.msra.mxu0 0.0
    %930 = vmatprep.subr.mxu0 0.0
    %931 = vmatpush1.msra.mxu0 0.0
    %932 = vmatprep.subr.mxu0 0.0
    %933 = vmatpush1.msra.mxu0 0.0
    %934 = vmatprep.subr.mxu0 0.0
    %935 = vmatpush1.msra.mxu0 0.0
    %936 = vmatprep.subr.mxu0 0.0
    %937 = vmatpush1.msra.mxu0 0.0
    %938 = vmatprep.mubr.f32.mxu0 0.0
    %939 = vmatmul.mubr.f32.gmra.mrb[0].mxu0 %v872
    %v940 = vpop.f32.mrb[0].mxu0
    %v941 = vadd.f32 0.0, %v940
    %v942 = vpop.f32.mrb[0].mxu0
    %v943 = vadd.f32 0.0, %v942
    %944 = vdwg.mxu0
    %945 = vmatprep.subr.mxu0 0.0
    %946 = vmatpush1.msra.mxu0 %v337
    %947 = vmatprep.subr.mxu0 0.0
    %948 = vmatpush1.msra.mxu0 %v340
    %949 = vmatprep.subr.mxu0 0.0
    %950 = vmatpush1.msra.mxu0 %v343
    %951 = vmatprep.subr.mxu0 0.0
    %952 = vmatpush1.msra.mxu0 %v346
    %953 = vmatprep.subr.mxu0 0.0
    %954 = vmatpush1.msra.mxu0 0.0
    %955 = vmatprep.subr.mxu0 0.0
    %956 = vmatpush1.msra.mxu0 0.0
    %957 = vmatprep.subr.mxu0 0.0
    %958 = vmatpush1.msra.mxu0 0.0
    %959 = vmatprep.subr.mxu0 0.0
    %960 = vmatpush1.msra.mxu0 0.0
    %961 = vmatprep.subr.mxu0 0.0
    %962 = vmatpush1.msra.mxu0 0.0
    %963 = vmatprep.subr.mxu0 0.0
    %964 = vmatpush1.msra.mxu0 0.0
    %965 = vmatprep.subr.mxu0 0.0
    %966 = vmatpush1.msra.mxu0 0.0
    %967 = vmatprep.subr.mxu0 0.0
    %968 = vmatpush1.msra.mxu0 0.0
    %969 = vmatprep.subr.mxu0 0.0
    %970 = vmatpush1.msra.mxu0 0.0
    %971 = vmatprep.subr.mxu0 0.0
    %972 = vmatpush1.msra.mxu0 0.0
    %973 = vmatprep.subr.mxu0 0.0
    %974 = vmatpush1.msra.mxu0 0.0
    %975 = vmatprep.subr.mxu0 0.0
    %976 = vmatpush1.msra.mxu0 0.0
    %977 = vmatprep.subr.mxu0 0.0
    %978 = vmatpush1.msra.mxu0 0.0
    %979 = vmatprep.subr.mxu0 0.0
    %980 = vmatpush1.msra.mxu0 0.0
    %981 = vmatprep.subr.mxu0 0.0
    %982 = vmatpush1.msra.mxu0 0.0
    %983 = vmatprep.subr.mxu0 0.0
    %984 = vmatpush1.msra.mxu0 0.0
    %985 = vmatprep.subr.mxu0 0.0
    %986 = vmatpush1.msra.mxu0 0.0
    %987 = vmatprep.subr.mxu0 0.0
    %988 = vmatpush1.msra.mxu0 0.0
    %989 = vmatprep.subr.mxu0 0.0
    %990 = vmatpush1.msra.mxu0 0.0
    %991 = vmatprep.subr.mxu0 0.0
    %992 = vmatpush1.msra.mxu0 0.0
    %993 = vmatprep.subr.mxu0 0.0
    %994 = vmatpush1.msra.mxu0 0.0
    %995 = vmatprep.subr.mxu0 0.0
    %996 = vmatpush1.msra.mxu0 0.0
    %997 = vmatprep.subr.mxu0 0.0
    %998 = vmatpush1.msra.mxu0 0.0
    %999 = vmatprep.subr.mxu0 0.0
    %1000 = vmatpush1.msra.mxu0 0.0
    %1001 = vmatprep.subr.mxu0 0.0
    %1002 = vmatpush1.msra.mxu0 0.0
    %1003 = vmatprep.subr.mxu0 0.0
    %1004 = vmatpush1.msra.mxu0 0.0
    %1005 = vmatprep.subr.mxu0 0.0
    %1006 = vmatpush1.msra.mxu0 0.0
    %1007 = vmatprep.subr.mxu0 0.0
    %1008 = vmatpush1.msra.mxu0 0.0
    %1009 = vmatprep.mubr.f32.mxu0 0.0
    %1010 = vmatmul.mubr.f32.gmra.mrb[0].mxu0 %v872
    %v1011 = vpop.f32.mrb[0].mxu0
    %v1012 = vadd.f32 0.0, %v1011
    %v1013 = vpop.f32.mrb[0].mxu0
    %1014 = vdwg.mxu0
    %v1015 = vadd.f32 %v868, %v941
    %v1016 = vxor.u32 %v1015, 2147483648
    %v1017 = vmul.f32 %v1016, 1.442695
    %v1018 = vpow.pop %v1017
    %v1019 = vadd.f32 %v1018, 1.0
    %v1020 = vrcp.pop %v1019
    %v1021 = vmul.f32 1.0, %v1020
    %v1022 = vadd.f32 %v869, %v943
    %v1023 = vxor.u32 %v1022, 2147483648
    %v1024 = vmul.f32 %v1023, 1.442695
    %v1025 = vpow.pop %v1024
    %v1026 = vadd.f32 %v1025, 1.0
    %v1027 = vrcp.pop %v1026
    %v1028 = vmul.f32 1.0, %v1027
    %v1029 = vadd.f32 %v1012, %v352
    %v1030 = vmul.f32 %v1021, %v1029
    %v1031 = vadd.f32 %v870, %v1030
    %v1032 = vtanh.pop %v1031
    %v1033 = vsub.f32 %v864, %v1032
    %v1034 = vmul.f32 %v1028, %v1033
    %v1035 = vadd.f32 %v1032, %v1034
    %s1036 = scalar_lea.vmem [#allocation2], 24
    %1037 = vst.msk [vmem:[%s1036] sm:$0xff] %vm358, %v1035
    %s1038 = scalar_lea.vmem [#allocation3], 96
    %v1039 = vld [vmem:[%s1038] sm:$0xff]
    %v1040 = vld [vmem:[%s1038 + $0x8] sm:$0xff]
    %v1041 = vld [vmem:[%s1038 + $0x10] sm:$0xff]
    %v1043 = vsel %vm358, %v1035, 0
    %1045 = vmatprep.subr.mxu0 %v336
    %1046 = vmatpush1.msra.mxu0 %v335
    %1047 = vmatprep.subr.mxu0 %v339
    %1048 = vmatpush1.msra.mxu0 %v338
    %1049 = vmatprep.subr.mxu0 %v342
    %1050 = vmatpush1.msra.mxu0 %v341
    %1051 = vmatprep.subr.mxu0 %v345
    %1052 = vmatpush1.msra.mxu0 %v344
    %1053 = vmatprep.subr.mxu0 0.0
    %1054 = vmatpush1.msra.mxu0 0.0
    %1055 = vmatprep.subr.mxu0 0.0
    %1056 = vmatpush1.msra.mxu0 0.0
    %1057 = vmatprep.subr.mxu0 0.0
    %1058 = vmatpush1.msra.mxu0 0.0
    %1059 = vmatprep.subr.mxu0 0.0
    %1060 = vmatpush1.msra.mxu0 0.0
    %1061 = vmatprep.subr.mxu0 0.0
    %1062 = vmatpush1.msra.mxu0 0.0
    %1063 = vmatprep.subr.mxu0 0.0
    %1064 = vmatpush1.msra.mxu0 0.0
    %1065 = vmatprep.subr.mxu0 0.0
    %1066 = vmatpush1.msra.mxu0 0.0
    %1067 = vmatprep.subr.mxu0 0.0
    %1068 = vmatpush1.msra.mxu0 0.0
    %1069 = vmatprep.subr.mxu0 0.0
    %1070 = vmatpush1.msra.mxu0 0.0
    %1071 = vmatprep.subr.mxu0 0.0
    %1072 = vmatpush1.msra.mxu0 0.0
    %1073 = vmatprep.subr.mxu0 0.0
    %1074 = vmatpush1.msra.mxu0 0.0
    %1075 = vmatprep.subr.mxu0 0.0
    %1076 = vmatpush1.msra.mxu0 0.0
    %1077 = vmatprep.subr.mxu0 0.0
    %1078 = vmatpush1.msra.mxu0 0.0
    %1079 = vmatprep.subr.mxu0 0.0
    %1080 = vmatpush1.msra.mxu0 0.0
    %1081 = vmatprep.subr.mxu0 0.0
    %1082 = vmatpush1.msra.mxu0 0.0
    %1083 = vmatprep.subr.mxu0 0.0
    %1084 = vmatpush1.msra.mxu0 0.0
    %1085 = vmatprep.subr.mxu0 0.0
    %1086 = vmatpush1.msra.mxu0 0.0
    %1087 = vmatprep.subr.mxu0 0.0
    %1088 = vmatpush1.msra.mxu0 0.0
    %1089 = vmatprep.subr.mxu0 0.0
    %1090 = vmatpush1.msra.mxu0 0.0
    %1091 = vmatprep.subr.mxu0 0.0
    %1092 = vmatpush1.msra.mxu0 0.0
    %1093 = vmatprep.subr.mxu0 0.0
    %1094 = vmatpush1.msra.mxu0 0.0
    %1095 = vmatprep.subr.mxu0 0.0
    %1096 = vmatpush1.msra.mxu0 0.0
    %1097 = vmatprep.subr.mxu0 0.0
    %1098 = vmatpush1.msra.mxu0 0.0
    %1099 = vmatprep.subr.mxu0 0.0
    %1100 = vmatpush1.msra.mxu0 0.0
    %1101 = vmatprep.subr.mxu0 0.0
    %1102 = vmatpush1.msra.mxu0 0.0
    %1103 = vmatprep.subr.mxu0 0.0
    %1104 = vmatpush1.msra.mxu0 0.0
    %1105 = vmatprep.subr.mxu0 0.0
    %1106 = vmatpush1.msra.mxu0 0.0
    %1107 = vmatprep.subr.mxu0 0.0
    %1108 = vmatpush1.msra.mxu0 0.0
    %1109 = vmatprep.mubr.f32.mxu0 0.0
    %1110 = vmatmul.mubr.f32.gmra.mrb[0].mxu0 %v1043
    %v1111 = vpop.f32.mrb[0].mxu0
    %v1112 = vadd.f32 0.0, %v1111
    %v1113 = vpop.f32.mrb[0].mxu0
    %v1114 = vadd.f32 0.0, %v1113
    %1115 = vdwg.mxu0
    %1116 = vmatprep.subr.mxu0 0.0
    %1117 = vmatpush1.msra.mxu0 %v337
    %1118 = vmatprep.subr.mxu0 0.0
    %1119 = vmatpush1.msra.mxu0 %v340
    %1120 = vmatprep.subr.mxu0 0.0
    %1121 = vmatpush1.msra.mxu0 %v343
    %1122 = vmatprep.subr.mxu0 0.0
    %1123 = vmatpush1.msra.mxu0 %v346
    %1124 = vmatprep.subr.mxu0 0.0
    %1125 = vmatpush1.msra.mxu0 0.0
    %1126 = vmatprep.subr.mxu0 0.0
    %1127 = vmatpush1.msra.mxu0 0.0
    %1128 = vmatprep.subr.mxu0 0.0
    %1129 = vmatpush1.msra.mxu0 0.0
    %1130 = vmatprep.subr.mxu0 0.0
    %1131 = vmatpush1.msra.mxu0 0.0
    %1132 = vmatprep.subr.mxu0 0.0
    %1133 = vmatpush1.msra.mxu0 0.0
    %1134 = vmatprep.subr.mxu0 0.0
    %1135 = vmatpush1.msra.mxu0 0.0
    %1136 = vmatprep.subr.mxu0 0.0
    %1137 = vmatpush1.msra.mxu0 0.0
    %1138 = vmatprep.subr.mxu0 0.0
    %1139 = vmatpush1.msra.mxu0 0.0
    %1140 = vmatprep.subr.mxu0 0.0
    %1141 = vmatpush1.msra.mxu0 0.0
    %1142 = vmatprep.subr.mxu0 0.0
    %1143 = vmatpush1.msra.mxu0 0.0
    %1144 = vmatprep.subr.mxu0 0.0
    %1145 = vmatpush1.msra.mxu0 0.0
    %1146 = vmatprep.subr.mxu0 0.0
    %1147 = vmatpush1.msra.mxu0 0.0
    %1148 = vmatprep.subr.mxu0 0.0
    %1149 = vmatpush1.msra.mxu0 0.0
    %1150 = vmatprep.subr.mxu0 0.0
    %1151 = vmatpush1.msra.mxu0 0.0
    %1152 = vmatprep.subr.mxu0 0.0
    %1153 = vmatpush1.msra.mxu0 0.0
    %1154 = vmatprep.subr.mxu0 0.0
    %1155 = vmatpush1.msra.mxu0 0.0
    %1156 = vmatprep.subr.mxu0 0.0
    %1157 = vmatpush1.msra.mxu0 0.0
    %1158 = vmatprep.subr.mxu0 0.0
    %1159 = vmatpush1.msra.mxu0 0.0
    %1160 = vmatprep.subr.mxu0 0.0
    %1161 = vmatpush1.msra.mxu0 0.0
    %1162 = vmatprep.subr.mxu0 0.0
    %1163 = vmatpush1.msra.mxu0 0.0
    %1164 = vmatprep.subr.mxu0 0.0
    %1165 = vmatpush1.msra.mxu0 0.0
    %1166 = vmatprep.subr.mxu0 0.0
    %1167 = vmatpush1.msra.mxu0 0.0
    %1168 = vmatprep.subr.mxu0 0.0
    %1169 = vmatpush1.msra.mxu0 0.0
    %1170 = vmatprep.subr.mxu0 0.0
    %1171 = vmatpush1.msra.mxu0 0.0
    %1172 = vmatprep.subr.mxu0 0.0
    %1173 = vmatpush1.msra.mxu0 0.0
    %1174 = vmatprep.subr.mxu0 0.0
    %1175 = vmatpush1.msra.mxu0 0.0
    %1176 = vmatprep.subr.mxu0 0.0
    %1177 = vmatpush1.msra.mxu0 0.0
    %1178 = vmatprep.subr.mxu0 0.0
    %1179 = vmatpush1.msra.mxu0 0.0
    %1180 = vmatprep.mubr.f32.mxu0 0.0
    %1181 = vmatmul.mubr.f32.gmra.mrb[0].mxu0 %v1043
    %v1182 = vpop.f32.mrb[0].mxu0
    %v1183 = vadd.f32 0.0, %v1182
    %v1184 = vpop.f32.mrb[0].mxu0
    %1185 = vdwg.mxu0
    %v1186 = vadd.f32 %v1039, %v1112
    %v1187 = vxor.u32 %v1186, 2147483648
    %v1188 = vmul.f32 %v1187, 1.442695
    %v1189 = vpow.pop %v1188
    %v1190 = vadd.f32 %v1189, 1.0
    %v1191 = vrcp.pop %v1190
    %v1192 = vmul.f32 1.0, %v1191
    %v1193 = vadd.f32 %v1040, %v1114
    %v1194 = vxor.u32 %v1193, 2147483648
    %v1195 = vmul.f32 %v1194, 1.442695
    %v1196 = vpow.pop %v1195
    %v1197 = vadd.f32 %v1196, 1.0
    %v1198 = vrcp.pop %v1197
    %v1199 = vmul.f32 1.0, %v1198
    %v1200 = vadd.f32 %v1183, %v352
    %v1201 = vmul.f32 %v1192, %v1200
    %v1202 = vadd.f32 %v1041, %v1201
    %v1203 = vtanh.pop %v1202
    %v1204 = vsub.f32 %v1035, %v1203
    %v1205 = vmul.f32 %v1199, %v1204
    %v1206 = vadd.f32 %v1203, %v1205
    %s1207 = scalar_lea.vmem [#allocation2], 32
    %1208 = vst.msk [vmem:[%s1207] sm:$0xff] %vm358, %v1206
    %s1209 = scalar_lea.vmem [#allocation3], 120
    %v1210 = vld [vmem:[%s1209] sm:$0xff]
    %v1211 = vld [vmem:[%s1209 + $0x8] sm:$0xff]
    %v1212 = vld [vmem:[%s1209 + $0x10] sm:$0xff]
    %v1214 = vsel %vm358, %v1206, 0
    %1216 = vmatprep.subr.mxu0 %v336
    %1217 = vmatpush1.msra.mxu0 %v335
    %1218 = vmatprep.subr.mxu0 %v339
    %1219 = vmatpush1.msra.mxu0 %v338
    %1220 = vmatprep.subr.mxu0 %v342
    %1221 = vmatpush1.msra.mxu0 %v341
    %1222 = vmatprep.subr.mxu0 %v345
    %1223 = vmatpush1.msra.mxu0 %v344
    %1224 = vmatprep.subr.mxu0 0.0
    %1225 = vmatpush1.msra.mxu0 0.0
    %1226 = vmatprep.subr.mxu0 0.0
    %1227 = vmatpush1.msra.mxu0 0.0
    %1228 = vmatprep.subr.mxu0 0.0
    %1229 = vmatpush1.msra.mxu0 0.0
    %1230 = vmatprep.subr.mxu0 0.0
    %1231 = vmatpush1.msra.mxu0 0.0
    %1232 = vmatprep.subr.mxu0 0.0
    %1233 = vmatpush1.msra.mxu0 0.0
    %1234 = vmatprep.subr.mxu0 0.0
    %1235 = vmatpush1.msra.mxu0 0.0
    %1236 = vmatprep.subr.mxu0 0.0
    %1237 = vmatpush1.msra.mxu0 0.0
    %1238 = vmatprep.subr.mxu0 0.0
    %1239 = vmatpush1.msra.mxu0 0.0
    %1240 = vmatprep.subr.mxu0 0.0
    %1241 = vmatpush1.msra.mxu0 0.0
    %1242 = vmatprep.subr.mxu0 0.0
    %1243 = vmatpush1.msra.mxu0 0.0
    %1244 = vmatprep.subr.mxu0 0.0
    %1245 = vmatpush1.msra.mxu0 0.0
    %1246 = vmatprep.subr.mxu0 0.0
    %1247 = vmatpush1.msra.mxu0 0.0
    %1248 = vmatprep.subr.mxu0 0.0
    %1249 = vmatpush1.msra.mxu0 0.0
    %1250 = vmatprep.subr.mxu0 0.0
    %1251 = vmatpush1.msra.mxu0 0.0
    %1252 = vmatprep.subr.mxu0 0.0
    %1253 = vmatpush1.msra.mxu0 0.0
    %1254 = vmatprep.subr.mxu0 0.0
    %1255 = vmatpush1.msra.mxu0 0.0
    %1256 = vmatprep.subr.mxu0 0.0
    %1257 = vmatpush1.msra.mxu0 0.0
    %1258 = vmatprep.subr.mxu0 0.0
    %1259 = vmatpush1.msra.mxu0 0.0
    %1260 = vmatprep.subr.mxu0 0.0
    %1261 = vmatpush1.msra.mxu0 0.0
    %1262 = vmatprep.subr.mxu0 0.0
    %1263 = vmatpush1.msra.mxu0 0.0
    %1264 = vmatprep.subr.mxu0 0.0
    %1265 = vmatpush1.msra.mxu0 0.0
    %1266 = vmatprep.subr.mxu0 0.0
    %1267 = vmatpush1.msra.mxu0 0.0
    %1268 = vmatprep.subr.mxu0 0.0
    %1269 = vmatpush1.msra.mxu0 0.0
    %1270 = vmatprep.subr.mxu0 0.0
    %1271 = vmatpush1.msra.mxu0 0.0
    %1272 = vmatprep.subr.mxu0 0.0
    %1273 = vmatpush1.msra.mxu0 0.0
    %1274 = vmatprep.subr.mxu0 0.0
    %1275 = vmatpush1.msra.mxu0 0.0
    %1276 = vmatprep.subr.mxu0 0.0
    %1277 = vmatpush1.msra.mxu0 0.0
    %1278 = vmatprep.subr.mxu0 0.0
    %1279 = vmatpush1.msra.mxu0 0.0
    %1280 = vmatprep.mubr.f32.mxu0 0.0
    %1281 = vmatmul.mubr.f32.gmra.mrb[0].mxu0 %v1214
    %v1282 = vpop.f32.mrb[0].mxu0
    %v1283 = vadd.f32 0.0, %v1282
    %v1284 = vpop.f32.mrb[0].mxu0
    %v1285 = vadd.f32 0.0, %v1284
    %1286 = vdwg.mxu0
    %1287 = vmatprep.subr.mxu0 0.0
    %1288 = vmatpush1.msra.mxu0 %v337
    %1289 = vmatprep.subr.mxu0 0.0
    %1290 = vmatpush1.msra.mxu0 %v340
    %1291 = vmatprep.subr.mxu0 0.0
    %1292 = vmatpush1.msra.mxu0 %v343
    %1293 = vmatprep.subr.mxu0 0.0
    %1294 = vmatpush1.msra.mxu0 %v346
    %1295 = vmatprep.subr.mxu0 0.0
    %1296 = vmatpush1.msra.mxu0 0.0
    %1297 = vmatprep.subr.mxu0 0.0
    %1298 = vmatpush1.msra.mxu0 0.0
    %1299 = vmatprep.subr.mxu0 0.0
    %1300 = vmatpush1.msra.mxu0 0.0
    %1301 = vmatprep.subr.mxu0 0.0
    %1302 = vmatpush1.msra.mxu0 0.0
    %1303 = vmatprep.subr.mxu0 0.0
    %1304 = vmatpush1.msra.mxu0 0.0
    %1305 = vmatprep.subr.mxu0 0.0
    %1306 = vmatpush1.msra.mxu0 0.0
    %1307 = vmatprep.subr.mxu0 0.0
    %1308 = vmatpush1.msra.mxu0 0.0
    %1309 = vmatprep.subr.mxu0 0.0
    %1310 = vmatpush1.msra.mxu0 0.0
    %1311 = vmatprep.subr.mxu0 0.0
    %1312 = vmatpush1.msra.mxu0 0.0
    %1313 = vmatprep.subr.mxu0 0.0
    %1314 = vmatpush1.msra.mxu0 0.0
    %1315 = vmatprep.subr.mxu0 0.0
    %1316 = vmatpush1.msra.mxu0 0.0
    %1317 = vmatprep.subr.mxu0 0.0
    %1318 = vmatpush1.msra.mxu0 0.0
    %1319 = vmatprep.subr.mxu0 0.0
    %1320 = vmatpush1.msra.mxu0 0.0
    %1321 = vmatprep.subr.mxu0 0.0
    %1322 = vmatpush1.msra.mxu0 0.0
    %1323 = vmatprep.subr.mxu0 0.0
    %1324 = vmatpush1.msra.mxu0 0.0
    %1325 = vmatprep.subr.mxu0 0.0
    %1326 = vmatpush1.msra.mxu0 0.0
    %1327 = vmatprep.subr.mxu0 0.0
    %1328 = vmatpush1.msra.mxu0 0.0
    %1329 = vmatprep.subr.mxu0 0.0
    %1330 = vmatpush1.msra.mxu0 0.0
    %1331 = vmatprep.subr.mxu0 0.0
    %1332 = vmatpush1.msra.mxu0 0.0
    %1333 = vmatprep.subr.mxu0 0.0
    %1334 = vmatpush1.msra.mxu0 0.0
    %1335 = vmatprep.subr.mxu0 0.0
    %1336 = vmatpush1.msra.mxu0 0.0
    %1337 = vmatprep.subr.mxu0 0.0
    %1338 = vmatpush1.msra.mxu0 0.0
    %1339 = vmatprep.subr.mxu0 0.0
    %1340 = vmatpush1.msra.mxu0 0.0
    %1341 = vmatprep.subr.mxu0 0.0
    %1342 = vmatpush1.msra.mxu0 0.0
    %1343 = vmatprep.subr.mxu0 0.0
    %1344 = vmatpush1.msra.mxu0 0.0
    %1345 = vmatprep.subr.mxu0 0.0
    %1346 = vmatpush1.msra.mxu0 0.0
    %1347 = vmatprep.subr.mxu0 0.0
    %1348 = vmatpush1.msra.mxu0 0.0
    %1349 = vmatprep.subr.mxu0 0.0
    %1350 = vmatpush1.msra.mxu0 0.0
    %1351 = vmatprep.mubr.f32.mxu0 0.0
    %1352 = vmatmul.mubr.f32.gmra.mrb[0].mxu0 %v1214
    %v1353 = vpop.f32.mrb[0].mxu0
    %v1354 = vadd.f32 0.0, %v1353
    %v1355 = vpop.f32.mrb[0].mxu0
    %1356 = vdwg.mxu0
    %v1357 = vadd.f32 %v1210, %v1283
    %v1358 = vxor.u32 %v1357, 2147483648
    %v1359 = vmul.f32 %v1358, 1.442695
    %v1360 = vpow.pop %v1359
    %v1361 = vadd.f32 %v1360, 1.0
    %v1362 = vrcp.pop %v1361
    %v1363 = vmul.f32 1.0, %v1362
    %v1364 = vadd.f32 %v1211, %v1285
    %v1365 = vxor.u32 %v1364, 2147483648
    %v1366 = vmul.f32 %v1365, 1.442695
    %v1367 = vpow.pop %v1366
    %v1368 = vadd.f32 %v1367, 1.0
    %v1369 = vrcp.pop %v1368
    %v1370 = vmul.f32 1.0, %v1369
    %v1371 = vadd.f32 %v1354, %v352
    %v1372 = vmul.f32 %v1363, %v1371
    %v1373 = vadd.f32 %v1212, %v1372
    %v1374 = vtanh.pop %v1373
    %v1375 = vsub.f32 %v1206, %v1374
    %v1376 = vmul.f32 %v1370, %v1375
    %v1377 = vadd.f32 %v1374, %v1376
    %s1378 = scalar_lea.vmem [#allocation2], 40
    %1379 = vst.msk [vmem:[%s1378] sm:$0xff] %vm358, %v1377
    %s1380 = scalar_lea.vmem [#allocation3], 144
    %v1381 = vld [vmem:[%s1380] sm:$0xff]
    %v1382 = vld [vmem:[%s1380 + $0x8] sm:$0xff]
    %v1383 = vld [vmem:[%s1380 + $0x10] sm:$0xff]
    %v1385 = vsel %vm358, %v1377, 0
    %1387 = vmatprep.subr.mxu0 %v336
    %1388 = vmatpush1.msra.mxu0 %v335
    %1389 = vmatprep.subr.mxu0 %v339
    %1390 = vmatpush1.msra.mxu0 %v338
    %1391 = vmatprep.subr.mxu0 %v342
    %1392 = vmatpush1.msra.mxu0 %v341
    %1393 = vmatprep.subr.mxu0 %v345
    %1394 = vmatpush1.msra.mxu0 %v344
    %1395 = vmatprep.subr.mxu0 0.0
    %1396 = vmatpush1.msra.mxu0 0.0
    %1397 = vmatprep.subr.mxu0 0.0
    %1398 = vmatpush1.msra.mxu0 0.0
    %1399 = vmatprep.subr.mxu0 0.0
    %1400 = vmatpush1.msra.mxu0 0.0
    %1401 = vmatprep.subr.mxu0 0.0
    %1402 = vmatpush1.msra.mxu0 0.0
    %1403 = vmatprep.subr.mxu0 0.0
    %1404 = vmatpush1.msra.mxu0 0.0
    %1405 = vmatprep.subr.mxu0 0.0
    %1406 = vmatpush1.msra.mxu0 0.0
    %1407 = vmatprep.subr.mxu0 0.0
    %1408 = vmatpush1.msra.mxu0 0.0
    %1409 = vmatprep.subr.mxu0 0.0
    %1410 = vmatpush1.msra.mxu0 0.0
    %1411 = vmatprep.subr.mxu0 0.0
    %1412 = vmatpush1.msra.mxu0 0.0
    %1413 = vmatprep.subr.mxu0 0.0
    %1414 = vmatpush1.msra.mxu0 0.0
    %1415 = vmatprep.subr.mxu0 0.0
    %1416 = vmatpush1.msra.mxu0 0.0
    %1417 = vmatprep.subr.mxu0 0.0
    %1418 = vmatpush1.msra.mxu0 0.0
    %1419 = vmatprep.subr.mxu0 0.0
    %1420 = vmatpush1.msra.mxu0 0.0
    %1421 = vmatprep.subr.mxu0 0.0
    %1422 = vmatpush1.msra.mxu0 0.0
    %1423 = vmatprep.subr.mxu0 0.0
    %1424 = vmatpush1.msra.mxu0 0.0
    %1425 = vmatprep.subr.mxu0 0.0
    %1426 = vmatpush1.msra.mxu0 0.0
    %1427 = vmatprep.subr.mxu0 0.0
    %1428 = vmatpush1.msra.mxu0 0.0
    %1429 = vmatprep.subr.mxu0 0.0
    %1430 = vmatpush1.msra.mxu0 0.0
    %1431 = vmatprep.subr.mxu0 0.0
    %1432 = vmatpush1.msra.mxu0 0.0
    %1433 = vmatprep.subr.mxu0 0.0
    %1434 = vmatpush1.msra.mxu0 0.0
    %1435 = vmatprep.subr.mxu0 0.0
    %1436 = vmatpush1.msra.mxu0 0.0
    %1437 = vmatprep.subr.mxu0 0.0
    %1438 = vmatpush1.msra.mxu0 0.0
    %1439 = vmatprep.subr.mxu0 0.0
    %1440 = vmatpush1.msra.mxu0 0.0
    %1441 = vmatprep.subr.mxu0 0.0
    %1442 = vmatpush1.msra.mxu0 0.0
    %1443 = vmatprep.subr.mxu0 0.0
    %1444 = vmatpush1.msra.mxu0 0.0
    %1445 = vmatprep.subr.mxu0 0.0
    %1446 = vmatpush1.msra.mxu0 0.0
    %1447 = vmatprep.subr.mxu0 0.0
    %1448 = vmatpush1.msra.mxu0 0.0
    %1449 = vmatprep.subr.mxu0 0.0
    %1450 = vmatpush1.msra.mxu0 0.0
    %1451 = vmatprep.mubr.f32.mxu0 0.0
    %1452 = vmatmul.mubr.f32.gmra.mrb[0].mxu0 %v1385
    %v1453 = vpop.f32.mrb[0].mxu0
    %v1454 = vadd.f32 0.0, %v1453
    %v1455 = vpop.f32.mrb[0].mxu0
    %v1456 = vadd.f32 0.0, %v1455
    %1457 = vdwg.mxu0
    %1458 = vmatprep.subr.mxu0 0.0
    %1459 = vmatpush1.msra.mxu0 %v337
    %1460 = vmatprep.subr.mxu0 0.0
    %1461 = vmatpush1.msra.mxu0 %v340
    %1462 = vmatprep.subr.mxu0 0.0
    %1463 = vmatpush1.msra.mxu0 %v343
    %1464 = vmatprep.subr.mxu0 0.0
    %1465 = vmatpush1.msra.mxu0 %v346
    %1466 = vmatprep.subr.mxu0 0.0
    %1467 = vmatpush1.msra.mxu0 0.0
    %1468 = vmatprep.subr.mxu0 0.0
    %1469 = vmatpush1.msra.mxu0 0.0
    %1470 = vmatprep.subr.mxu0 0.0
    %1471 = vmatpush1.msra.mxu0 0.0
    %1472 = vmatprep.subr.mxu0 0.0
    %1473 = vmatpush1.msra.mxu0 0.0
    %1474 = vmatprep.subr.mxu0 0.0
    %1475 = vmatpush1.msra.mxu0 0.0
    %1476 = vmatprep.subr.mxu0 0.0
    %1477 = vmatpush1.msra.mxu0 0.0
    %1478 = vmatprep.subr.mxu0 0.0
    %1479 = vmatpush1.msra.mxu0 0.0
    %1480 = vmatprep.subr.mxu0 0.0
    %1481 = vmatpush1.msra.mxu0 0.0
    %1482 = vmatprep.subr.mxu0 0.0
    %1483 = vmatpush1.msra.mxu0 0.0
    %1484 = vmatprep.subr.mxu0 0.0
    %1485 = vmatpush1.msra.mxu0 0.0
    %1486 = vmatprep.subr.mxu0 0.0
    %1487 = vmatpush1.msra.mxu0 0.0
    %1488 = vmatprep.subr.mxu0 0.0
    %1489 = vmatpush1.msra.mxu0 0.0
    %1490 = vmatprep.subr.mxu0 0.0
    %1491 = vmatpush1.msra.mxu0 0.0
    %1492 = vmatprep.subr.mxu0 0.0
    %1493 = vmatpush1.msra.mxu0 0.0
    %1494 = vmatprep.subr.mxu0 0.0
    %1495 = vmatpush1.msra.mxu0 0.0
    %1496 = vmatprep.subr.mxu0 0.0
    %1497 = vmatpush1.msra.mxu0 0.0
    %1498 = vmatprep.subr.mxu0 0.0
    %1499 = vmatpush1.msra.mxu0 0.0
    %1500 = vmatprep.subr.mxu0 0.0
    %1501 = vmatpush1.msra.mxu0 0.0
    %1502 = vmatprep.subr.mxu0 0.0
    %1503 = vmatpush1.msra.mxu0 0.0
    %1504 = vmatprep.subr.mxu0 0.0
    %1505 = vmatpush1.msra.mxu0 0.0
    %1506 = vmatprep.subr.mxu0 0.0
    %1507 = vmatpush1.msra.mxu0 0.0
    %1508 = vmatprep.subr.mxu0 0.0
    %1509 = vmatpush1.msra.mxu0 0.0
    %1510 = vmatprep.subr.mxu0 0.0
    %1511 = vmatpush1.msra.mxu0 0.0
    %1512 = vmatprep.subr.mxu0 0.0
    %1513 = vmatpush1.msra.mxu0 0.0
    %1514 = vmatprep.subr.mxu0 0.0
    %1515 = vmatpush1.msra.mxu0 0.0
    %1516 = vmatprep.subr.mxu0 0.0
    %1517 = vmatpush1.msra.mxu0 0.0
    %1518 = vmatprep.subr.mxu0 0.0
    %1519 = vmatpush1.msra.mxu0 0.0
    %1520 = vmatprep.subr.mxu0 0.0
    %1521 = vmatpush1.msra.mxu0 0.0
    %1522 = vmatprep.mubr.f32.mxu0 0.0
    %1523 = vmatmul.mubr.f32.gmra.mrb[0].mxu0 %v1385
    %v1524 = vpop.f32.mrb[0].mxu0
    %v1525 = vadd.f32 0.0, %v1524
    %v1526 = vpop.f32.mrb[0].mxu0
    %1527 = vdwg.mxu0
    %v1528 = vadd.f32 %v1381, %v1454
    %v1529 = vxor.u32 %v1528, 2147483648
    %v1530 = vmul.f32 %v1529, 1.442695
    %v1531 = vpow.pop %v1530
    %v1532 = vadd.f32 %v1531, 1.0
    %v1533 = vrcp.pop %v1532
    %v1534 = vmul.f32 1.0, %v1533
    %v1535 = vadd.f32 %v1382, %v1456
    %v1536 = vxor.u32 %v1535, 2147483648
    %v1537 = vmul.f32 %v1536, 1.442695
    %v1538 = vpow.pop %v1537
    %v1539 = vadd.f32 %v1538, 1.0
    %v1540 = vrcp.pop %v1539
    %v1541 = vmul.f32 1.0, %v1540
    %v1542 = vadd.f32 %v1525, %v352
    %v1543 = vmul.f32 %v1534, %v1542
    %v1544 = vadd.f32 %v1383, %v1543
    %v1545 = vtanh.pop %v1544
    %v1546 = vsub.f32 %v1377, %v1545
    %v1547 = vmul.f32 %v1541, %v1546
    %v1548 = vadd.f32 %v1545, %v1547
    %s1549 = scalar_lea.vmem [#allocation2], 48
    %1550 = vst.msk [vmem:[%s1549] sm:$0xff] %vm358, %v1548
    %s1551 = scalar_lea.vmem [#allocation3], 168
    %v1552 = vld [vmem:[%s1551] sm:$0xff]
    %v1553 = vld [vmem:[%s1551 + $0x8] sm:$0xff]
    %v1554 = vld [vmem:[%s1551 + $0x10] sm:$0xff]
    %v1556 = vsel %vm358, %v1548, 0
    %1558 = vmatprep.subr.mxu0 %v336
    %1559 = vmatpush1.msra.mxu0 %v335
    %1560 = vmatprep.subr.mxu0 %v339
    %1561 = vmatpush1.msra.mxu0 %v338
    %1562 = vmatprep.subr.mxu0 %v342
    %1563 = vmatpush1.msra.mxu0 %v341
    %1564 = vmatprep.subr.mxu0 %v345
    %1565 = vmatpush1.msra.mxu0 %v344
    %1566 = vmatprep.subr.mxu0 0.0
    %1567 = vmatpush1.msra.mxu0 0.0
    %1568 = vmatprep.subr.mxu0 0.0
    %1569 = vmatpush1.msra.mxu0 0.0
    %1570 = vmatprep.subr.mxu0 0.0
    %1571 = vmatpush1.msra.mxu0 0.0
    %1572 = vmatprep.subr.mxu0 0.0
    %1573 = vmatpush1.msra.mxu0 0.0
    %1574 = vmatprep.subr.mxu0 0.0
    %1575 = vmatpush1.msra.mxu0 0.0
    %1576 = vmatprep.subr.mxu0 0.0
    %1577 = vmatpush1.msra.mxu0 0.0
    %1578 = vmatprep.subr.mxu0 0.0
    %1579 = vmatpush1.msra.mxu0 0.0
    %1580 = vmatprep.subr.mxu0 0.0
    %1581 = vmatpush1.msra.mxu0 0.0
    %1582 = vmatprep.subr.mxu0 0.0
    %1583 = vmatpush1.msra.mxu0 0.0
    %1584 = vmatprep.subr.mxu0 0.0
    %1585 = vmatpush1.msra.mxu0 0.0
    %1586 = vmatprep.subr.mxu0 0.0
    %1587 = vmatpush1.msra.mxu0 0.0
    %1588 = vmatprep.subr.mxu0 0.0
    %1589 = vmatpush1.msra.mxu0 0.0
    %1590 = vmatprep.subr.mxu0 0.0
    %1591 = vmatpush1.msra.mxu0 0.0
    %1592 = vmatprep.subr.mxu0 0.0
    %1593 = vmatpush1.msra.mxu0 0.0
    %1594 = vmatprep.subr.mxu0 0.0
    %1595 = vmatpush1.msra.mxu0 0.0
    %1596 = vmatprep.subr.mxu0 0.0
    %1597 = vmatpush1.msra.mxu0 0.0
    %1598 = vmatprep.subr.mxu0 0.0
    %1599 = vmatpush1.msra.mxu0 0.0
    %1600 = vmatprep.subr.mxu0 0.0
    %1601 = vmatpush1.msra.mxu0 0.0
    %1602 = vmatprep.subr.mxu0 0.0
    %1603 = vmatpush1.msra.mxu0 0.0
    %1604 = vmatprep.subr.mxu0 0.0
    %1605 = vmatpush1.msra.mxu0 0.0
    %1606 = vmatprep.subr.mxu0 0.0
    %1607 = vmatpush1.msra.mxu0 0.0
    %1608 = vmatprep.subr.mxu0 0.0
    %1609 = vmatpush1.msra.mxu0 0.0
    %1610 = vmatprep.subr.mxu0 0.0
    %1611 = vmatpush1.msra.mxu0 0.0
    %1612 = vmatprep.subr.mxu0 0.0
    %1613 = vmatpush1.msra.mxu0 0.0
    %1614 = vmatprep.subr.mxu0 0.0
    %1615 = vmatpush1.msra.mxu0 0.0
    %1616 = vmatprep.subr.mxu0 0.0
    %1617 = vmatpush1.msra.mxu0 0.0
    %1618 = vmatprep.subr.mxu0 0.0
    %1619 = vmatpush1.msra.mxu0 0.0
    %1620 = vmatprep.subr.mxu0 0.0
    %1621 = vmatpush1.msra.mxu0 0.0
    %1622 = vmatprep.mubr.f32.mxu0 0.0
    %1623 = vmatmul.mubr.f32.gmra.mrb[0].mxu0 %v1556
    %v1624 = vpop.f32.mrb[0].mxu0
    %v1625 = vadd.f32 0.0, %v1624
    %v1626 = vpop.f32.mrb[0].mxu0
    %v1627 = vadd.f32 0.0, %v1626
    %1628 = vdwg.mxu0
    %1629 = vmatprep.subr.mxu0 0.0
    %1630 = vmatpush1.msra.mxu0 %v337
    %1631 = vmatprep.subr.mxu0 0.0
    %1632 = vmatpush1.msra.mxu0 %v340
    %1633 = vmatprep.subr.mxu0 0.0
    %1634 = vmatpush1.msra.mxu0 %v343
    %1635 = vmatprep.subr.mxu0 0.0
    %1636 = vmatpush1.msra.mxu0 %v346
    %1637 = vmatprep.subr.mxu0 0.0
    %1638 = vmatpush1.msra.mxu0 0.0
    %1639 = vmatprep.subr.mxu0 0.0
    %1640 = vmatpush1.msra.mxu0 0.0
    %1641 = vmatprep.subr.mxu0 0.0
    %1642 = vmatpush1.msra.mxu0 0.0
    %1643 = vmatprep.subr.mxu0 0.0
    %1644 = vmatpush1.msra.mxu0 0.0
    %1645 = vmatprep.subr.mxu0 0.0
    %1646 = vmatpush1.msra.mxu0 0.0
    %1647 = vmatprep.subr.mxu0 0.0
    %1648 = vmatpush1.msra.mxu0 0.0
    %1649 = vmatprep.subr.mxu0 0.0
    %1650 = vmatpush1.msra.mxu0 0.0
    %1651 = vmatprep.subr.mxu0 0.0
    %1652 = vmatpush1.msra.mxu0 0.0
    %1653 = vmatprep.subr.mxu0 0.0
    %1654 = vmatpush1.msra.mxu0 0.0
    %1655 = vmatprep.subr.mxu0 0.0
    %1656 = vmatpush1.msra.mxu0 0.0
    %1657 = vmatprep.subr.mxu0 0.0
    %1658 = vmatpush1.msra.mxu0 0.0
    %1659 = vmatprep.subr.mxu0 0.0
    %1660 = vmatpush1.msra.mxu0 0.0
    %1661 = vmatprep.subr.mxu0 0.0
    %1662 = vmatpush1.msra.mxu0 0.0
    %1663 = vmatprep.subr.mxu0 0.0
    %1664 = vmatpush1.msra.mxu0 0.0
    %1665 = vmatprep.subr.mxu0 0.0
    %1666 = vmatpush1.msra.mxu0 0.0
    %1667 = vmatprep.subr.mxu0 0.0
    %1668 = vmatpush1.msra.mxu0 0.0
    %1669 = vmatprep.subr.mxu0 0.0
    %1670 = vmatpush1.msra.mxu0 0.0
    %1671 = vmatprep.subr.mxu0 0.0
    %1672 = vmatpush1.msra.mxu0 0.0
    %1673 = vmatprep.subr.mxu0 0.0
    %1674 = vmatpush1.msra.mxu0 0.0
    %1675 = vmatprep.subr.mxu0 0.0
    %1676 = vmatpush1.msra.mxu0 0.0
    %1677 = vmatprep.subr.mxu0 0.0
    %1678 = vmatpush1.msra.mxu0 0.0
    %1679 = vmatprep.subr.mxu0 0.0
    %1680 = vmatpush1.msra.mxu0 0.0
    %1681 = vmatprep.subr.mxu0 0.0
    %1682 = vmatpush1.msra.mxu0 0.0
    %1683 = vmatprep.subr.mxu0 0.0
    %1684 = vmatpush1.msra.mxu0 0.0
    %1685 = vmatprep.subr.mxu0 0.0
    %1686 = vmatpush1.msra.mxu0 0.0
    %1687 = vmatprep.subr.mxu0 0.0
    %1688 = vmatpush1.msra.mxu0 0.0
    %1689 = vmatprep.subr.mxu0 0.0
    %1690 = vmatpush1.msra.mxu0 0.0
    %1691 = vmatprep.subr.mxu0 0.0
    %1692 = vmatpush1.msra.mxu0 0.0
    %1693 = vmatprep.mubr.f32.mxu0 0.0
    %1694 = vmatmul.mubr.f32.gmra.mrb[0].mxu0 %v1556
    %v1695 = vpop.f32.mrb[0].mxu0
    %v1696 = vadd.f32 0.0, %v1695
    %v1697 = vpop.f32.mrb[0].mxu0
    %1698 = vdwg.mxu0
    %v1699 = vadd.f32 %v1552, %v1625
    %v1700 = vxor.u32 %v1699, 2147483648
    %v1701 = vmul.f32 %v1700, 1.442695
    %v1702 = vpow.pop %v1701
    %v1703 = vadd.f32 %v1702, 1.0
    %v1704 = vrcp.pop %v1703
    %v1705 = vmul.f32 1.0, %v1704
    %v1706 = vadd.f32 %v1553, %v1627
    %v1707 = vxor.u32 %v1706, 2147483648
    %v1708 = vmul.f32 %v1707, 1.442695
    %v1709 = vpow.pop %v1708
    %v1710 = vadd.f32 %v1709, 1.0
    %v1711 = vrcp.pop %v1710
    %v1712 = vmul.f32 1.0, %v1711
    %v1713 = vadd.f32 %v1696, %v352
    %v1714 = vmul.f32 %v1705, %v1713
    %v1715 = vadd.f32 %v1554, %v1714
    %v1716 = vtanh.pop %v1715
    %v1717 = vsub.f32 %v1548, %v1716
    %v1718 = vmul.f32 %v1712, %v1717
    %v1719 = vadd.f32 %v1716, %v1718
    %s1720 = scalar_lea.vmem [#allocation2], 56
    %1721 = vst.msk [vmem:[%s1720] sm:$0xff] %vm358, %v1719
    %1722 = vst.msk [vmem:[%s7] sm:$0xff] %vm358, %v1719
    %v1723 = vld [vmem:[#allocation2] sm:$0xff]
    %v1724 = vld [vmem:[#allocation2 + $0x8] sm:$0xff]
    %v1725 = vld [vmem:[#allocation2 + $0x10] sm:$0xff]
    %v1726 = vld [vmem:[#allocation2 + $0x18] sm:$0xff]
    %v1727 = vld [vmem:[#allocation2 + $0x20] sm:$0xff]
    %v1728 = vld [vmem:[#allocation2 + $0x28] sm:$0xff]
    %v1729 = vld [vmem:[#allocation2 + $0x30] sm:$0xff]
    %v1730 = vld [vmem:[#allocation2 + $0x38] sm:$0xff]
    %v1731 = vld [vmem:[#allocation4] sm:$0xff]
    %v1732 = vld [vmem:[#allocation4 + $0x8] sm:$0xff]
    %v1733 = vld [vmem:[#allocation4 + $0x10] sm:$0xff]
    %v1734 = vld [vmem:[#allocation4 + $0x18] sm:$0xff]
    %v1735 = vld [vmem:[#allocation4 + $0x20] sm:$0xff]
    %v1736 = vld [vmem:[#allocation4 + $0x28] sm:$0xff]
    %v1737 = vld [vmem:[#allocation4 + $0x30] sm:$0xff]
    %v1738 = vld [vmem:[#allocation4 + $0x38] sm:$0xff]
    %v1739 = vld [vmem:[#allocation4 + $0x40] sm:$0xff]
    %v1740 = vld [vmem:[#allocation4 + $0x48] sm:$0xff]
    %v1741 = vld [vmem:[#allocation4 + $0x50] sm:$0xff]
    %v1742 = vld [vmem:[#allocation4 + $0x58] sm:$0xff]
    %s1743 = scalar_lea.vmem %s5, 3
    %v1744 = vld [vmem:[%s1743] sm:$0x7]
    %v1746 = vlaneseq
    %v1747 = vshrl.u32 %v1746, 7
    %v1748 = vsub.s32 0, %v1747
    %v1749 = vrot.slane %v1744, %v1748
    %v1750 = vlaneseq
    %v1751 = vshrl.u32 %v1750, 7
    %v1752 = vsub.s32 1, %v1751
    %v1753 = vrot.slane %v1744, %v1752
    %v1754 = vlaneseq
    %v1755 = vshrl.u32 %v1754, 7
    %v1756 = vsub.s32 2, %v1755
    %v1757 = vrot.slane %v1744, %v1756
    %v1762 = vsel %vm358, %v1723, 0
    %v1765 = vsel %vm358, %v1724, 0
    %v1768 = vsel %vm358, %v1725, 0
    %v1771 = vsel %vm358, %v1726, 0
    %v1774 = vsel %vm358, %v1727, 0
    %v1777 = vsel %vm358, %v1728, 0
    %v1780 = vsel %vm358, %v1729, 0
    %v1783 = vsel %vm358, %v1730, 0
    %1785 = vmatprep.subr.mxu0 %v1732
    %1786 = vmatpush1.msra.mxu0 %v1731
    %1787 = vmatprep.subr.mxu0 %v1735
    %1788 = vmatpush1.msra.mxu0 %v1734
    %1789 = vmatprep.subr.mxu0 %v1738
    %1790 = vmatpush1.msra.mxu0 %v1737
    %1791 = vmatprep.subr.mxu0 %v1741
    %1792 = vmatpush1.msra.mxu0 %v1740
    %1793 = vmatprep.subr.mxu0 0.0
    %1794 = vmatpush1.msra.mxu0 0.0
    %1795 = vmatprep.subr.mxu0 0.0
    %1796 = vmatpush1.msra.mxu0 0.0
    %1797 = vmatprep.subr.mxu0 0.0
    %1798 = vmatpush1.msra.mxu0 0.0
    %1799 = vmatprep.subr.mxu0 0.0
    %1800 = vmatpush1.msra.mxu0 0.0
    %1801 = vmatprep.subr.mxu0 0.0
    %1802 = vmatpush1.msra.mxu0 0.0
    %1803 = vmatprep.subr.mxu0 0.0
    %1804 = vmatpush1.msra.mxu0 0.0
    %1805 = vmatprep.subr.mxu0 0.0
    %1806 = vmatpush1.msra.mxu0 0.0
    %1807 = vmatprep.subr.mxu0 0.0
    %1808 = vmatpush1.msra.mxu0 0.0
    %1809 = vmatprep.subr.mxu0 0.0
    %1810 = vmatpush1.msra.mxu0 0.0
    %1811 = vmatprep.subr.mxu0 0.0
    %1812 = vmatpush1.msra.mxu0 0.0
    %1813 = vmatprep.subr.mxu0 0.0
    %1814 = vmatpush1.msra.mxu0 0.0
    %1815 = vmatprep.subr.mxu0 0.0
    %1816 = vmatpush1.msra.mxu0 0.0
    %1817 = vmatprep.subr.mxu0 0.0
    %1818 = vmatpush1.msra.mxu0 0.0
    %1819 = vmatprep.subr.mxu0 0.0
    %1820 = vmatpush1.msra.mxu0 0.0
    %1821 = vmatprep.subr.mxu0 0.0
    %1822 = vmatpush1.msra.mxu0 0.0
    %1823 = vmatprep.subr.mxu0 0.0
    %1824 = vmatpush1.msra.mxu0 0.0
    %1825 = vmatprep.subr.mxu0 0.0
    %1826 = vmatpush1.msra.mxu0 0.0
    %1827 = vmatprep.subr.mxu0 0.0
    %1828 = vmatpush1.msra.mxu0 0.0
    %1829 = vmatprep.subr.mxu0 0.0
    %1830 = vmatpush1.msra.mxu0 0.0
    %1831 = vmatprep.subr.mxu0 0.0
    %1832 = vmatpush1.msra.mxu0 0.0
    %1833 = vmatprep.subr.mxu0 0.0
    %1834 = vmatpush1.msra.mxu0 0.0
    %1835 = vmatprep.subr.mxu0 0.0
    %1836 = vmatpush1.msra.mxu0 0.0
    %1837 = vmatprep.subr.mxu0 0.0
    %1838 = vmatpush1.msra.mxu0 0.0
    %1839 = vmatprep.subr.mxu0 0.0
    %1840 = vmatpush1.msra.mxu0 0.0
    %1841 = vmatprep.subr.mxu0 0.0
    %1842 = vmatpush1.msra.mxu0 0.0
    %1843 = vmatprep.subr.mxu0 0.0
    %1844 = vmatpush1.msra.mxu0 0.0
    %1845 = vmatprep.subr.mxu0 0.0
    %1846 = vmatpush1.msra.mxu0 0.0
    %1847 = vmatprep.subr.mxu0 0.0
    %1848 = vmatpush1.msra.mxu0 0.0
    %1849 = vmatprep.mubr.f32.mxu0 0.0
    %1850 = vmatmul.mubr.f32.gmra.mrb[0].mxu0 %v1762
    %v1851 = vpop.f32.mrb[0].mxu0
    %v1852 = vadd.f32 %v1749, %v1851
    %v1853 = vpop.f32.mrb[0].mxu0
    %v1854 = vadd.f32 %v1753, %v1853
    %1855 = vmatprep.mubr.f32.mxu0 0.0
    %1856 = vmatmul.mubr.f32.gmra.mrb[0].mxu0 %v1765
    %v1857 = vpop.f32.mrb[0].mxu0
    %v1858 = vadd.f32 %v1749, %v1857
    %v1859 = vpop.f32.mrb[0].mxu0
    %v1860 = vadd.f32 %v1753, %v1859
    %1861 = vmatprep.mubr.f32.mxu0 0.0
    %1862 = vmatmul.mubr.f32.gmra.mrb[0].mxu0 %v1768
    %v1863 = vpop.f32.mrb[0].mxu0
    %v1864 = vadd.f32 %v1749, %v1863
    %v1865 = vpop.f32.mrb[0].mxu0
    %v1866 = vadd.f32 %v1753, %v1865
    %1867 = vmatprep.mubr.f32.mxu0 0.0
    %1868 = vmatmul.mubr.f32.gmra.mrb[0].mxu0 %v1771
    %v1869 = vpop.f32.mrb[0].mxu0
    %v1870 = vadd.f32 %v1749, %v1869
    %v1871 = vpop.f32.mrb[0].mxu0
    %v1872 = vadd.f32 %v1753, %v1871
    %1873 = vmatprep.mubr.f32.mxu0 0.0
    %1874 = vmatmul.mubr.f32.gmra.mrb[0].mxu0 %v1774
    %v1875 = vpop.f32.mrb[0].mxu0
    %v1876 = vadd.f32 %v1749, %v1875
    %v1877 = vpop.f32.mrb[0].mxu0
    %v1878 = vadd.f32 %v1753, %v1877
    %1879 = vmatprep.mubr.f32.mxu0 0.0
    %1880 = vmatmul.mubr.f32.gmra.mrb[0].mxu0 %v1777
    %v1881 = vpop.f32.mrb[0].mxu0
    %v1882 = vadd.f32 %v1749, %v1881
    %v1883 = vpop.f32.mrb[0].mxu0
    %v1884 = vadd.f32 %v1753, %v1883
    %1885 = vmatprep.mubr.f32.mxu0 0.0
    %1886 = vmatmul.mubr.f32.gmra.mrb[0].mxu0 %v1780
    %v1887 = vpop.f32.mrb[0].mxu0
    %v1888 = vadd.f32 %v1749, %v1887
    %v1889 = vpop.f32.mrb[0].mxu0
    %v1890 = vadd.f32 %v1753, %v1889
    %1891 = vmatprep.mubr.f32.mxu0 0.0
    %1892 = vmatmul.mubr.f32.gmra.mrb[0].mxu0 %v1783
    %v1893 = vpop.f32.mrb[0].mxu0
    %v1894 = vadd.f32 %v1749, %v1893
    %v1895 = vpop.f32.mrb[0].mxu0
    %v1896 = vadd.f32 %v1753, %v1895
    %1897 = vdwg.mxu0
    %1898 = vmatprep.subr.mxu0 0.0
    %1899 = vmatpush1.msra.mxu0 %v1733
    %1900 = vmatprep.subr.mxu0 0.0
    %1901 = vmatpush1.msra.mxu0 %v1736
    %1902 = vmatprep.subr.mxu0 0.0
    %1903 = vmatpush1.msra.mxu0 %v1739
    %1904 = vmatprep.subr.mxu0 0.0
    %1905 = vmatpush1.msra.mxu0 %v1742
    %1906 = vmatprep.subr.mxu0 0.0
    %1907 = vmatpush1.msra.mxu0 0.0
    %1908 = vmatprep.subr.mxu0 0.0
    %1909 = vmatpush1.msra.mxu0 0.0
    %1910 = vmatprep.subr.mxu0 0.0
    %1911 = vmatpush1.msra.mxu0 0.0
    %1912 = vmatprep.subr.mxu0 0.0
    %1913 = vmatpush1.msra.mxu0 0.0
    %1914 = vmatprep.subr.mxu0 0.0
    %1915 = vmatpush1.msra.mxu0 0.0
    %1916 = vmatprep.subr.mxu0 0.0
    %1917 = vmatpush1.msra.mxu0 0.0
    %1918 = vmatprep.subr.mxu0 0.0
    %1919 = vmatpush1.msra.mxu0 0.0
    %1920 = vmatprep.subr.mxu0 0.0
    %1921 = vmatpush1.msra.mxu0 0.0
    %1922 = vmatprep.subr.mxu0 0.0
    %1923 = vmatpush1.msra.mxu0 0.0
    %1924 = vmatprep.subr.mxu0 0.0
    %1925 = vmatpush1.msra.mxu0 0.0
    %1926 = vmatprep.subr.mxu0 0.0
    %1927 = vmatpush1.msra.mxu0 0.0
    %1928 = vmatprep.subr.mxu0 0.0
    %1929 = vmatpush1.msra.mxu0 0.0
    %1930 = vmatprep.subr.mxu0 0.0
    %1931 = vmatpush1.msra.mxu0 0.0
    %1932 = vmatprep.subr.mxu0 0.0
    %1933 = vmatpush1.msra.mxu0 0.0
    %1934 = vmatprep.subr.mxu0 0.0
    %1935 = vmatpush1.msra.mxu0 0.0
    %1936 = vmatprep.subr.mxu0 0.0
    %1937 = vmatpush1.msra.mxu0 0.0
    %1938 = vmatprep.subr.mxu0 0.0
    %1939 = vmatpush1.msra.mxu0 0.0
    %1940 = vmatprep.subr.mxu0 0.0
    %1941 = vmatpush1.msra.mxu0 0.0
    %1942 = vmatprep.subr.mxu0 0.0
    %1943 = vmatpush1.msra.mxu0 0.0
    %1944 = vmatprep.subr.mxu0 0.0
    %1945 = vmatpush1.msra.mxu0 0.0
    %1946 = vmatprep.subr.mxu0 0.0
    %1947 = vmatpush1.msra.mxu0 0.0
    %1948 = vmatprep.subr.mxu0 0.0
    %1949 = vmatpush1.msra.mxu0 0.0
    %1950 = vmatprep.subr.mxu0 0.0
    %1951 = vmatpush1.msra.mxu0 0.0
    %1952 = vmatprep.subr.mxu0 0.0
    %1953 = vmatpush1.msra.mxu0 0.0
    %1954 = vmatprep.subr.mxu0 0.0
    %1955 = vmatpush1.msra.mxu0 0.0
    %1956 = vmatprep.subr.mxu0 0.0
    %1957 = vmatpush1.msra.mxu0 0.0
    %1958 = vmatprep.subr.mxu0 0.0
    %1959 = vmatpush1.msra.mxu0 0.0
    %1960 = vmatprep.subr.mxu0 0.0
    %1961 = vmatpush1.msra.mxu0 0.0
    %1962 = vmatprep.mubr.f32.mxu0 0.0
    %1963 = vmatmul.mubr.f32.gmra.mrb[0].mxu0 %v1762
    %v1964 = vpop.f32.mrb[0].mxu0
    %v1965 = vadd.f32 %v1757, %v1964
    %v1966 = vpop.f32.mrb[0].mxu0
    %1967 = vmatprep.mubr.f32.mxu0 0.0
    %1968 = vmatmul.mubr.f32.gmra.mrb[0].mxu0 %v1765
    %v1969 = vpop.f32.mrb[0].mxu0
    %v1970 = vadd.f32 %v1757, %v1969
    %v1971 = vpop.f32.mrb[0].mxu0
    %1972 = vmatprep.mubr.f32.mxu0 0.0
    %1973 = vmatmul.mubr.f32.gmra.mrb[0].mxu0 %v1768
    %v1974 = vpop.f32.mrb[0].mxu0
    %v1975 = vadd.f32 %v1757, %v1974
    %v1976 = vpop.f32.mrb[0].mxu0
    %1977 = vmatprep.mubr.f32.mxu0 0.0
    %1978 = vmatmul.mubr.f32.gmra.mrb[0].mxu0 %v1771
    %v1979 = vpop.f32.mrb[0].mxu0
    %v1980 = vadd.f32 %v1757, %v1979
    %v1981 = vpop.f32.mrb[0].mxu0
    %1982 = vmatprep.mubr.f32.mxu0 0.0
    %1983 = vmatmul.mubr.f32.gmra.mrb[0].mxu0 %v1774
    %v1984 = vpop.f32.mrb[0].mxu0
    %v1985 = vadd.f32 %v1757, %v1984
    %v1986 = vpop.f32.mrb[0].mxu0
    %1987 = vmatprep.mubr.f32.mxu0 0.0
    %1988 = vmatmul.mubr.f32.gmra.mrb[0].mxu0 %v1777
    %v1989 = vpop.f32.mrb[0].mxu0
    %v1990 = vadd.f32 %v1757, %v1989
    %v1991 = vpop.f32.mrb[0].mxu0
    %1992 = vmatprep.mubr.f32.mxu0 0.0
    %1993 = vmatmul.mubr.f32.gmra.mrb[0].mxu0 %v1780
    %v1994 = vpop.f32.mrb[0].mxu0
    %v1995 = vadd.f32 %v1757, %v1994
    %v1996 = vpop.f32.mrb[0].mxu0
    %1997 = vmatprep.mubr.f32.mxu0 0.0
    %1998 = vmatmul.mubr.f32.gmra.mrb[0].mxu0 %v1783
    %v1999 = vpop.f32.mrb[0].mxu0
    %v2000 = vadd.f32 %v1757, %v1999
    %v2001 = vpop.f32.mrb[0].mxu0
    %2002 = vdwg.mxu0
    %2003 = vst [vmem:[#allocation3] sm:$0xff] %v1852
    %2004 = vst [vmem:[#allocation3 + $0x8] sm:$0xff] %v1854
    %2005 = vst [vmem:[#allocation3 + $0x10] sm:$0xff] %v1965
    %2006 = vst [vmem:[#allocation3 + $0x18] sm:$0xff] %v1858
    %2007 = vst [vmem:[#allocation3 + $0x20] sm:$0xff] %v1860
    %2008 = vst [vmem:[#allocation3 + $0x28] sm:$0xff] %v1970
    %2009 = vst [vmem:[#allocation3 + $0x30] sm:$0xff] %v1864
    %2010 = vst [vmem:[#allocation3 + $0x38] sm:$0xff] %v1866
    %2011 = vst [vmem:[#allocation3 + $0x40] sm:$0xff] %v1975
    %2012 = vst [vmem:[#allocation3 + $0x48] sm:$0xff] %v1870
    %2013 = vst [vmem:[#allocation3 + $0x50] sm:$0xff] %v1872
    %2014 = vst [vmem:[#allocation3 + $0x58] sm:$0xff] %v1980
    %2015 = vst [vmem:[#allocation3 + $0x60] sm:$0xff] %v1876
    %2016 = vst [vmem:[#allocation3 + $0x68] sm:$0xff] %v1878
    %2017 = vst [vmem:[#allocation3 + $0x70] sm:$0xff] %v1985
    %2018 = vst [vmem:[#allocation3 + $0x78] sm:$0xff] %v1882
    %2019 = vst [vmem:[#allocation3 + $0x80] sm:$0xff] %v1884
    %2020 = vst [vmem:[#allocation3 + $0x88] sm:$0xff] %v1990
    %2021 = vst [vmem:[#allocation3 + $0x90] sm:$0xff] %v1888
    %2022 = vst [vmem:[#allocation3 + $0x98] sm:$0xff] %v1890
    %2023 = vst [vmem:[#allocation3 + $0xa0] sm:$0xff] %v1995
    %2024 = vst [vmem:[#allocation3 + $0xa8] sm:$0xff] %v1894
    %2025 = vst [vmem:[#allocation3 + $0xb0] sm:$0xff] %v1896
    %2026 = vst [vmem:[#allocation3 + $0xb8] sm:$0xff] %v2000
    %s2027 = scalar_lea.vmem %s4, 96
    %v2028 = vld [vmem:[%s2027] sm:$0xff]
    %v2029 = vld [vmem:[%s2027 + $0x8] sm:$0xff]
    %v2030 = vld [vmem:[%s2027 + $0x10] sm:$0xff]
    %v2031 = vld [vmem:[%s2027 + $0x18] sm:$0xff]
    %v2032 = vld [vmem:[%s2027 + $0x20] sm:$0xff]
    %v2033 = vld [vmem:[%s2027 + $0x28] sm:$0xff]
    %v2034 = vld [vmem:[%s2027 + $0x30] sm:$0xff]
    %v2035 = vld [vmem:[%s2027 + $0x38] sm:$0xff]
    %v2036 = vld [vmem:[%s2027 + $0x40] sm:$0xff]
    %v2037 = vld [vmem:[%s2027 + $0x48] sm:$0xff]
    %v2038 = vld [vmem:[%s2027 + $0x50] sm:$0xff]
    %v2039 = vld [vmem:[%s2027 + $0x58] sm:$0xff]
    %s2040 = scalar_lea.vmem %s6, 1
    %v2041 = vld [vmem:[%s2040] sm:$0x1]
    %v2043 = vlaneseq
    %v2044 = vshrl.u32 %v2043, 7
    %v2045 = vsub.s32 0, %v2044
    %v2046 = vrot.slane %v2041, %v2045
    %s2048 = scalar_lea.vmem %s1, 8
    %v2049 = vld [vmem:[%s2048] sm:$0xff]
    %v2050 = vld [vmem:[#allocation3] sm:$0xff]
    %v2051 = vld [vmem:[#allocation3 + $0x8] sm:$0xff]
    %v2052 = vld [vmem:[#allocation3 + $0x10] sm:$0xff]
    %v2054 = vsel %vm358, %v2049, 0
    %2056 = vmatprep.subr.mxu0 %v2029
    %2057 = vmatpush1.msra.mxu0 %v2028
    %2058 = vmatprep.subr.mxu0 %v2032
    %2059 = vmatpush1.msra.mxu0 %v2031
    %2060 = vmatprep.subr.mxu0 %v2035
    %2061 = vmatpush1.msra.mxu0 %v2034
    %2062 = vmatprep.subr.mxu0 %v2038
    %2063 = vmatpush1.msra.mxu0 %v2037
    %2064 = vmatprep.subr.mxu0 0.0
    %2065 = vmatpush1.msra.mxu0 0.0
    %2066 = vmatprep.subr.mxu0 0.0
    %2067 = vmatpush1.msra.mxu0 0.0
    %2068 = vmatprep.subr.mxu0 0.0
    %2069 = vmatpush1.msra.mxu0 0.0
    %2070 = vmatprep.subr.mxu0 0.0
    %2071 = vmatpush1.msra.mxu0 0.0
    %2072 = vmatprep.subr.mxu0 0.0
    %2073 = vmatpush1.msra.mxu0 0.0
    %2074 = vmatprep.subr.mxu0 0.0
    %2075 = vmatpush1.msra.mxu0 0.0
    %2076 = vmatprep.subr.mxu0 0.0
    %2077 = vmatpush1.msra.mxu0 0.0
    %2078 = vmatprep.subr.mxu0 0.0
    %2079 = vmatpush1.msra.mxu0 0.0
    %2080 = vmatprep.subr.mxu0 0.0
    %2081 = vmatpush1.msra.mxu0 0.0
    %2082 = vmatprep.subr.mxu0 0.0
    %2083 = vmatpush1.msra.mxu0 0.0
    %2084 = vmatprep.subr.mxu0 0.0
    %2085 = vmatpush1.msra.mxu0 0.0
    %2086 = vmatprep.subr.mxu0 0.0
    %2087 = vmatpush1.msra.mxu0 0.0
    %2088 = vmatprep.subr.mxu0 0.0
    %2089 = vmatpush1.msra.mxu0 0.0
    %2090 = vmatprep.subr.mxu0 0.0
    %2091 = vmatpush1.msra.mxu0 0.0
    %2092 = vmatprep.subr.mxu0 0.0
    %2093 = vmatpush1.msra.mxu0 0.0
    %2094 = vmatprep.subr.mxu0 0.0
    %2095 = vmatpush1.msra.mxu0 0.0
    %2096 = vmatprep.subr.mxu0 0.0
    %2097 = vmatpush1.msra.mxu0 0.0
    %2098 = vmatprep.subr.mxu0 0.0
    %2099 = vmatpush1.msra.mxu0 0.0
    %2100 = vmatprep.subr.mxu0 0.0
    %2101 = vmatpush1.msra.mxu0 0.0
    %2102 = vmatprep.subr.mxu0 0.0
    %2103 = vmatpush1.msra.mxu0 0.0
    %2104 = vmatprep.subr.mxu0 0.0
    %2105 = vmatpush1.msra.mxu0 0.0
    %2106 = vmatprep.subr.mxu0 0.0
    %2107 = vmatpush1.msra.mxu0 0.0
    %2108 = vmatprep.subr.mxu0 0.0
    %2109 = vmatpush1.msra.mxu0 0.0
    %2110 = vmatprep.subr.mxu0 0.0
    %2111 = vmatpush1.msra.mxu0 0.0
    %2112 = vmatprep.subr.mxu0 0.0
    %2113 = vmatpush1.msra.mxu0 0.0
    %2114 = vmatprep.subr.mxu0 0.0
    %2115 = vmatpush1.msra.mxu0 0.0
    %2116 = vmatprep.subr.mxu0 0.0
    %2117 = vmatpush1.msra.mxu0 0.0
    %2118 = vmatprep.subr.mxu0 0.0
    %2119 = vmatpush1.msra.mxu0 0.0
    %2120 = vmatprep.mubr.f32.mxu0 0.0
    %2121 = vmatmul.mubr.f32.gmra.mrb[0].mxu0 %v2054
    %v2122 = vpop.f32.mrb[0].mxu0
    %v2123 = vadd.f32 0.0, %v2122
    %v2124 = vpop.f32.mrb[0].mxu0
    %v2125 = vadd.f32 0.0, %v2124
    %2126 = vdwg.mxu0
    %2127 = vmatprep.subr.mxu0 0.0
    %2128 = vmatpush1.msra.mxu0 %v2030
    %2129 = vmatprep.subr.mxu0 0.0
    %2130 = vmatpush1.msra.mxu0 %v2033
    %2131 = vmatprep.subr.mxu0 0.0
    %2132 = vmatpush1.msra.mxu0 %v2036
    %2133 = vmatprep.subr.mxu0 0.0
    %2134 = vmatpush1.msra.mxu0 %v2039
    %2135 = vmatprep.subr.mxu0 0.0
    %2136 = vmatpush1.msra.mxu0 0.0
    %2137 = vmatprep.subr.mxu0 0.0
    %2138 = vmatpush1.msra.mxu0 0.0
    %2139 = vmatprep.subr.mxu0 0.0
    %2140 = vmatpush1.msra.mxu0 0.0
    %2141 = vmatprep.subr.mxu0 0.0
    %2142 = vmatpush1.msra.mxu0 0.0
    %2143 = vmatprep.subr.mxu0 0.0
    %2144 = vmatpush1.msra.mxu0 0.0
    %2145 = vmatprep.subr.mxu0 0.0
    %2146 = vmatpush1.msra.mxu0 0.0
    %2147 = vmatprep.subr.mxu0 0.0
    %2148 = vmatpush1.msra.mxu0 0.0
    %2149 = vmatprep.subr.mxu0 0.0
    %2150 = vmatpush1.msra.mxu0 0.0
    %2151 = vmatprep.subr.mxu0 0.0
    %2152 = vmatpush1.msra.mxu0 0.0
    %2153 = vmatprep.subr.mxu0 0.0
    %2154 = vmatpush1.msra.mxu0 0.0
    %2155 = vmatprep.subr.mxu0 0.0
    %2156 = vmatpush1.msra.mxu0 0.0
    %2157 = vmatprep.subr.mxu0 0.0
    %2158 = vmatpush1.msra.mxu0 0.0
    %2159 = vmatprep.subr.mxu0 0.0
    %2160 = vmatpush1.msra.mxu0 0.0
    %2161 = vmatprep.subr.mxu0 0.0
    %2162 = vmatpush1.msra.mxu0 0.0
    %2163 = vmatprep.subr.mxu0 0.0
    %2164 = vmatpush1.msra.mxu0 0.0
    %2165 = vmatprep.subr.mxu0 0.0
    %2166 = vmatpush1.msra.mxu0 0.0
    %2167 = vmatprep.subr.mxu0 0.0
    %2168 = vmatpush1.msra.mxu0 0.0
    %2169 = vmatprep.subr.mxu0 0.0
    %2170 = vmatpush1.msra.mxu0 0.0
    %2171 = vmatprep.subr.mxu0 0.0
    %2172 = vmatpush1.msra.mxu0 0.0
    %2173 = vmatprep.subr.mxu0 0.0
    %2174 = vmatpush1.msra.mxu0 0.0
    %2175 = vmatprep.subr.mxu0 0.0
    %2176 = vmatpush1.msra.mxu0 0.0
    %2177 = vmatprep.subr.mxu0 0.0
    %2178 = vmatpush1.msra.mxu0 0.0
    %2179 = vmatprep.subr.mxu0 0.0
    %2180 = vmatpush1.msra.mxu0 0.0
    %2181 = vmatprep.subr.mxu0 0.0
    %2182 = vmatpush1.msra.mxu0 0.0
    %2183 = vmatprep.subr.mxu0 0.0
    %2184 = vmatpush1.msra.mxu0 0.0
    %2185 = vmatprep.subr.mxu0 0.0
    %2186 = vmatpush1.msra.mxu0 0.0
    %2187 = vmatprep.subr.mxu0 0.0
    %2188 = vmatpush1.msra.mxu0 0.0
    %2189 = vmatprep.subr.mxu0 0.0
    %2190 = vmatpush1.msra.mxu0 0.0
    %2191 = vmatprep.mubr.f32.mxu0 0.0
    %2192 = vmatmul.mubr.f32.gmra.mrb[0].mxu0 %v2054
    %v2193 = vpop.f32.mrb[0].mxu0
    %v2194 = vadd.f32 0.0, %v2193
    %v2195 = vpop.f32.mrb[0].mxu0
    %2196 = vdwg.mxu0
    %v2197 = vadd.f32 %v2050, %v2123
    %v2198 = vxor.u32 %v2197, 2147483648
    %v2199 = vmul.f32 %v2198, 1.442695
    %v2200 = vpow.pop %v2199
    %v2201 = vadd.f32 %v2200, 1.0
    %v2202 = vrcp.pop %v2201
    %v2203 = vmul.f32 1.0, %v2202
    %v2204 = vadd.f32 %v2051, %v2125
    %v2205 = vxor.u32 %v2204, 2147483648
    %v2206 = vmul.f32 %v2205, 1.442695
    %v2207 = vpow.pop %v2206
    %v2208 = vadd.f32 %v2207, 1.0
    %v2209 = vrcp.pop %v2208
    %v2210 = vmul.f32 1.0, %v2209
    %v2211 = vadd.f32 %v2194, %v2046
    %v2212 = vmul.f32 %v2203, %v2211
    %v2213 = vadd.f32 %v2052, %v2212
    %v2214 = vtanh.pop %v2213
    %v2215 = vsub.f32 %v2049, %v2214
    %v2216 = vmul.f32 %v2210, %v2215
    %v2217 = vadd.f32 %v2214, %v2216
    %v2218 = vld [vmem:[%s525] sm:$0xff]
    %v2219 = vld [vmem:[%s525 + $0x8] sm:$0xff]
    %v2220 = vld [vmem:[%s525 + $0x10] sm:$0xff]
    %v2222 = vsel %vm358, %v2217, 0
    %2224 = vmatprep.subr.mxu0 %v2029
    %2225 = vmatpush1.msra.mxu0 %v2028
    %2226 = vmatprep.subr.mxu0 %v2032
    %2227 = vmatpush1.msra.mxu0 %v2031
    %2228 = vmatprep.subr.mxu0 %v2035
    %2229 = vmatpush1.msra.mxu0 %v2034
    %2230 = vmatprep.subr.mxu0 %v2038
    %2231 = vmatpush1.msra.mxu0 %v2037
    %2232 = vmatprep.subr.mxu0 0.0
    %2233 = vmatpush1.msra.mxu0 0.0
    %2234 = vmatprep.subr.mxu0 0.0
    %2235 = vmatpush1.msra.mxu0 0.0
    %2236 = vmatprep.subr.mxu0 0.0
    %2237 = vmatpush1.msra.mxu0 0.0
    %2238 = vmatprep.subr.mxu0 0.0
    %2239 = vmatpush1.msra.mxu0 0.0
    %2240 = vmatprep.subr.mxu0 0.0
    %2241 = vmatpush1.msra.mxu0 0.0
    %2242 = vmatprep.subr.mxu0 0.0
    %2243 = vmatpush1.msra.mxu0 0.0
    %2244 = vmatprep.subr.mxu0 0.0
    %2245 = vmatpush1.msra.mxu0 0.0
    %2246 = vmatprep.subr.mxu0 0.0
    %2247 = vmatpush1.msra.mxu0 0.0
    %2248 = vmatprep.subr.mxu0 0.0
    %2249 = vmatpush1.msra.mxu0 0.0
    %2250 = vmatprep.subr.mxu0 0.0
    %2251 = vmatpush1.msra.mxu0 0.0
    %2252 = vmatprep.subr.mxu0 0.0
    %2253 = vmatpush1.msra.mxu0 0.0
    %2254 = vmatprep.subr.mxu0 0.0
    %2255 = vmatpush1.msra.mxu0 0.0
    %2256 = vmatprep.subr.mxu0 0.0
    %2257 = vmatpush1.msra.mxu0 0.0
    %2258 = vmatprep.subr.mxu0 0.0
    %2259 = vmatpush1.msra.mxu0 0.0
    %2260 = vmatprep.subr.mxu0 0.0
    %2261 = vmatpush1.msra.mxu0 0.0
    %2262 = vmatprep.subr.mxu0 0.0
    %2263 = vmatpush1.msra.mxu0 0.0
    %2264 = vmatprep.subr.mxu0 0.0
    %2265 = vmatpush1.msra.mxu0 0.0
    %2266 = vmatprep.subr.mxu0 0.0
    %2267 = vmatpush1.msra.mxu0 0.0
    %2268 = vmatprep.subr.mxu0 0.0
    %2269 = vmatpush1.msra.mxu0 0.0
    %2270 = vmatprep.subr.mxu0 0.0
    %2271 = vmatpush1.msra.mxu0 0.0
    %2272 = vmatprep.subr.mxu0 0.0
    %2273 = vmatpush1.msra.mxu0 0.0
    %2274 = vmatprep.subr.mxu0 0.0
    %2275 = vmatpush1.msra.mxu0 0.0
    %2276 = vmatprep.subr.mxu0 0.0
    %2277 = vmatpush1.msra.mxu0 0.0
    %2278 = vmatprep.subr.mxu0 0.0
    %2279 = vmatpush1.msra.mxu0 0.0
    %2280 = vmatprep.subr.mxu0 0.0
    %2281 = vmatpush1.msra.mxu0 0.0
    %2282 = vmatprep.subr.mxu0 0.0
    %2283 = vmatpush1.msra.mxu0 0.0
    %2284 = vmatprep.subr.mxu0 0.0
    %2285 = vmatpush1.msra.mxu0 0.0
    %2286 = vmatprep.subr.mxu0 0.0
    %2287 = vmatpush1.msra.mxu0 0.0
    %2288 = vmatprep.mubr.f32.mxu0 0.0
    %2289 = vmatmul.mubr.f32.gmra.mrb[0].mxu0 %v2222
    %v2290 = vpop.f32.mrb[0].mxu0
    %v2291 = vadd.f32 0.0, %v2290
    %v2292 = vpop.f32.mrb[0].mxu0
    %v2293 = vadd.f32 0.0, %v2292
    %2294 = vdwg.mxu0
    %2295 = vmatprep.subr.mxu0 0.0
    %2296 = vmatpush1.msra.mxu0 %v2030
    %2297 = vmatprep.subr.mxu0 0.0
    %2298 = vmatpush1.msra.mxu0 %v2033
    %2299 = vmatprep.subr.mxu0 0.0
    %2300 = vmatpush1.msra.mxu0 %v2036
    %2301 = vmatprep.subr.mxu0 0.0
    %2302 = vmatpush1.msra.mxu0 %v2039
    %2303 = vmatprep.subr.mxu0 0.0
    %2304 = vmatpush1.msra.mxu0 0.0
    %2305 = vmatprep.subr.mxu0 0.0
    %2306 = vmatpush1.msra.mxu0 0.0
    %2307 = vmatprep.subr.mxu0 0.0
    %2308 = vmatpush1.msra.mxu0 0.0
    %2309 = vmatprep.subr.mxu0 0.0
    %2310 = vmatpush1.msra.mxu0 0.0
    %2311 = vmatprep.subr.mxu0 0.0
    %2312 = vmatpush1.msra.mxu0 0.0
    %2313 = vmatprep.subr.mxu0 0.0
    %2314 = vmatpush1.msra.mxu0 0.0
    %2315 = vmatprep.subr.mxu0 0.0
    %2316 = vmatpush1.msra.mxu0 0.0
    %2317 = vmatprep.subr.mxu0 0.0
    %2318 = vmatpush1.msra.mxu0 0.0
    %2319 = vmatprep.subr.mxu0 0.0
    %2320 = vmatpush1.msra.mxu0 0.0
    %2321 = vmatprep.subr.mxu0 0.0
    %2322 = vmatpush1.msra.mxu0 0.0
    %2323 = vmatprep.subr.mxu0 0.0
    %2324 = vmatpush1.msra.mxu0 0.0
    %2325 = vmatprep.subr.mxu0 0.0
    %2326 = vmatpush1.msra.mxu0 0.0
    %2327 = vmatprep.subr.mxu0 0.0
    %2328 = vmatpush1.msra.mxu0 0.0
    %2329 = vmatprep.subr.mxu0 0.0
    %2330 = vmatpush1.msra.mxu0 0.0
    %2331 = vmatprep.subr.mxu0 0.0
    %2332 = vmatpush1.msra.mxu0 0.0
    %2333 = vmatprep.subr.mxu0 0.0
    %2334 = vmatpush1.msra.mxu0 0.0
    %2335 = vmatprep.subr.mxu0 0.0
    %2336 = vmatpush1.msra.mxu0 0.0
    %2337 = vmatprep.subr.mxu0 0.0
    %2338 = vmatpush1.msra.mxu0 0.0
    %2339 = vmatprep.subr.mxu0 0.0
    %2340 = vmatpush1.msra.mxu0 0.0
    %2341 = vmatprep.subr.mxu0 0.0
    %2342 = vmatpush1.msra.mxu0 0.0
    %2343 = vmatprep.subr.mxu0 0.0
    %2344 = vmatpush1.msra.mxu0 0.0
    %2345 = vmatprep.subr.mxu0 0.0
    %2346 = vmatpush1.msra.mxu0 0.0
    %2347 = vmatprep.subr.mxu0 0.0
    %2348 = vmatpush1.msra.mxu0 0.0
    %2349 = vmatprep.subr.mxu0 0.0
    %2350 = vmatpush1.msra.mxu0 0.0
    %2351 = vmatprep.subr.mxu0 0.0
    %2352 = vmatpush1.msra.mxu0 0.0
    %2353 = vmatprep.subr.mxu0 0.0
    %2354 = vmatpush1.msra.mxu0 0.0
    %2355 = vmatprep.subr.mxu0 0.0
    %2356 = vmatpush1.msra.mxu0 0.0
    %2357 = vmatprep.subr.mxu0 0.0
    %2358 = vmatpush1.msra.mxu0 0.0
    %2359 = vmatprep.mubr.f32.mxu0 0.0
    %2360 = vmatmul.mubr.f32.gmra.mrb[0].mxu0 %v2222
    %v2361 = vpop.f32.mrb[0].mxu0
    %v2362 = vadd.f32 0.0, %v2361
    %v2363 = vpop.f32.mrb[0].mxu0
    %2364 = vdwg.mxu0
    %v2365 = vadd.f32 %v2218, %v2291
    %v2366 = vxor.u32 %v2365, 2147483648
    %v2367 = vmul.f32 %v2366, 1.442695
    %v2368 = vpow.pop %v2367
    %v2369 = vadd.f32 %v2368, 1.0
    %v2370 = vrcp.pop %v2369
    %v2371 = vmul.f32 1.0, %v2370
    %v2372 = vadd.f32 %v2219, %v2293
    %v2373 = vxor.u32 %v2372, 2147483648
    %v2374 = vmul.f32 %v2373, 1.442695
    %v2375 = vpow.pop %v2374
    %v2376 = vadd.f32 %v2375, 1.0
    %v2377 = vrcp.pop %v2376
    %v2378 = vmul.f32 1.0, %v2377
    %v2379 = vadd.f32 %v2362, %v2046
    %v2380 = vmul.f32 %v2371, %v2379
    %v2381 = vadd.f32 %v2220, %v2380
    %v2382 = vtanh.pop %v2381
    %v2383 = vsub.f32 %v2217, %v2382
    %v2384 = vmul.f32 %v2378, %v2383
    %v2385 = vadd.f32 %v2382, %v2384
    %v2386 = vld [vmem:[%s696] sm:$0xff]
    %v2387 = vld [vmem:[%s696 + $0x8] sm:$0xff]
    %v2388 = vld [vmem:[%s696 + $0x10] sm:$0xff]
    %v2390 = vsel %vm358, %v2385, 0
    %2392 = vmatprep.subr.mxu0 %v2029
    %2393 = vmatpush1.msra.mxu0 %v2028
    %2394 = vmatprep.subr.mxu0 %v2032
    %2395 = vmatpush1.msra.mxu0 %v2031
    %2396 = vmatprep.subr.mxu0 %v2035
    %2397 = vmatpush1.msra.mxu0 %v2034
    %2398 = vmatprep.subr.mxu0 %v2038
    %2399 = vmatpush1.msra.mxu0 %v2037
    %2400 = vmatprep.subr.mxu0 0.0
    %2401 = vmatpush1.msra.mxu0 0.0
    %2402 = vmatprep.subr.mxu0 0.0
    %2403 = vmatpush1.msra.mxu0 0.0
    %2404 = vmatprep.subr.mxu0 0.0
    %2405 = vmatpush1.msra.mxu0 0.0
    %2406 = vmatprep.subr.mxu0 0.0
    %2407 = vmatpush1.msra.mxu0 0.0
    %2408 = vmatprep.subr.mxu0 0.0
    %2409 = vmatpush1.msra.mxu0 0.0
    %2410 = vmatprep.subr.mxu0 0.0
    %2411 = vmatpush1.msra.mxu0 0.0
    %2412 = vmatprep.subr.mxu0 0.0
    %2413 = vmatpush1.msra.mxu0 0.0
    %2414 = vmatprep.subr.mxu0 0.0
    %2415 = vmatpush1.msra.mxu0 0.0
    %2416 = vmatprep.subr.mxu0 0.0
    %2417 = vmatpush1.msra.mxu0 0.0
    %2418 = vmatprep.subr.mxu0 0.0
    %2419 = vmatpush1.msra.mxu0 0.0
    %2420 = vmatprep.subr.mxu0 0.0
    %2421 = vmatpush1.msra.mxu0 0.0
    %2422 = vmatprep.subr.mxu0 0.0
    %2423 = vmatpush1.msra.mxu0 0.0
    %2424 = vmatprep.subr.mxu0 0.0
    %2425 = vmatpush1.msra.mxu0 0.0
    %2426 = vmatprep.subr.mxu0 0.0
    %2427 = vmatpush1.msra.mxu0 0.0
    %2428 = vmatprep.subr.mxu0 0.0
    %2429 = vmatpush1.msra.mxu0 0.0
    %2430 = vmatprep.subr.mxu0 0.0
    %2431 = vmatpush1.msra.mxu0 0.0
    %2432 = vmatprep.subr.mxu0 0.0
    %2433 = vmatpush1.msra.mxu0 0.0
    %2434 = vmatprep.subr.mxu0 0.0
    %2435 = vmatpush1.msra.mxu0 0.0
    %2436 = vmatprep.subr.mxu0 0.0
    %2437 = vmatpush1.msra.mxu0 0.0
    %2438 = vmatprep.subr.mxu0 0.0
    %2439 = vmatpush1.msra.mxu0 0.0
    %2440 = vmatprep.subr.mxu0 0.0
    %2441 = vmatpush1.msra.mxu0 0.0
    %2442 = vmatprep.subr.mxu0 0.0
    %2443 = vmatpush1.msra.mxu0 0.0
    %2444 = vmatprep.subr.mxu0 0.0
    %2445 = vmatpush1.msra.mxu0 0.0
    %2446 = vmatprep.subr.mxu0 0.0
    %2447 = vmatpush1.msra.mxu0 0.0
    %2448 = vmatprep.subr.mxu0 0.0
    %2449 = vmatpush1.msra.mxu0 0.0
    %2450 = vmatprep.subr.mxu0 0.0
    %2451 = vmatpush1.msra.mxu0 0.0
    %2452 = vmatprep.subr.mxu0 0.0
    %2453 = vmatpush1.msra.mxu0 0.0
    %2454 = vmatprep.subr.mxu0 0.0
    %2455 = vmatpush1.msra.mxu0 0.0
    %2456 = vmatprep.mubr.f32.mxu0 0.0
    %2457 = vmatmul.mubr.f32.gmra.mrb[0].mxu0 %v2390
    %v2458 = vpop.f32.mrb[0].mxu0
    %v2459 = vadd.f32 0.0, %v2458
    %v2460 = vpop.f32.mrb[0].mxu0
    %v2461 = vadd.f32 0.0, %v2460
    %2462 = vdwg.mxu0
    %2463 = vmatprep.subr.mxu0 0.0
    %2464 = vmatpush1.msra.mxu0 %v2030
    %2465 = vmatprep.subr.mxu0 0.0
    %2466 = vmatpush1.msra.mxu0 %v2033
    %2467 = vmatprep.subr.mxu0 0.0
    %2468 = vmatpush1.msra.mxu0 %v2036
    %2469 = vmatprep.subr.mxu0 0.0
    %2470 = vmatpush1.msra.mxu0 %v2039
    %2471 = vmatprep.subr.mxu0 0.0
    %2472 = vmatpush1.msra.mxu0 0.0
    %2473 = vmatprep.subr.mxu0 0.0
    %2474 = vmatpush1.msra.mxu0 0.0
    %2475 = vmatprep.subr.mxu0 0.0
    %2476 = vmatpush1.msra.mxu0 0.0
    %2477 = vmatprep.subr.mxu0 0.0
    %2478 = vmatpush1.msra.mxu0 0.0
    %2479 = vmatprep.subr.mxu0 0.0
    %2480 = vmatpush1.msra.mxu0 0.0
    %2481 = vmatprep.subr.mxu0 0.0
    %2482 = vmatpush1.msra.mxu0 0.0
    %2483 = vmatprep.subr.mxu0 0.0
    %2484 = vmatpush1.msra.mxu0 0.0
    %2485 = vmatprep.subr.mxu0 0.0
    %2486 = vmatpush1.msra.mxu0 0.0
    %2487 = vmatprep.subr.mxu0 0.0
    %2488 = vmatpush1.msra.mxu0 0.0
    %2489 = vmatprep.subr.mxu0 0.0
    %2490 = vmatpush1.msra.mxu0 0.0
    %2491 = vmatprep.subr.mxu0 0.0
    %2492 = vmatpush1.msra.mxu0 0.0
    %2493 = vmatprep.subr.mxu0 0.0
    %2494 = vmatpush1.msra.mxu0 0.0
    %2495 = vmatprep.subr.mxu0 0.0
    %2496 = vmatpush1.msra.mxu0 0.0
    %2497 = vmatprep.subr.mxu0 0.0
    %2498 = vmatpush1.msra.mxu0 0.0
    %2499 = vmatprep.subr.mxu0 0.0
    %2500 = vmatpush1.msra.mxu0 0.0
    %2501 = vmatprep.subr.mxu0 0.0
    %2502 = vmatpush1.msra.mxu0 0.0
    %2503 = vmatprep.subr.mxu0 0.0
    %2504 = vmatpush1.msra.mxu0 0.0
    %2505 = vmatprep.subr.mxu0 0.0
    %2506 = vmatpush1.msra.mxu0 0.0
    %2507 = vmatprep.subr.mxu0 0.0
    %2508 = vmatpush1.msra.mxu0 0.0
    %2509 = vmatprep.subr.mxu0 0.0
    %2510 = vmatpush1.msra.mxu0 0.0
    %2511 = vmatprep.subr.mxu0 0.0
    %2512 = vmatpush1.msra.mxu0 0.0
    %2513 = vmatprep.subr.mxu0 0.0
    %2514 = vmatpush1.msra.mxu0 0.0
    %2515 = vmatprep.subr.mxu0 0.0
    %2516 = vmatpush1.msra.mxu0 0.0
    %2517 = vmatprep.subr.mxu0 0.0
    %2518 = vmatpush1.msra.mxu0 0.0
    %2519 = vmatprep.subr.mxu0 0.0
    %2520 = vmatpush1.msra.mxu0 0.0
    %2521 = vmatprep.subr.mxu0 0.0
    %2522 = vmatpush1.msra.mxu0 0.0
    %2523 = vmatprep.subr.mxu0 0.0
    %2524 = vmatpush1.msra.mxu0 0.0
    %2525 = vmatprep.subr.mxu0 0.0
    %2526 = vmatpush1.msra.mxu0 0.0
    %2527 = vmatprep.mubr.f32.mxu0 0.0
    %2528 = vmatmul.mubr.f32.gmra.mrb[0].mxu0 %v2390
    %v2529 = vpop.f32.mrb[0].mxu0
    %v2530 = vadd.f32 0.0, %v2529
    %v2531 = vpop.f32.mrb[0].mxu0
    %2532 = vdwg.mxu0
    %v2533 = vadd.f32 %v2386, %v2459
    %v2534 = vxor.u32 %v2533, 2147483648
    %v2535 = vmul.f32 %v2534, 1.442695
    %v2536 = vpow.pop %v2535
    %v2537 = vadd.f32 %v2536, 1.0
    %v2538 = vrcp.pop %v2537
    %v2539 = vmul.f32 1.0, %v2538
    %v2540 = vadd.f32 %v2387, %v2461
    %v2541 = vxor.u32 %v2540, 2147483648
    %v2542 = vmul.f32 %v2541, 1.442695
    %v2543 = vpow.pop %v2542
    %v2544 = vadd.f32 %v2543, 1.0
    %v2545 = vrcp.pop %v2544
    %v2546 = vmul.f32 1.0, %v2545
    %v2547 = vadd.f32 %v2530, %v2046
    %v2548 = vmul.f32 %v2539, %v2547
    %v2549 = vadd.f32 %v2388, %v2548
    %v2550 = vtanh.pop %v2549
    %v2551 = vsub.f32 %v2385, %v2550
    %v2552 = vmul.f32 %v2546, %v2551
    %v2553 = vadd.f32 %v2550, %v2552
    %v2554 = vld [vmem:[%s867] sm:$0xff]
    %v2555 = vld [vmem:[%s867 + $0x8] sm:$0xff]
    %v2556 = vld [vmem:[%s867 + $0x10] sm:$0xff]
    %v2558 = vsel %vm358, %v2553, 0
    %2560 = vmatprep.subr.mxu0 %v2029
    %2561 = vmatpush1.msra.mxu0 %v2028
    %2562 = vmatprep.subr.mxu0 %v2032
    %2563 = vmatpush1.msra.mxu0 %v2031
    %2564 = vmatprep.subr.mxu0 %v2035
    %2565 = vmatpush1.msra.mxu0 %v2034
    %2566 = vmatprep.subr.mxu0 %v2038
    %2567 = vmatpush1.msra.mxu0 %v2037
    %2568 = vmatprep.subr.mxu0 0.0
    %2569 = vmatpush1.msra.mxu0 0.0
    %2570 = vmatprep.subr.mxu0 0.0
    %2571 = vmatpush1.msra.mxu0 0.0
    %2572 = vmatprep.subr.mxu0 0.0
    %2573 = vmatpush1.msra.mxu0 0.0
    %2574 = vmatprep.subr.mxu0 0.0
    %2575 = vmatpush1.msra.mxu0 0.0
    %2576 = vmatprep.subr.mxu0 0.0
    %2577 = vmatpush1.msra.mxu0 0.0
    %2578 = vmatprep.subr.mxu0 0.0
    %2579 = vmatpush1.msra.mxu0 0.0
    %2580 = vmatprep.subr.mxu0 0.0
    %2581 = vmatpush1.msra.mxu0 0.0
    %2582 = vmatprep.subr.mxu0 0.0
    %2583 = vmatpush1.msra.mxu0 0.0
    %2584 = vmatprep.subr.mxu0 0.0
    %2585 = vmatpush1.msra.mxu0 0.0
    %2586 = vmatprep.subr.mxu0 0.0
    %2587 = vmatpush1.msra.mxu0 0.0
    %2588 = vmatprep.subr.mxu0 0.0
    %2589 = vmatpush1.msra.mxu0 0.0
    %2590 = vmatprep.subr.mxu0 0.0
    %2591 = vmatpush1.msra.mxu0 0.0
    %2592 = vmatprep.subr.mxu0 0.0
    %2593 = vmatpush1.msra.mxu0 0.0
    %2594 = vmatprep.subr.mxu0 0.0
    %2595 = vmatpush1.msra.mxu0 0.0
    %2596 = vmatprep.subr.mxu0 0.0
    %2597 = vmatpush1.msra.mxu0 0.0
    %2598 = vmatprep.subr.mxu0 0.0
    %2599 = vmatpush1.msra.mxu0 0.0
    %2600 = vmatprep.subr.mxu0 0.0
    %2601 = vmatpush1.msra.mxu0 0.0
    %2602 = vmatprep.subr.mxu0 0.0
    %2603 = vmatpush1.msra.mxu0 0.0
    %2604 = vmatprep.subr.mxu0 0.0
    %2605 = vmatpush1.msra.mxu0 0.0
    %2606 = vmatprep.subr.mxu0 0.0
    %2607 = vmatpush1.msra.mxu0 0.0
    %2608 = vmatprep.subr.mxu0 0.0
    %2609 = vmatpush1.msra.mxu0 0.0
    %2610 = vmatprep.subr.mxu0 0.0
    %2611 = vmatpush1.msra.mxu0 0.0
    %2612 = vmatprep.subr.mxu0 0.0
    %2613 = vmatpush1.msra.mxu0 0.0
    %2614 = vmatprep.subr.mxu0 0.0
    %2615 = vmatpush1.msra.mxu0 0.0
    %2616 = vmatprep.subr.mxu0 0.0
    %2617 = vmatpush1.msra.mxu0 0.0
    %2618 = vmatprep.subr.mxu0 0.0
    %2619 = vmatpush1.msra.mxu0 0.0
    %2620 = vmatprep.subr.mxu0 0.0
    %2621 = vmatpush1.msra.mxu0 0.0
    %2622 = vmatprep.subr.mxu0 0.0
    %2623 = vmatpush1.msra.mxu0 0.0
    %2624 = vmatprep.mubr.f32.mxu0 0.0
    %2625 = vmatmul.mubr.f32.gmra.mrb[0].mxu0 %v2558
    %v2626 = vpop.f32.mrb[0].mxu0
    %v2627 = vadd.f32 0.0, %v2626
    %v2628 = vpop.f32.mrb[0].mxu0
    %v2629 = vadd.f32 0.0, %v2628
    %2630 = vdwg.mxu0
    %2631 = vmatprep.subr.mxu0 0.0
    %2632 = vmatpush1.msra.mxu0 %v2030
    %2633 = vmatprep.subr.mxu0 0.0
    %2634 = vmatpush1.msra.mxu0 %v2033
    %2635 = vmatprep.subr.mxu0 0.0
    %2636 = vmatpush1.msra.mxu0 %v2036
    %2637 = vmatprep.subr.mxu0 0.0
    %2638 = vmatpush1.msra.mxu0 %v2039
    %2639 = vmatprep.subr.mxu0 0.0
    %2640 = vmatpush1.msra.mxu0 0.0
    %2641 = vmatprep.subr.mxu0 0.0
    %2642 = vmatpush1.msra.mxu0 0.0
    %2643 = vmatprep.subr.mxu0 0.0
    %2644 = vmatpush1.msra.mxu0 0.0
    %2645 = vmatprep.subr.mxu0 0.0
    %2646 = vmatpush1.msra.mxu0 0.0
    %2647 = vmatprep.subr.mxu0 0.0
    %2648 = vmatpush1.msra.mxu0 0.0
    %2649 = vmatprep.subr.mxu0 0.0
    %2650 = vmatpush1.msra.mxu0 0.0
    %2651 = vmatprep.subr.mxu0 0.0
    %2652 = vmatpush1.msra.mxu0 0.0
    %2653 = vmatprep.subr.mxu0 0.0
    %2654 = vmatpush1.msra.mxu0 0.0
    %2655 = vmatprep.subr.mxu0 0.0
    %2656 = vmatpush1.msra.mxu0 0.0
    %2657 = vmatprep.subr.mxu0 0.0
    %2658 = vmatpush1.msra.mxu0 0.0
    %2659 = vmatprep.subr.mxu0 0.0
    %2660 = vmatpush1.msra.mxu0 0.0
    %2661 = vmatprep.subr.mxu0 0.0
    %2662 = vmatpush1.msra.mxu0 0.0
    %2663 = vmatprep.subr.mxu0 0.0
    %2664 = vmatpush1.msra.mxu0 0.0
    %2665 = vmatprep.subr.mxu0 0.0
    %2666 = vmatpush1.msra.mxu0 0.0
    %2667 = vmatprep.subr.mxu0 0.0
    %2668 = vmatpush1.msra.mxu0 0.0
    %2669 = vmatprep.subr.mxu0 0.0
    %2670 = vmatpush1.msra.mxu0 0.0
    %2671 = vmatprep.subr.mxu0 0.0
    %2672 = vmatpush1.msra.mxu0 0.0
    %2673 = vmatprep.subr.mxu0 0.0
    %2674 = vmatpush1.msra.mxu0 0.0
    %2675 = vmatprep.subr.mxu0 0.0
    %2676 = vmatpush1.msra.mxu0 0.0
    %2677 = vmatprep.subr.mxu0 0.0
    %2678 = vmatpush1.msra.mxu0 0.0
    %2679 = vmatprep.subr.mxu0 0.0
    %2680 = vmatpush1.msra.mxu0 0.0
    %2681 = vmatprep.subr.mxu0 0.0
    %2682 = vmatpush1.msra.mxu0 0.0
    %2683 = vmatprep.subr.mxu0 0.0
    %2684 = vmatpush1.msra.mxu0 0.0
    %2685 = vmatprep.subr.mxu0 0.0
    %2686 = vmatpush1.msra.mxu0 0.0
    %2687 = vmatprep.subr.mxu0 0.0
    %2688 = vmatpush1.msra.mxu0 0.0
    %2689 = vmatprep.subr.mxu0 0.0
    %2690 = vmatpush1.msra.mxu0 0.0
    %2691 = vmatprep.subr.mxu0 0.0
    %2692 = vmatpush1.msra.mxu0 0.0
    %2693 = vmatprep.subr.mxu0 0.0
    %2694 = vmatpush1.msra.mxu0 0.0
    %2695 = vmatprep.mubr.f32.mxu0 0.0
    %2696 = vmatmul.mubr.f32.gmra.mrb[0].mxu0 %v2558
    %v2697 = vpop.f32.mrb[0].mxu0
    %v2698 = vadd.f32 0.0, %v2697
    %v2699 = vpop.f32.mrb[0].mxu0
    %2700 = vdwg.mxu0
    %v2701 = vadd.f32 %v2554, %v2627
    %v2702 = vxor.u32 %v2701, 2147483648
    %v2703 = vmul.f32 %v2702, 1.442695
    %v2704 = vpow.pop %v2703
    %v2705 = vadd.f32 %v2704, 1.0
    %v2706 = vrcp.pop %v2705
    %v2707 = vmul.f32 1.0, %v2706
    %v2708 = vadd.f32 %v2555, %v2629
    %v2709 = vxor.u32 %v2708, 2147483648
    %v2710 = vmul.f32 %v2709, 1.442695
    %v2711 = vpow.pop %v2710
    %v2712 = vadd.f32 %v2711, 1.0
    %v2713 = vrcp.pop %v2712
    %v2714 = vmul.f32 1.0, %v2713
    %v2715 = vadd.f32 %v2698, %v2046
    %v2716 = vmul.f32 %v2707, %v2715
    %v2717 = vadd.f32 %v2556, %v2716
    %v2718 = vtanh.pop %v2717
    %v2719 = vsub.f32 %v2553, %v2718
    %v2720 = vmul.f32 %v2714, %v2719
    %v2721 = vadd.f32 %v2718, %v2720
    %v2722 = vld [vmem:[%s1038] sm:$0xff]
    %v2723 = vld [vmem:[%s1038 + $0x8] sm:$0xff]
    %v2724 = vld [vmem:[%s1038 + $0x10] sm:$0xff]
    %v2726 = vsel %vm358, %v2721, 0
    %2728 = vmatprep.subr.mxu0 %v2029
    %2729 = vmatpush1.msra.mxu0 %v2028
    %2730 = vmatprep.subr.mxu0 %v2032
    %2731 = vmatpush1.msra.mxu0 %v2031
    %2732 = vmatprep.subr.mxu0 %v2035
    %2733 = vmatpush1.msra.mxu0 %v2034
    %2734 = vmatprep.subr.mxu0 %v2038
    %2735 = vmatpush1.msra.mxu0 %v2037
    %2736 = vmatprep.subr.mxu0 0.0
    %2737 = vmatpush1.msra.mxu0 0.0
    %2738 = vmatprep.subr.mxu0 0.0
    %2739 = vmatpush1.msra.mxu0 0.0
    %2740 = vmatprep.subr.mxu0 0.0
    %2741 = vmatpush1.msra.mxu0 0.0
    %2742 = vmatprep.subr.mxu0 0.0
    %2743 = vmatpush1.msra.mxu0 0.0
    %2744 = vmatprep.subr.mxu0 0.0
    %2745 = vmatpush1.msra.mxu0 0.0
    %2746 = vmatprep.subr.mxu0 0.0
    %2747 = vmatpush1.msra.mxu0 0.0
    %2748 = vmatprep.subr.mxu0 0.0
    %2749 = vmatpush1.msra.mxu0 0.0
    %2750 = vmatprep.subr.mxu0 0.0
    %2751 = vmatpush1.msra.mxu0 0.0
    %2752 = vmatprep.subr.mxu0 0.0
    %2753 = vmatpush1.msra.mxu0 0.0
    %2754 = vmatprep.subr.mxu0 0.0
    %2755 = vmatpush1.msra.mxu0 0.0
    %2756 = vmatprep.subr.mxu0 0.0
    %2757 = vmatpush1.msra.mxu0 0.0
    %2758 = vmatprep.subr.mxu0 0.0
    %2759 = vmatpush1.msra.mxu0 0.0
    %2760 = vmatprep.subr.mxu0 0.0
    %2761 = vmatpush1.msra.mxu0 0.0
    %2762 = vmatprep.subr.mxu0 0.0
    %2763 = vmatpush1.msra.mxu0 0.0
    %2764 = vmatprep.subr.mxu0 0.0
    %2765 = vmatpush1.msra.mxu0 0.0
    %2766 = vmatprep.subr.mxu0 0.0
    %2767 = vmatpush1.msra.mxu0 0.0
    %2768 = vmatprep.subr.mxu0 0.0
    %2769 = vmatpush1.msra.mxu0 0.0
    %2770 = vmatprep.subr.mxu0 0.0
    %2771 = vmatpush1.msra.mxu0 0.0
    %2772 = vmatprep.subr.mxu0 0.0
    %2773 = vmatpush1.msra.mxu0 0.0
    %2774 = vmatprep.subr.mxu0 0.0
    %2775 = vmatpush1.msra.mxu0 0.0
    %2776 = vmatprep.subr.mxu0 0.0
    %2777 = vmatpush1.msra.mxu0 0.0
    %2778 = vmatprep.subr.mxu0 0.0
    %2779 = vmatpush1.msra.mxu0 0.0
    %2780 = vmatprep.subr.mxu0 0.0
    %2781 = vmatpush1.msra.mxu0 0.0
    %2782 = vmatprep.subr.mxu0 0.0
    %2783 = vmatpush1.msra.mxu0 0.0
    %2784 = vmatprep.subr.mxu0 0.0
    %2785 = vmatpush1.msra.mxu0 0.0
    %2786 = vmatprep.subr.mxu0 0.0
    %2787 = vmatpush1.msra.mxu0 0.0
    %2788 = vmatprep.subr.mxu0 0.0
    %2789 = vmatpush1.msra.mxu0 0.0
    %2790 = vmatprep.subr.mxu0 0.0
    %2791 = vmatpush1.msra.mxu0 0.0
    %2792 = vmatprep.mubr.f32.mxu0 0.0
    %2793 = vmatmul.mubr.f32.gmra.mrb[0].mxu0 %v2726
    %v2794 = vpop.f32.mrb[0].mxu0
    %v2795 = vadd.f32 0.0, %v2794
    %v2796 = vpop.f32.mrb[0].mxu0
    %v2797 = vadd.f32 0.0, %v2796
    %2798 = vdwg.mxu0
    %2799 = vmatprep.subr.mxu0 0.0
    %2800 = vmatpush1.msra.mxu0 %v2030
    %2801 = vmatprep.subr.mxu0 0.0
    %2802 = vmatpush1.msra.mxu0 %v2033
    %2803 = vmatprep.subr.mxu0 0.0
    %2804 = vmatpush1.msra.mxu0 %v2036
    %2805 = vmatprep.subr.mxu0 0.0
    %2806 = vmatpush1.msra.mxu0 %v2039
    %2807 = vmatprep.subr.mxu0 0.0
    %2808 = vmatpush1.msra.mxu0 0.0
    %2809 = vmatprep.subr.mxu0 0.0
    %2810 = vmatpush1.msra.mxu0 0.0
    %2811 = vmatprep.subr.mxu0 0.0
    %2812 = vmatpush1.msra.mxu0 0.0
    %2813 = vmatprep.subr.mxu0 0.0
    %2814 = vmatpush1.msra.mxu0 0.0
    %2815 = vmatprep.subr.mxu0 0.0
    %2816 = vmatpush1.msra.mxu0 0.0
    %2817 = vmatprep.subr.mxu0 0.0
    %2818 = vmatpush1.msra.mxu0 0.0
    %2819 = vmatprep.subr.mxu0 0.0
    %2820 = vmatpush1.msra.mxu0 0.0
    %2821 = vmatprep.subr.mxu0 0.0
    %2822 = vmatpush1.msra.mxu0 0.0
    %2823 = vmatprep.subr.mxu0 0.0
    %2824 = vmatpush1.msra.mxu0 0.0
    %2825 = vmatprep.subr.mxu0 0.0
    %2826 = vmatpush1.msra.mxu0 0.0
    %2827 = vmatprep.subr.mxu0 0.0
    %2828 = vmatpush1.msra.mxu0 0.0
    %2829 = vmatprep.subr.mxu0 0.0
    %2830 = vmatpush1.msra.mxu0 0.0
    %2831 = vmatprep.subr.mxu0 0.0
    %2832 = vmatpush1.msra.mxu0 0.0
    %2833 = vmatprep.subr.mxu0 0.0
    %2834 = vmatpush1.msra.mxu0 0.0
    %2835 = vmatprep.subr.mxu0 0.0
    %2836 = vmatpush1.msra.mxu0 0.0
    %2837 = vmatprep.subr.mxu0 0.0
    %2838 = vmatpush1.msra.mxu0 0.0
    %2839 = vmatprep.subr.mxu0 0.0
    %2840 = vmatpush1.msra.mxu0 0.0
    %2841 = vmatprep.subr.mxu0 0.0
    %2842 = vmatpush1.msra.mxu0 0.0
    %2843 = vmatprep.subr.mxu0 0.0
    %2844 = vmatpush1.msra.mxu0 0.0
    %2845 = vmatprep.subr.mxu0 0.0
    %2846 = vmatpush1.msra.mxu0 0.0
    %2847 = vmatprep.subr.mxu0 0.0
    %2848 = vmatpush1.msra.mxu0 0.0
    %2849 = vmatprep.subr.mxu0 0.0
    %2850 = vmatpush1.msra.mxu0 0.0
    %2851 = vmatprep.subr.mxu0 0.0
    %2852 = vmatpush1.msra.mxu0 0.0
    %2853 = vmatprep.subr.mxu0 0.0
    %2854 = vmatpush1.msra.mxu0 0.0
    %2855 = vmatprep.subr.mxu0 0.0
    %2856 = vmatpush1.msra.mxu0 0.0
    %2857 = vmatprep.subr.mxu0 0.0
    %2858 = vmatpush1.msra.mxu0 0.0
    %2859 = vmatprep.subr.mxu0 0.0
    %2860 = vmatpush1.msra.mxu0 0.0
    %2861 = vmatprep.subr.mxu0 0.0
    %2862 = vmatpush1.msra.mxu0 0.0
    %2863 = vmatprep.mubr.f32.mxu0 0.0
    %2864 = vmatmul.mubr.f32.gmra.mrb[0].mxu0 %v2726
    %v2865 = vpop.f32.mrb[0].mxu0
    %v2866 = vadd.f32 0.0, %v2865
    %v2867 = vpop.f32.mrb[0].mxu0
    %2868 = vdwg.mxu0
    %v2869 = vadd.f32 %v2722, %v2795
    %v2870 = vxor.u32 %v2869, 2147483648
    %v2871 = vmul.f32 %v2870, 1.442695
    %v2872 = vpow.pop %v2871
    %v2873 = vadd.f32 %v2872, 1.0
    %v2874 = vrcp.pop %v2873
    %v2875 = vmul.f32 1.0, %v2874
    %v2876 = vadd.f32 %v2723, %v2797
    %v2877 = vxor.u32 %v2876, 2147483648
    %v2878 = vmul.f32 %v2877, 1.442695
    %v2879 = vpow.pop %v2878
    %v2880 = vadd.f32 %v2879, 1.0
    %v2881 = vrcp.pop %v2880
    %v2882 = vmul.f32 1.0, %v2881
    %v2883 = vadd.f32 %v2866, %v2046
    %v2884 = vmul.f32 %v2875, %v2883
    %v2885 = vadd.f32 %v2724, %v2884
    %v2886 = vtanh.pop %v2885
    %v2887 = vsub.f32 %v2721, %v2886
    %v2888 = vmul.f32 %v2882, %v2887
    %v2889 = vadd.f32 %v2886, %v2888
    %v2890 = vld [vmem:[%s1209] sm:$0xff]
    %v2891 = vld [vmem:[%s1209 + $0x8] sm:$0xff]
    %v2892 = vld [vmem:[%s1209 + $0x10] sm:$0xff]
    %v2894 = vsel %vm358, %v2889, 0
    %2896 = vmatprep.subr.mxu0 %v2029
    %2897 = vmatpush1.msra.mxu0 %v2028
    %2898 = vmatprep.subr.mxu0 %v2032
    %2899 = vmatpush1.msra.mxu0 %v2031
    %2900 = vmatprep.subr.mxu0 %v2035
    %2901 = vmatpush1.msra.mxu0 %v2034
    %2902 = vmatprep.subr.mxu0 %v2038
    %2903 = vmatpush1.msra.mxu0 %v2037
    %2904 = vmatprep.subr.mxu0 0.0
    %2905 = vmatpush1.msra.mxu0 0.0
    %2906 = vmatprep.subr.mxu0 0.0
    %2907 = vmatpush1.msra.mxu0 0.0
    %2908 = vmatprep.subr.mxu0 0.0
    %2909 = vmatpush1.msra.mxu0 0.0
    %2910 = vmatprep.subr.mxu0 0.0
    %2911 = vmatpush1.msra.mxu0 0.0
    %2912 = vmatprep.subr.mxu0 0.0
    %2913 = vmatpush1.msra.mxu0 0.0
    %2914 = vmatprep.subr.mxu0 0.0
    %2915 = vmatpush1.msra.mxu0 0.0
    %2916 = vmatprep.subr.mxu0 0.0
    %2917 = vmatpush1.msra.mxu0 0.0
    %2918 = vmatprep.subr.mxu0 0.0
    %2919 = vmatpush1.msra.mxu0 0.0
    %2920 = vmatprep.subr.mxu0 0.0
    %2921 = vmatpush1.msra.mxu0 0.0
    %2922 = vmatprep.subr.mxu0 0.0
    %2923 = vmatpush1.msra.mxu0 0.0
    %2924 = vmatprep.subr.mxu0 0.0
    %2925 = vmatpush1.msra.mxu0 0.0
    %2926 = vmatprep.subr.mxu0 0.0
    %2927 = vmatpush1.msra.mxu0 0.0
    %2928 = vmatprep.subr.mxu0 0.0
    %2929 = vmatpush1.msra.mxu0 0.0
    %2930 = vmatprep.subr.mxu0 0.0
    %2931 = vmatpush1.msra.mxu0 0.0
    %2932 = vmatprep.subr.mxu0 0.0
    %2933 = vmatpush1.msra.mxu0 0.0
    %2934 = vmatprep.subr.mxu0 0.0
    %2935 = vmatpush1.msra.mxu0 0.0
    %2936 = vmatprep.subr.mxu0 0.0
    %2937 = vmatpush1.msra.mxu0 0.0
    %2938 = vmatprep.subr.mxu0 0.0
    %2939 = vmatpush1.msra.mxu0 0.0
    %2940 = vmatprep.subr.mxu0 0.0
    %2941 = vmatpush1.msra.mxu0 0.0
    %2942 = vmatprep.subr.mxu0 0.0
    %2943 = vmatpush1.msra.mxu0 0.0
    %2944 = vmatprep.subr.mxu0 0.0
    %2945 = vmatpush1.msra.mxu0 0.0
    %2946 = vmatprep.subr.mxu0 0.0
    %2947 = vmatpush1.msra.mxu0 0.0
    %2948 = vmatprep.subr.mxu0 0.0
    %2949 = vmatpush1.msra.mxu0 0.0
    %2950 = vmatprep.subr.mxu0 0.0
    %2951 = vmatpush1.msra.mxu0 0.0
    %2952 = vmatprep.subr.mxu0 0.0
    %2953 = vmatpush1.msra.mxu0 0.0
    %2954 = vmatprep.subr.mxu0 0.0
    %2955 = vmatpush1.msra.mxu0 0.0
    %2956 = vmatprep.subr.mxu0 0.0
    %2957 = vmatpush1.msra.mxu0 0.0
    %2958 = vmatprep.subr.mxu0 0.0
    %2959 = vmatpush1.msra.mxu0 0.0
    %2960 = vmatprep.mubr.f32.mxu0 0.0
    %2961 = vmatmul.mubr.f32.gmra.mrb[0].mxu0 %v2894
    %v2962 = vpop.f32.mrb[0].mxu0
    %v2963 = vadd.f32 0.0, %v2962
    %v2964 = vpop.f32.mrb[0].mxu0
    %v2965 = vadd.f32 0.0, %v2964
    %2966 = vdwg.mxu0
    %2967 = vmatprep.subr.mxu0 0.0
    %2968 = vmatpush1.msra.mxu0 %v2030
    %2969 = vmatprep.subr.mxu0 0.0
    %2970 = vmatpush1.msra.mxu0 %v2033
    %2971 = vmatprep.subr.mxu0 0.0
    %2972 = vmatpush1.msra.mxu0 %v2036
    %2973 = vmatprep.subr.mxu0 0.0
    %2974 = vmatpush1.msra.mxu0 %v2039
    %2975 = vmatprep.subr.mxu0 0.0
    %2976 = vmatpush1.msra.mxu0 0.0
    %2977 = vmatprep.subr.mxu0 0.0
    %2978 = vmatpush1.msra.mxu0 0.0
    %2979 = vmatprep.subr.mxu0 0.0
    %2980 = vmatpush1.msra.mxu0 0.0
    %2981 = vmatprep.subr.mxu0 0.0
    %2982 = vmatpush1.msra.mxu0 0.0
    %2983 = vmatprep.subr.mxu0 0.0
    %2984 = vmatpush1.msra.mxu0 0.0
    %2985 = vmatprep.subr.mxu0 0.0
    %2986 = vmatpush1.msra.mxu0 0.0
    %2987 = vmatprep.subr.mxu0 0.0
    %2988 = vmatpush1.msra.mxu0 0.0
    %2989 = vmatprep.subr.mxu0 0.0
    %2990 = vmatpush1.msra.mxu0 0.0
    %2991 = vmatprep.subr.mxu0 0.0
    %2992 = vmatpush1.msra.mxu0 0.0
    %2993 = vmatprep.subr.mxu0 0.0
    %2994 = vmatpush1.msra.mxu0 0.0
    %2995 = vmatprep.subr.mxu0 0.0
    %2996 = vmatpush1.msra.mxu0 0.0
    %2997 = vmatprep.subr.mxu0 0.0
    %2998 = vmatpush1.msra.mxu0 0.0
    %2999 = vmatprep.subr.mxu0 0.0
    %3000 = vmatpush1.msra.mxu0 0.0
    %3001 = vmatprep.subr.mxu0 0.0
    %3002 = vmatpush1.msra.mxu0 0.0
    %3003 = vmatprep.subr.mxu0 0.0
    %3004 = vmatpush1.msra.mxu0 0.0
    %3005 = vmatprep.subr.mxu0 0.0
    %3006 = vmatpush1.msra.mxu0 0.0
    %3007 = vmatprep.subr.mxu0 0.0
    %3008 = vmatpush1.msra.mxu0 0.0
    %3009 = vmatprep.subr.mxu0 0.0
    %3010 = vmatpush1.msra.mxu0 0.0
    %3011 = vmatprep.subr.mxu0 0.0
    %3012 = vmatpush1.msra.mxu0 0.0
    %3013 = vmatprep.subr.mxu0 0.0
    %3014 = vmatpush1.msra.mxu0 0.0
    %3015 = vmatprep.subr.mxu0 0.0
    %3016 = vmatpush1.msra.mxu0 0.0
    %3017 = vmatprep.subr.mxu0 0.0
    %3018 = vmatpush1.msra.mxu0 0.0
    %3019 = vmatprep.subr.mxu0 0.0
    %3020 = vmatpush1.msra.mxu0 0.0
    %3021 = vmatprep.subr.mxu0 0.0
    %3022 = vmatpush1.msra.mxu0 0.0
    %3023 = vmatprep.subr.mxu0 0.0
    %3024 = vmatpush1.msra.mxu0 0.0
    %3025 = vmatprep.subr.mxu0 0.0
    %3026 = vmatpush1.msra.mxu0 0.0
    %3027 = vmatprep.subr.mxu0 0.0
    %3028 = vmatpush1.msra.mxu0 0.0
    %3029 = vmatprep.subr.mxu0 0.0
    %3030 = vmatpush1.msra.mxu0 0.0
    %3031 = vmatprep.mubr.f32.mxu0 0.0
    %3032 = vmatmul.mubr.f32.gmra.mrb[0].mxu0 %v2894
    %v3033 = vpop.f32.mrb[0].mxu0
    %v3034 = vadd.f32 0.0, %v3033
    %v3035 = vpop.f32.mrb[0].mxu0
    %3036 = vdwg.mxu0
    %v3037 = vadd.f32 %v2890, %v2963
    %v3038 = vxor.u32 %v3037, 2147483648
    %v3039 = vmul.f32 %v3038, 1.442695
    %v3040 = vpow.pop %v3039
    %v3041 = vadd.f32 %v3040, 1.0
    %v3042 = vrcp.pop %v3041
    %v3043 = vmul.f32 1.0, %v3042
    %v3044 = vadd.f32 %v2891, %v2965
    %v3045 = vxor.u32 %v3044, 2147483648
    %v3046 = vmul.f32 %v3045, 1.442695
    %v3047 = vpow.pop %v3046
    %v3048 = vadd.f32 %v3047, 1.0
    %v3049 = vrcp.pop %v3048
    %v3050 = vmul.f32 1.0, %v3049
    %v3051 = vadd.f32 %v3034, %v2046
    %v3052 = vmul.f32 %v3043, %v3051
    %v3053 = vadd.f32 %v2892, %v3052
    %v3054 = vtanh.pop %v3053
    %v3055 = vsub.f32 %v2889, %v3054
    %v3056 = vmul.f32 %v3050, %v3055
    %v3057 = vadd.f32 %v3054, %v3056
    %v3058 = vld [vmem:[%s1380] sm:$0xff]
    %v3059 = vld [vmem:[%s1380 + $0x8] sm:$0xff]
    %v3060 = vld [vmem:[%s1380 + $0x10] sm:$0xff]
    %v3062 = vsel %vm358, %v3057, 0
    %3064 = vmatprep.subr.mxu0 %v2029
    %3065 = vmatpush1.msra.mxu0 %v2028
    %3066 = vmatprep.subr.mxu0 %v2032
    %3067 = vmatpush1.msra.mxu0 %v2031
    %3068 = vmatprep.subr.mxu0 %v2035
    %3069 = vmatpush1.msra.mxu0 %v2034
    %3070 = vmatprep.subr.mxu0 %v2038
    %3071 = vmatpush1.msra.mxu0 %v2037
    %3072 = vmatprep.subr.mxu0 0.0
    %3073 = vmatpush1.msra.mxu0 0.0
    %3074 = vmatprep.subr.mxu0 0.0
    %3075 = vmatpush1.msra.mxu0 0.0
    %3076 = vmatprep.subr.mxu0 0.0
    %3077 = vmatpush1.msra.mxu0 0.0
    %3078 = vmatprep.subr.mxu0 0.0
    %3079 = vmatpush1.msra.mxu0 0.0
    %3080 = vmatprep.subr.mxu0 0.0
    %3081 = vmatpush1.msra.mxu0 0.0
    %3082 = vmatprep.subr.mxu0 0.0
    %3083 = vmatpush1.msra.mxu0 0.0
    %3084 = vmatprep.subr.mxu0 0.0
    %3085 = vmatpush1.msra.mxu0 0.0
    %3086 = vmatprep.subr.mxu0 0.0
    %3087 = vmatpush1.msra.mxu0 0.0
    %3088 = vmatprep.subr.mxu0 0.0
    %3089 = vmatpush1.msra.mxu0 0.0
    %3090 = vmatprep.subr.mxu0 0.0
    %3091 = vmatpush1.msra.mxu0 0.0
    %3092 = vmatprep.subr.mxu0 0.0
    %3093 = vmatpush1.msra.mxu0 0.0
    %3094 = vmatprep.subr.mxu0 0.0
    %3095 = vmatpush1.msra.mxu0 0.0
    %3096 = vmatprep.subr.mxu0 0.0
    %3097 = vmatpush1.msra.mxu0 0.0
    %3098 = vmatprep.subr.mxu0 0.0
    %3099 = vmatpush1.msra.mxu0 0.0
    %3100 = vmatprep.subr.mxu0 0.0
    %3101 = vmatpush1.msra.mxu0 0.0
    %3102 = vmatprep.subr.mxu0 0.0
    %3103 = vmatpush1.msra.mxu0 0.0
    %3104 = vmatprep.subr.mxu0 0.0
    %3105 = vmatpush1.msra.mxu0 0.0
    %3106 = vmatprep.subr.mxu0 0.0
    %3107 = vmatpush1.msra.mxu0 0.0
    %3108 = vmatprep.subr.mxu0 0.0
    %3109 = vmatpush1.msra.mxu0 0.0
    %3110 = vmatprep.subr.mxu0 0.0
    %3111 = vmatpush1.msra.mxu0 0.0
    %3112 = vmatprep.subr.mxu0 0.0
    %3113 = vmatpush1.msra.mxu0 0.0
    %3114 = vmatprep.subr.mxu0 0.0
    %3115 = vmatpush1.msra.mxu0 0.0
    %3116 = vmatprep.subr.mxu0 0.0
    %3117 = vmatpush1.msra.mxu0 0.0
    %3118 = vmatprep.subr.mxu0 0.0
    %3119 = vmatpush1.msra.mxu0 0.0
    %3120 = vmatprep.subr.mxu0 0.0
    %3121 = vmatpush1.msra.mxu0 0.0
    %3122 = vmatprep.subr.mxu0 0.0
    %3123 = vmatpush1.msra.mxu0 0.0
    %3124 = vmatprep.subr.mxu0 0.0
    %3125 = vmatpush1.msra.mxu0 0.0
    %3126 = vmatprep.subr.mxu0 0.0
    %3127 = vmatpush1.msra.mxu0 0.0
    %3128 = vmatprep.mubr.f32.mxu0 0.0
    %3129 = vmatmul.mubr.f32.gmra.mrb[0].mxu0 %v3062
    %v3130 = vpop.f32.mrb[0].mxu0
    %v3131 = vadd.f32 0.0, %v3130
    %v3132 = vpop.f32.mrb[0].mxu0
    %v3133 = vadd.f32 0.0, %v3132
    %3134 = vdwg.mxu0
    %3135 = vmatprep.subr.mxu0 0.0
    %3136 = vmatpush1.msra.mxu0 %v2030
    %3137 = vmatprep.subr.mxu0 0.0
    %3138 = vmatpush1.msra.mxu0 %v2033
    %3139 = vmatprep.subr.mxu0 0.0
    %3140 = vmatpush1.msra.mxu0 %v2036
    %3141 = vmatprep.subr.mxu0 0.0
    %3142 = vmatpush1.msra.mxu0 %v2039
    %3143 = vmatprep.subr.mxu0 0.0
    %3144 = vmatpush1.msra.mxu0 0.0
    %3145 = vmatprep.subr.mxu0 0.0
    %3146 = vmatpush1.msra.mxu0 0.0
    %3147 = vmatprep.subr.mxu0 0.0
    %3148 = vmatpush1.msra.mxu0 0.0
    %3149 = vmatprep.subr.mxu0 0.0
    %3150 = vmatpush1.msra.mxu0 0.0
    %3151 = vmatprep.subr.mxu0 0.0
    %3152 = vmatpush1.msra.mxu0 0.0
    %3153 = vmatprep.subr.mxu0 0.0
    %3154 = vmatpush1.msra.mxu0 0.0
    %3155 = vmatprep.subr.mxu0 0.0
    %3156 = vmatpush1.msra.mxu0 0.0
    %3157 = vmatprep.subr.mxu0 0.0
    %3158 = vmatpush1.msra.mxu0 0.0
    %3159 = vmatprep.subr.mxu0 0.0
    %3160 = vmatpush1.msra.mxu0 0.0
    %3161 = vmatprep.subr.mxu0 0.0
    %3162 = vmatpush1.msra.mxu0 0.0
    %3163 = vmatprep.subr.mxu0 0.0
    %3164 = vmatpush1.msra.mxu0 0.0
    %3165 = vmatprep.subr.mxu0 0.0
    %3166 = vmatpush1.msra.mxu0 0.0
    %3167 = vmatprep.subr.mxu0 0.0
    %3168 = vmatpush1.msra.mxu0 0.0
    %3169 = vmatprep.subr.mxu0 0.0
    %3170 = vmatpush1.msra.mxu0 0.0
    %3171 = vmatprep.subr.mxu0 0.0
    %3172 = vmatpush1.msra.mxu0 0.0
    %3173 = vmatprep.subr.mxu0 0.0
    %3174 = vmatpush1.msra.mxu0 0.0
    %3175 = vmatprep.subr.mxu0 0.0
    %3176 = vmatpush1.msra.mxu0 0.0
    %3177 = vmatprep.subr.mxu0 0.0
    %3178 = vmatpush1.msra.mxu0 0.0
    %3179 = vmatprep.subr.mxu0 0.0
    %3180 = vmatpush1.msra.mxu0 0.0
    %3181 = vmatprep.subr.mxu0 0.0
    %3182 = vmatpush1.msra.mxu0 0.0
    %3183 = vmatprep.subr.mxu0 0.0
    %3184 = vmatpush1.msra.mxu0 0.0
    %3185 = vmatprep.subr.mxu0 0.0
    %3186 = vmatpush1.msra.mxu0 0.0
    %3187 = vmatprep.subr.mxu0 0.0
    %3188 = vmatpush1.msra.mxu0 0.0
    %3189 = vmatprep.subr.mxu0 0.0
    %3190 = vmatpush1.msra.mxu0 0.0
    %3191 = vmatprep.subr.mxu0 0.0
    %3192 = vmatpush1.msra.mxu0 0.0
    %3193 = vmatprep.subr.mxu0 0.0
    %3194 = vmatpush1.msra.mxu0 0.0
    %3195 = vmatprep.subr.mxu0 0.0
    %3196 = vmatpush1.msra.mxu0 0.0
    %3197 = vmatprep.subr.mxu0 0.0
    %3198 = vmatpush1.msra.mxu0 0.0
    %3199 = vmatprep.mubr.f32.mxu0 0.0
    %3200 = vmatmul.mubr.f32.gmra.mrb[0].mxu0 %v3062
    %v3201 = vpop.f32.mrb[0].mxu0
    %v3202 = vadd.f32 0.0, %v3201
    %v3203 = vpop.f32.mrb[0].mxu0
    %3204 = vdwg.mxu0
    %v3205 = vadd.f32 %v3058, %v3131
    %v3206 = vxor.u32 %v3205, 2147483648
    %v3207 = vmul.f32 %v3206, 1.442695
    %v3208 = vpow.pop %v3207
    %v3209 = vadd.f32 %v3208, 1.0
    %v3210 = vrcp.pop %v3209
    %v3211 = vmul.f32 1.0, %v3210
    %v3212 = vadd.f32 %v3059, %v3133
    %v3213 = vxor.u32 %v3212, 2147483648
    %v3214 = vmul.f32 %v3213, 1.442695
    %v3215 = vpow.pop %v3214
    %v3216 = vadd.f32 %v3215, 1.0
    %v3217 = vrcp.pop %v3216
    %v3218 = vmul.f32 1.0, %v3217
    %v3219 = vadd.f32 %v3202, %v2046
    %v3220 = vmul.f32 %v3211, %v3219
    %v3221 = vadd.f32 %v3060, %v3220
    %v3222 = vtanh.pop %v3221
    %v3223 = vsub.f32 %v3057, %v3222
    %v3224 = vmul.f32 %v3218, %v3223
    %v3225 = vadd.f32 %v3222, %v3224
    %v3226 = vld [vmem:[%s1551] sm:$0xff]
    %v3227 = vld [vmem:[%s1551 + $0x8] sm:$0xff]
    %v3228 = vld [vmem:[%s1551 + $0x10] sm:$0xff]
    %v3230 = vsel %vm358, %v3225, 0
    %3232 = vmatprep.subr.mxu0 %v2029
    %3233 = vmatpush1.msra.mxu0 %v2028
    %3234 = vmatprep.subr.mxu0 %v2032
    %3235 = vmatpush1.msra.mxu0 %v2031
    %3236 = vmatprep.subr.mxu0 %v2035
    %3237 = vmatpush1.msra.mxu0 %v2034
    %3238 = vmatprep.subr.mxu0 %v2038
    %3239 = vmatpush1.msra.mxu0 %v2037
    %3240 = vmatprep.subr.mxu0 0.0
    %3241 = vmatpush1.msra.mxu0 0.0
    %3242 = vmatprep.subr.mxu0 0.0
    %3243 = vmatpush1.msra.mxu0 0.0
    %3244 = vmatprep.subr.mxu0 0.0
    %3245 = vmatpush1.msra.mxu0 0.0
    %3246 = vmatprep.subr.mxu0 0.0
    %3247 = vmatpush1.msra.mxu0 0.0
    %3248 = vmatprep.subr.mxu0 0.0
    %3249 = vmatpush1.msra.mxu0 0.0
    %3250 = vmatprep.subr.mxu0 0.0
    %3251 = vmatpush1.msra.mxu0 0.0
    %3252 = vmatprep.subr.mxu0 0.0
    %3253 = vmatpush1.msra.mxu0 0.0
    %3254 = vmatprep.subr.mxu0 0.0
    %3255 = vmatpush1.msra.mxu0 0.0
    %3256 = vmatprep.subr.mxu0 0.0
    %3257 = vmatpush1.msra.mxu0 0.0
    %3258 = vmatprep.subr.mxu0 0.0
    %3259 = vmatpush1.msra.mxu0 0.0
    %3260 = vmatprep.subr.mxu0 0.0
    %3261 = vmatpush1.msra.mxu0 0.0
    %3262 = vmatprep.subr.mxu0 0.0
    %3263 = vmatpush1.msra.mxu0 0.0
    %3264 = vmatprep.subr.mxu0 0.0
    %3265 = vmatpush1.msra.mxu0 0.0
    %3266 = vmatprep.subr.mxu0 0.0
    %3267 = vmatpush1.msra.mxu0 0.0
    %3268 = vmatprep.subr.mxu0 0.0
    %3269 = vmatpush1.msra.mxu0 0.0
    %3270 = vmatprep.subr.mxu0 0.0
    %3271 = vmatpush1.msra.mxu0 0.0
    %3272 = vmatprep.subr.mxu0 0.0
    %3273 = vmatpush1.msra.mxu0 0.0
    %3274 = vmatprep.subr.mxu0 0.0
    %3275 = vmatpush1.msra.mxu0 0.0
    %3276 = vmatprep.subr.mxu0 0.0
    %3277 = vmatpush1.msra.mxu0 0.0
    %3278 = vmatprep.subr.mxu0 0.0
    %3279 = vmatpush1.msra.mxu0 0.0
    %3280 = vmatprep.subr.mxu0 0.0
    %3281 = vmatpush1.msra.mxu0 0.0
    %3282 = vmatprep.subr.mxu0 0.0
    %3283 = vmatpush1.msra.mxu0 0.0
    %3284 = vmatprep.subr.mxu0 0.0
    %3285 = vmatpush1.msra.mxu0 0.0
    %3286 = vmatprep.subr.mxu0 0.0
    %3287 = vmatpush1.msra.mxu0 0.0
    %3288 = vmatprep.subr.mxu0 0.0
    %3289 = vmatpush1.msra.mxu0 0.0
    %3290 = vmatprep.subr.mxu0 0.0
    %3291 = vmatpush1.msra.mxu0 0.0
    %3292 = vmatprep.subr.mxu0 0.0
    %3293 = vmatpush1.msra.mxu0 0.0
    %3294 = vmatprep.subr.mxu0 0.0
    %3295 = vmatpush1.msra.mxu0 0.0
    %3296 = vmatprep.mubr.f32.mxu0 0.0
    %3297 = vmatmul.mubr.f32.gmra.mrb[0].mxu0 %v3230
    %v3298 = vpop.f32.mrb[0].mxu0
    %v3299 = vadd.f32 0.0, %v3298
    %v3300 = vpop.f32.mrb[0].mxu0
    %v3301 = vadd.f32 0.0, %v3300
    %3302 = vdwg.mxu0
    %3303 = vmatprep.subr.mxu0 0.0
    %3304 = vmatpush1.msra.mxu0 %v2030
    %3305 = vmatprep.subr.mxu0 0.0
    %3306 = vmatpush1.msra.mxu0 %v2033
    %3307 = vmatprep.subr.mxu0 0.0
    %3308 = vmatpush1.msra.mxu0 %v2036
    %3309 = vmatprep.subr.mxu0 0.0
    %3310 = vmatpush1.msra.mxu0 %v2039
    %3311 = vmatprep.subr.mxu0 0.0
    %3312 = vmatpush1.msra.mxu0 0.0
    %3313 = vmatprep.subr.mxu0 0.0
    %3314 = vmatpush1.msra.mxu0 0.0
    %3315 = vmatprep.subr.mxu0 0.0
    %3316 = vmatpush1.msra.mxu0 0.0
    %3317 = vmatprep.subr.mxu0 0.0
    %3318 = vmatpush1.msra.mxu0 0.0
    %3319 = vmatprep.subr.mxu0 0.0
    %3320 = vmatpush1.msra.mxu0 0.0
    %3321 = vmatprep.subr.mxu0 0.0
    %3322 = vmatpush1.msra.mxu0 0.0
    %3323 = vmatprep.subr.mxu0 0.0
    %3324 = vmatpush1.msra.mxu0 0.0
    %3325 = vmatprep.subr.mxu0 0.0
    %3326 = vmatpush1.msra.mxu0 0.0
    %3327 = vmatprep.subr.mxu0 0.0
    %3328 = vmatpush1.msra.mxu0 0.0
    %3329 = vmatprep.subr.mxu0 0.0
    %3330 = vmatpush1.msra.mxu0 0.0
    %3331 = vmatprep.subr.mxu0 0.0
    %3332 = vmatpush1.msra.mxu0 0.0
    %3333 = vmatprep.subr.mxu0 0.0
    %3334 = vmatpush1.msra.mxu0 0.0
    %3335 = vmatprep.subr.mxu0 0.0
    %3336 = vmatpush1.msra.mxu0 0.0
    %3337 = vmatprep.subr.mxu0 0.0
    %3338 = vmatpush1.msra.mxu0 0.0
    %3339 = vmatprep.subr.mxu0 0.0
    %3340 = vmatpush1.msra.mxu0 0.0
    %3341 = vmatprep.subr.mxu0 0.0
    %3342 = vmatpush1.msra.mxu0 0.0
    %3343 = vmatprep.subr.mxu0 0.0
    %3344 = vmatpush1.msra.mxu0 0.0
    %3345 = vmatprep.subr.mxu0 0.0
    %3346 = vmatpush1.msra.mxu0 0.0
    %3347 = vmatprep.subr.mxu0 0.0
    %3348 = vmatpush1.msra.mxu0 0.0
    %3349 = vmatprep.subr.mxu0 0.0
    %3350 = vmatpush1.msra.mxu0 0.0
    %3351 = vmatprep.subr.mxu0 0.0
    %3352 = vmatpush1.msra.mxu0 0.0
    %3353 = vmatprep.subr.mxu0 0.0
    %3354 = vmatpush1.msra.mxu0 0.0
    %3355 = vmatprep.subr.mxu0 0.0
    %3356 = vmatpush1.msra.mxu0 0.0
    %3357 = vmatprep.subr.mxu0 0.0
    %3358 = vmatpush1.msra.mxu0 0.0
    %3359 = vmatprep.subr.mxu0 0.0
    %3360 = vmatpush1.msra.mxu0 0.0
    %3361 = vmatprep.subr.mxu0 0.0
    %3362 = vmatpush1.msra.mxu0 0.0
    %3363 = vmatprep.subr.mxu0 0.0
    %3364 = vmatpush1.msra.mxu0 0.0
    %3365 = vmatprep.subr.mxu0 0.0
    %3366 = vmatpush1.msra.mxu0 0.0
    %3367 = vmatprep.mubr.f32.mxu0 0.0
    %3368 = vmatmul.mubr.f32.gmra.mrb[0].mxu0 %v3230
    %v3369 = vpop.f32.mrb[0].mxu0
    %v3370 = vadd.f32 0.0, %v3369
    %v3371 = vpop.f32.mrb[0].mxu0
    %3372 = vdwg.mxu0
    %v3373 = vadd.f32 %v3226, %v3299
    %v3374 = vxor.u32 %v3373, 2147483648
    %v3375 = vmul.f32 %v3374, 1.442695
    %v3376 = vpow.pop %v3375
    %v3377 = vadd.f32 %v3376, 1.0
    %v3378 = vrcp.pop %v3377
    %v3379 = vmul.f32 1.0, %v3378
    %v3380 = vadd.f32 %v3227, %v3301
    %v3381 = vxor.u32 %v3380, 2147483648
    %v3382 = vmul.f32 %v3381, 1.442695
    %v3383 = vpow.pop %v3382
    %v3384 = vadd.f32 %v3383, 1.0
    %v3385 = vrcp.pop %v3384
    %v3386 = vmul.f32 1.0, %v3385
    %v3387 = vadd.f32 %v3370, %v2046
    %v3388 = vmul.f32 %v3379, %v3387
    %v3389 = vadd.f32 %v3228, %v3388
    %v3390 = vtanh.pop %v3389
    %v3391 = vsub.f32 %v3225, %v3390
    %v3392 = vmul.f32 %v3386, %v3391
    %v3393 = vadd.f32 %v3390, %v3392
    %s3394 = scalar_lea.vmem %s7, 8
    %3395 = vst.msk [vmem:[%s3394] sm:$0xff] %vm358, %v3393
    // Predicated region
    $region34: #{grunet_forward.1} parent=1 // pred_check
      _
    $region35: #{grunet_forward.1} parent=1 // pred_check_branch
      %3397 = sbr.rel (0) target = $region37
    $region36: #{grunet_forward.1} parent=1 // pred_region
      _
    $region37: #{grunet_forward.1} parent=1 // pred_fallthru
      _
    // Predicated region
    $region38: #{grunet_forward.1} parent=1 // pred_check
      _
    $region39: #{grunet_forward.1} parent=1 // pred_check_branch
      %3399 = sbr.rel (0) target = $region41
    $region40: #{grunet_forward.1} parent=1 // pred_region
      _
    $region41: #{grunet_forward.1} parent=1 // pred_fallthru
      _
    %3400 = vsyncpa [#allocation5], 1

</llo_original>
